<compile_context>
chip_gen: v7x
topology: tpu7x:2x2x1
jax: 0.10.0
libtpu: 0.0.40
codegen_flags: <defaults>
</compile_context>

<pallas_src>
import numpy as np
import jax
import jax.numpy as jnp
from jax.experimental import pallas as pl
from jax.experimental.pallas import tpu as pltpu


# ----------------------------------------------------------------------------
# In-kernel helpers
# ----------------------------------------------------------------------------

def _elu(x):
    # ELU(alpha=1): x if x > 0 else exp(x) - 1   (clamp exp arg for safety)
    return jnp.where(x > 0, x, jnp.exp(jnp.minimum(x, 0.0)) - 1.0)


def _conv_layer(x, n, h_in, m_ref, b_ref, ebuf, obuf):
    """3x3 / stride-2 / pad-1 conv + ELU on an activation slab.

    x     : (h_in*n, w_in*cin) f32 value; row = h*n + b, lane = w*cin + c.
    m_ref : (3, w_in*cin, w_out*cout) bf16 per-kh row matrices (kw taps,
            column stride and column zero-padding folded in at init time).
    b_ref : (1, w_out*cout) f32 bias row.
    ebuf  : f32 VMEM scratch for the kh=1 (even-row) stacked LHS.
    obuf  : f32 VMEM scratch for the odd-row stacked LHS; rows [0:n] are kept
            zero so obuf[0:h_out*n] is the kh=0 LHS (shifted one output row).
    returns (h_out*n, w_out*cout) f32 slab (natural output-row order).
    """
    h_out = (h_in - 1) // 2 + 1
    wc_in = m_ref.shape[1]

    # kh=1 tap LHS: even input rows (2i), stacked along M.
    for i in range(h_out):
        ebuf[i * n:(i + 1) * n, 0:wc_in] = x[2 * i * n:(2 * i + 1) * n, :]
    # kh=0 / kh=2 taps share the odd input rows (2i+1).
    for i in range(h_out):
        r = 2 * i + 1
        if r < h_in:
            obuf[(i + 1) * n:(i + 2) * n, 0:wc_in] = x[r * n:(r + 1) * n, :]
        else:  # bottom zero-pad row (only hit for odd h_in)
            obuf[(i + 1) * n:(i + 2) * n, 0:wc_in] = jnp.zeros((n, wc_in),
                                                               jnp.float32)

    # One weight-stationary matmul per kh tap (RHS consumed exactly once).
    acc = jnp.dot(ebuf[0:h_out * n, 0:wc_in].astype(jnp.bfloat16), m_ref[1],
                  preferred_element_type=jnp.float32)
    acc = acc + jnp.dot(obuf[n:(h_out + 1) * n, 0:wc_in].astype(jnp.bfloat16),
                        m_ref[2], preferred_element_type=jnp.float32)
    if h_out > 1:  # for h_out == 1 the kh=0 LHS is entirely zero padding: skip
        acc = acc + jnp.dot(obuf[0:h_out * n, 0:wc_in].astype(jnp.bfloat16),
                            m_ref[0], preferred_element_type=jnp.float32)
    return _elu(acc + b_ref[...])


def _fused_kernel(x_ref, hx_ref,
                  m1_ref, b1_ref, m2_ref, b2_ref,
                  m3_ref, b3_ref, m4_ref, b4_ref,
                  wgx_ref, wgh_ref, bih_ref, bhh_ref,
                  whd_ref, bhd_ref,
                  hx_out_ref, head_ref,
                  ebuf, obuf):
    n = hx_ref.shape[0]
    hidden = hx_ref.shape[1]
    n_actions = whd_ref.shape[1] - 1
    h = x_ref.shape[0] // n

    # Odd-row buffer keeps a permanent zero group at rows [0:n] (row padding
    # for the kh=0 tap); never overwritten below.
    obuf[0:n, :] = jnp.zeros((n, obuf.shape[1]), jnp.float32)

    # ---- conv stack (activations stay in VMEM/vregs as 2D slabs) -----------
    x = x_ref[...]
    for m_ref, b_ref in ((m1_ref, b1_ref), (m2_ref, b2_ref),
                         (m3_ref, b3_ref), (m4_ref, b4_ref)):
        x = _conv_layer(x, n, h, m_ref, b_ref, ebuf, obuf)
        h = (h - 1) // 2 + 1

    # Flatten conv output.  For 16x16 inputs the final map is 1x1x32 so the
    # slab already is (N, features).
    if h == 1:
        conv_out = x
    else:
        # TODO(synk): general flatten uses (h, w, c) lane order, which differs
        # from PyTorch's view() (c, h, w) order; fine for random init, matters
        # only when importing a PyTorch checkpoint with >1x1 final maps.
        conv_out = jnp.concatenate([x[i * n:(i + 1) * n, :] for i in range(h)],
                                   axis=1)

    # ---- GRUCell (PyTorch gate order r, z, n), dense 3H gate blocks ---------
    h_prev = hx_ref[...]                                          # (N, hidden)
    gx = jnp.dot(conv_out.astype(jnp.bfloat16), wgx_ref[...],
                 preferred_element_type=jnp.float32) + bih_ref[...]   # (N, 3H)
    gh = jnp.dot(h_prev.astype(jnp.bfloat16), wgh_ref[...],
                 preferred_element_type=jnp.float32) + bhh_ref[...]   # (N, 3H)
    Hd = hidden
    r_g = jax.nn.sigmoid(gx[:, 0:Hd] + gh[:, 0:Hd])
    z_g = jax.nn.sigmoid(gx[:, Hd:2 * Hd] + gh[:, Hd:2 * Hd])
    n_g = jnp.tanh(gx[:, 2 * Hd:3 * Hd] + r_g * gh[:, 2 * Hd:3 * Hd])  # b_hn inside r*()
    h_new = (1.0 - z_g) * n_g + z_g * h_prev
    hx_out_ref[...] = h_new

    # ---- merged pi/v head + numerically-stable log-softmax ------------------
    ph = jnp.dot(h_new.astype(jnp.bfloat16), whd_ref[...],
                 preferred_element_type=jnp.float32) + bhd_ref[...]   # (N, A+1)
    logits = ph[:, 0:n_actions]
    mx = jnp.max(logits, axis=-1, keepdims=True)
    lse = jnp.log(jnp.sum(jnp.exp(logits - mx), axis=-1, keepdims=True)) + mx
    head_ref[:, 0:n_actions] = logits - lse
    head_ref[:, n_actions:n_actions + 1] = ph[:, n_actions:n_actions + 1]


# ----------------------------------------------------------------------------
# Parameter packing / init
# ----------------------------------------------------------------------------

def _pack_conv(wk, b, h_in, w_in):
    """Build per-kh conv 'row matrices'.

    wk : (3, 3, cin, cout) conv weights, b : (cout,) bias.
    Returns m (3, W*cin, Wo*cout) bf16 and b_row (1, Wo*cout) f32 such that
      out_row_i = sum_{kh, 0<=2i+kh-1<H} x_row[2i+kh-1] @ m[kh]  + b_row
    reproduces the 3x3 / stride-2 / pad-1 convolution (padding columns encoded
    by omission; padding rows handled by the kernel's shifted/zero slabs).
    """
    wk = np.asarray(wk, np.float32)
    b = np.asarray(b, np.float32)
    cin, cout = wk.shape[2], wk.shape[3]
    w_out = (w_in - 1) // 2 + 1
    m = np.zeros((3, w_in * cin, w_out * cout), np.float32)
    for kh in range(3):
        for j in range(w_out):
            for kw in range(3):
                p = 2 * j + kw                    # column index in padded input
                if 1 <= p <= w_in:                # p == 0 / w_in+1 are zero pad
                    src = p - 1
                    m[kh, src * cin:(src + 1) * cin,
                      j * cout:(j + 1) * cout] = wk[kh, kw]
    b_row = np.tile(b, w_out)[None, :]
    return jnp.asarray(m, jnp.bfloat16), jnp.asarray(b_row, jnp.float32)


def init_params(key, input_dims, n_actions, hidden=256):
    """Deterministic init (uniform, PyTorch-style fan-in bounds), pre-packed
    into the fused-kernel layouts."""
    c_in, h_in, w_in = input_dims
    chans = [c_in, 32, 32, 32, 32]
    ki = iter(jax.random.split(key, 16))
    params = {}

    h, w = h_in, w_in
    for i in range(4):
        cin, cout = chans[i], chans[i + 1]
        bound = (cin * 9) ** -0.5
        wc = jax.random.uniform(next(ki), (3, 3, cin, cout),
                                minval=-bound, maxval=bound, dtype=jnp.float32)
        bc = jax.random.uniform(next(ki), (cout,),
                                minval=-bound, maxval=bound, dtype=jnp.float32)
        params[f"conv{i+1}_m"], params[f"conv{i+1}_b"] = _pack_conv(wc, bc, h, w)
        h, w = (h - 1) // 2 + 1, (w - 1) // 2 + 1

    conv_shape = chans[-1] * h * w          # == ActorCritic.calc_conv_output

    Hd = hidden
    bound = Hd ** -0.5

    def u(shape):
        return jax.random.uniform(next(ki), shape,
                                  minval=-bound, maxval=bound, dtype=jnp.float32)

    # GRUCell params, transposed to (in, 3*hidden) layout, gate order r|z|n
    # (dense: no zero-padded 4H block).
    params["gru_wx"] = u((conv_shape, 3 * Hd)).astype(jnp.bfloat16)
    params["gru_wh"] = u((Hd, 3 * Hd)).astype(jnp.bfloat16)
    params["gru_bih"] = u((1, 3 * Hd))
    params["gru_bhh"] = u((1, 3 * Hd))

    # pi / v heads merged into one (hidden, n_actions+1) matmul.
    pi_w, pi_b = u((Hd, n_actions)), u((1, n_actions))
    v_w, v_b = u((Hd, 1)), u((1, 1))
    params["head_w"] = jnp.concatenate([pi_w, v_w], axis=1).astype(jnp.bfloat16)
    params["head_b"] = jnp.concatenate([pi_b, v_b], axis=1)
    return params, conv_shape


# ----------------------------------------------------------------------------
# Forward
# ----------------------------------------------------------------------------

@jax.jit
def actor_critic_forward(params, state_nchw, hx, sample_key):
    """Mirrors ActorCritic.forward: returns (action[0], v, log_prob, hx_new)."""
    n, c, h, w = state_nchw.shape
    hidden = hx.shape[1]

    # NCHW -> (H*N, W*C) lane-dense slab: row = h*N + n, lane = w*C + c.
    # (Kept in the wrapper: with NCHW input this relayout cannot be a view.)
    x = jnp.transpose(state_nchw.astype(jnp.float32),
                      (2, 0, 3, 1)).reshape(h * n, w * c)

    # Shared gather-scratch sizes (max over the 4 conv layers).
    hh, ww, cc = h, w, c
    layer_dims = []
    for _ in range(4):
        layer_dims.append((hh, ww * cc))
        hh, ww, cc = (hh - 1) // 2 + 1, (ww - 1) // 2 + 1, 32
    e_rows = max(((hi - 1) // 2 + 1) * n for hi, _ in layer_dims)
    o_rows = e_rows + n
    max_wc = max(wc for _, wc in layer_dims)

    vmem = pl.BlockSpec(memory_space=pltpu.MemorySpace.VMEM)
    hx_new, head = pl.pallas_call(
        _fused_kernel,
        out_shape=(
            jax.ShapeDtypeStruct((n, hidden), jnp.float32),       # hx'
            jax.ShapeDtypeStruct((n, params["head_w"].shape[1]),  # [logp | v]
                                 jnp.float32),
        ),
        in_specs=[vmem] * 16,
        out_specs=(vmem, vmem),
        scratch_shapes=[
            pltpu.VMEM((e_rows, max_wc), jnp.float32),   # even-row gather slab
            pltpu.VMEM((o_rows, max_wc), jnp.float32),   # [zeros | odd-row] slab
        ],
    )(x, hx,
      params["conv1_m"], params["conv1_b"],
      params["conv2_m"], params["conv2_b"],
      params["conv3_m"], params["conv3_b"],
      params["conv4_m"], params["conv4_b"],
      params["gru_wx"], params["gru_wh"], params["gru_bih"], params["gru_bhh"],
      params["head_w"], params["head_b"])

    logp = head[:, :-1]                                            # (N, A)
    v = head[:, -1:]                                               # (N, 1)
    # TODO(synk): torch.distributions.Categorical sampling has no bit-identical
    # Pallas/JAX equivalent; sample with jax.random.categorical in the wrapper.
    action = jax.random.categorical(sample_key, logp, axis=-1)            # (N,)
    log_prob = jnp.take_along_axis(logp, action[:, None], axis=1)[:, 0]   # (N,)
    return action[0], v, log_prob, hx_new


# ----------------------------------------------------------------------------
# Main
# ----------------------------------------------------------------------------

if __name__ == "__main__":
    key = jax.random.PRNGKey(0)
    k_param, k_state, k_sample = jax.random.split(key, 3)

    batch = 2
    input_dims = (4, 16, 16)   # (C, H, W) as in the PyTorch module
    n_actions = 6
    hidden = 256

    params, conv_shape = init_params(k_param, input_dims, n_actions, hidden)
    assert conv_shape == 32    # 16 -> 8 -> 4 -> 2 -> 1 spatial, 32 channels

    state = jax.random.normal(k_state, (batch,) + input_dims, dtype=jnp.float32)
    hx = jnp.zeros((batch, hidden), dtype=jnp.float32)

    action, v, log_prob, hx_new = actor_critic_forward(params, state, hx, k_sample)

    jax.block_until_ready((action, v, log_prob, hx_new))
    assert v.shape == (batch, 1)
    assert log_prob.shape == (batch,)
    assert hx_new.shape == (batch, hidden)
    print("KERNEL_OK")
</pallas_src>

<mosaic_0001>
module attributes {stable_mosaic.version = 11 : i64} {
  func.func @_fused_kernel(%arg0: memref<32x64xf32, #tpu.memory_space<vmem>>, %arg1: memref<2x256xf32, #tpu.memory_space<vmem>>, %arg2: memref<3x64x256xbf16, #tpu.memory_space<vmem>>, %arg3: memref<1x256xf32, #tpu.memory_space<vmem>>, %arg4: memref<3x256x128xbf16, #tpu.memory_space<vmem>>, %arg5: memref<1x128xf32, #tpu.memory_space<vmem>>, %arg6: memref<3x128x64xbf16, #tpu.memory_space<vmem>>, %arg7: memref<1x64xf32, #tpu.memory_space<vmem>>, %arg8: memref<3x64x32xbf16, #tpu.memory_space<vmem>>, %arg9: memref<1x32xf32, #tpu.memory_space<vmem>>, %arg10: memref<32x768xbf16, #tpu.memory_space<vmem>>, %arg11: memref<256x768xbf16, #tpu.memory_space<vmem>>, %arg12: memref<1x768xf32, #tpu.memory_space<vmem>>, %arg13: memref<1x768xf32, #tpu.memory_space<vmem>>, %arg14: memref<256x7xbf16, #tpu.memory_space<vmem>>, %arg15: memref<1x7xf32, #tpu.memory_space<vmem>>, %arg16: memref<2x256xf32, #tpu.memory_space<vmem>>, %arg17: memref<2x7xf32, #tpu.memory_space<vmem>>, %arg18: memref<16x256xf32, #tpu.memory_space<vmem>>, %arg19: memref<18x256xf32, #tpu.memory_space<vmem>>) attributes {dimension_semantics = [], scalar_prefetch = 0 : i64, scratch_operands = 2 : i64, tpu.core_type = #tpu.core_type<tc>} {
    %cst = arith.constant 0.000000e+00 : f32
    %0 = vector.broadcast %cst : f32 to vector<2x256xf32>
    %c0 = arith.constant 0 : index
    %c0_0 = arith.constant 0 : index
    %1 = vector.load %arg19[%c0, %c0_0] : memref<18x256xf32, #tpu.memory_space<vmem>>, vector<2x256xf32>
    tpu.vector_store %arg19[%c0, %c0_0], %0 {strides = array<i32>} : memref<18x256xf32, #tpu.memory_space<vmem>>, vector<2x256xf32>,
    %c0_1 = arith.constant 0 : index
    %c0_2 = arith.constant 0 : index
    %2 = vector.load %arg0[%c0_1, %c0_2] : memref<32x64xf32, #tpu.memory_space<vmem>>, vector<32x64xf32>
    %3 = vector.extract_strided_slice %2 {offsets = [0, 0], sizes = [2, 64], strides = [1, 1]} : vector<32x64xf32> to vector<2x64xf32>
    %c0_3 = arith.constant 0 : index
    %c0_4 = arith.constant 0 : index
    %4 = vector.load %arg18[%c0_3, %c0_4] : memref<16x256xf32, #tpu.memory_space<vmem>>, vector<2x64xf32>
    tpu.vector_store %arg18[%c0_3, %c0_4], %3 {strides = array<i32>} : memref<16x256xf32, #tpu.memory_space<vmem>>, vector<2x64xf32>,
    %5 = vector.extract_strided_slice %2 {offsets = [4, 0], sizes = [2, 64], strides = [1, 1]} : vector<32x64xf32> to vector<2x64xf32>
    %c2 = arith.constant 2 : index
    %c0_5 = arith.constant 0 : index
    %6 = vector.load %arg18[%c2, %c0_5] : memref<16x256xf32, #tpu.memory_space<vmem>>, vector<2x64xf32>
    tpu.vector_store %arg18[%c2, %c0_5], %5 {strides = array<i32>} : memref<16x256xf32, #tpu.memory_space<vmem>>, vector<2x64xf32>,
    %7 = vector.extract_strided_slice %2 {offsets = [8, 0], sizes = [2, 64], strides = [1, 1]} : vector<32x64xf32> to vector<2x64xf32>
    %c4 = arith.constant 4 : index
    %c0_6 = arith.constant 0 : index
    %8 = vector.load %arg18[%c4, %c0_6] : memref<16x256xf32, #tpu.memory_space<vmem>>, vector<2x64xf32>
    tpu.vector_store %arg18[%c4, %c0_6], %7 {strides = array<i32>} : memref<16x256xf32, #tpu.memory_space<vmem>>, vector<2x64xf32>,
    %9 = vector.extract_strided_slice %2 {offsets = [12, 0], sizes = [2, 64], strides = [1, 1]} : vector<32x64xf32> to vector<2x64xf32>
    %c6 = arith.constant 6 : index
    %c0_7 = arith.constant 0 : index
    %10 = vector.load %arg18[%c6, %c0_7] : memref<16x256xf32, #tpu.memory_space<vmem>>, vector<2x64xf32>
    tpu.vector_store %arg18[%c6, %c0_7], %9 {strides = array<i32>} : memref<16x256xf32, #tpu.memory_space<vmem>>, vector<2x64xf32>,
    %11 = vector.extract_strided_slice %2 {offsets = [16, 0], sizes = [2, 64], strides = [1, 1]} : vector<32x64xf32> to vector<2x64xf32>
    %c8 = arith.constant 8 : index
    %c0_8 = arith.constant 0 : index
    %12 = vector.load %arg18[%c8, %c0_8] : memref<16x256xf32, #tpu.memory_space<vmem>>, vector<2x64xf32>
    tpu.vector_store %arg18[%c8, %c0_8], %11 {strides = array<i32>} : memref<16x256xf32, #tpu.memory_space<vmem>>, vector<2x64xf32>,
    %13 = vector.extract_strided_slice %2 {offsets = [20, 0], sizes = [2, 64], strides = [1, 1]} : vector<32x64xf32> to vector<2x64xf32>
    %c10 = arith.constant 10 : index
    %c0_9 = arith.constant 0 : index
    %14 = vector.load %arg18[%c10, %c0_9] : memref<16x256xf32, #tpu.memory_space<vmem>>, vector<2x64xf32>
    tpu.vector_store %arg18[%c10, %c0_9], %13 {strides = array<i32>} : memref<16x256xf32, #tpu.memory_space<vmem>>, vector<2x64xf32>,
    %15 = vector.extract_strided_slice %2 {offsets = [24, 0], sizes = [2, 64], strides = [1, 1]} : vector<32x64xf32> to vector<2x64xf32>
    %c12 = arith.constant 12 : index
    %c0_10 = arith.constant 0 : index
    %16 = vector.load %arg18[%c12, %c0_10] : memref<16x256xf32, #tpu.memory_space<vmem>>, vector<2x64xf32>
    tpu.vector_store %arg18[%c12, %c0_10], %15 {strides = array<i32>} : memref<16x256xf32, #tpu.memory_space<vmem>>, vector<2x64xf32>,
    %17 = vector.extract_strided_slice %2 {offsets = [28, 0], sizes = [2, 64], strides = [1, 1]} : vector<32x64xf32> to vector<2x64xf32>
    %c14 = arith.constant 14 : index
    %c0_11 = arith.constant 0 : index
    %18 = vector.load %arg18[%c14, %c0_11] : memref<16x256xf32, #tpu.memory_space<vmem>>, vector<2x64xf32>
    tpu.vector_store %arg18[%c14, %c0_11], %17 {strides = array<i32>} : memref<16x256xf32, #tpu.memory_space<vmem>>, vector<2x64xf32>,
    %19 = vector.extract_strided_slice %2 {offsets = [2, 0], sizes = [2, 64], strides = [1, 1]} : vector<32x64xf32> to vector<2x64xf32>
    %c2_12 = arith.constant 2 : index
    %c0_13 = arith.constant 0 : index
    %20 = vector.load %arg19[%c2_12, %c0_13] : memref<18x256xf32, #tpu.memory_space<vmem>>, vector<2x64xf32>
    tpu.vector_store %arg19[%c2_12, %c0_13], %19 {strides = array<i32>} : memref<18x256xf32, #tpu.memory_space<vmem>>, vector<2x64xf32>,
    %21 = vector.extract_strided_slice %2 {offsets = [6, 0], sizes = [2, 64], strides = [1, 1]} : vector<32x64xf32> to vector<2x64xf32>
    %c4_14 = arith.constant 4 : index
    %c0_15 = arith.constant 0 : index
    %22 = vector.load %arg19[%c4_14, %c0_15] : memref<18x256xf32, #tpu.memory_space<vmem>>, vector<2x64xf32>
    tpu.vector_store %arg19[%c4_14, %c0_15], %21 {strides = array<i32>} : memref<18x256xf32, #tpu.memory_space<vmem>>, vector<2x64xf32>,
    %23 = vector.extract_strided_slice %2 {offsets = [10, 0], sizes = [2, 64], strides = [1, 1]} : vector<32x64xf32> to vector<2x64xf32>
    %c6_16 = arith.constant 6 : index
    %c0_17 = arith.constant 0 : index
    %24 = vector.load %arg19[%c6_16, %c0_17] : memref<18x256xf32, #tpu.memory_space<vmem>>, vector<2x64xf32>
    tpu.vector_store %arg19[%c6_16, %c0_17], %23 {strides = array<i32>} : memref<18x256xf32, #tpu.memory_space<vmem>>, vector<2x64xf32>,
    %25 = vector.extract_strided_slice %2 {offsets = [14, 0], sizes = [2, 64], strides = [1, 1]} : vector<32x64xf32> to vector<2x64xf32>
    %c8_18 = arith.constant 8 : index
    %c0_19 = arith.constant 0 : index
    %26 = vector.load %arg19[%c8_18, %c0_19] : memref<18x256xf32, #tpu.memory_space<vmem>>, vector<2x64xf32>
    tpu.vector_store %arg19[%c8_18, %c0_19], %25 {strides = array<i32>} : memref<18x256xf32, #tpu.memory_space<vmem>>, vector<2x64xf32>,
    %27 = vector.extract_strided_slice %2 {offsets = [18, 0], sizes = [2, 64], strides = [1, 1]} : vector<32x64xf32> to vector<2x64xf32>
    %c10_20 = arith.constant 10 : index
    %c0_21 = arith.constant 0 : index
    %28 = vector.load %arg19[%c10_20, %c0_21] : memref<18x256xf32, #tpu.memory_space<vmem>>, vector<2x64xf32>
    tpu.vector_store %arg19[%c10_20, %c0_21], %27 {strides = array<i32>} : memref<18x256xf32, #tpu.memory_space<vmem>>, vector<2x64xf32>,
    %29 = vector.extract_strided_slice %2 {offsets = [22, 0], sizes = [2, 64], strides = [1, 1]} : vector<32x64xf32> to vector<2x64xf32>
    %c12_22 = arith.constant 12 : index
    %c0_23 = arith.constant 0 : index
    %30 = vector.load %arg19[%c12_22, %c0_23] : memref<18x256xf32, #tpu.memory_space<vmem>>, vector<2x64xf32>
    tpu.vector_store %arg19[%c12_22, %c0_23], %29 {strides = array<i32>} : memref<18x256xf32, #tpu.memory_space<vmem>>, vector<2x64xf32>,
    %31 = vector.extract_strided_slice %2 {offsets = [26, 0], sizes = [2, 64], strides = [1, 1]} : vector<32x64xf32> to vector<2x64xf32>
    %c14_24 = arith.constant 14 : index
    %c0_25 = arith.constant 0 : index
    %32 = vector.load %arg19[%c14_24, %c0_25] : memref<18x256xf32, #tpu.memory_space<vmem>>, vector<2x64xf32>
    tpu.vector_store %arg19[%c14_24, %c0_25], %31 {strides = array<i32>} : memref<18x256xf32, #tpu.memory_space<vmem>>, vector<2x64xf32>,
    %33 = vector.extract_strided_slice %2 {offsets = [30, 0], sizes = [2, 64], strides = [1, 1]} : vector<32x64xf32> to vector<2x64xf32>
    %c16 = arith.constant 16 : index
    %c0_26 = arith.constant 0 : index
    %34 = vector.load %arg19[%c16, %c0_26] : memref<18x256xf32, #tpu.memory_space<vmem>>, vector<2x64xf32>
    tpu.vector_store %arg19[%c16, %c0_26], %33 {strides = array<i32>} : memref<18x256xf32, #tpu.memory_space<vmem>>, vector<2x64xf32>,
    %c0_27 = arith.constant 0 : index
    %c0_28 = arith.constant 0 : index
    %35 = vector.load %arg18[%c0_27, %c0_28] : memref<16x256xf32, #tpu.memory_space<vmem>>, vector<16x64xf32>
    %36 = arith.truncf %35 : vector<16x64xf32> to vector<16x64xbf16>
    %c1 = arith.constant 1 : index
    %c0_29 = arith.constant 0 : index
    %c0_30 = arith.constant 0 : index
    %37 = vector.load %arg2[%c1, %c0_29, %c0_30] : memref<3x64x256xbf16, #tpu.memory_space<vmem>>, vector<1x64x256xbf16>
    %38 = vector.shape_cast %37 : vector<1x64x256xbf16> to vector<64x256xbf16>
    %cst_31 = arith.constant dense<0.000000e+00> : vector<16x256xf32>
    %39 = tpu.matmul %36, %38, %cst_31 {dimension_numbers = #tpu.dot_dimension_numbers<[1], [0], [0], [1], [0, 0, 1, 1], [], []>} : vector<16x64xbf16>, vector<64x256xbf16>, vector<16x256xf32> -> vector<16x256xf32>
    %c2_32 = arith.constant 2 : index
    %c0_33 = arith.constant 0 : index
    %40 = vector.load %arg19[%c2_32, %c0_33] : memref<18x256xf32, #tpu.memory_space<vmem>>, vector<16x64xf32>
    %41 = arith.truncf %40 : vector<16x64xf32> to vector<16x64xbf16>
    %c2_34 = arith.constant 2 : index
    %c0_35 = arith.constant 0 : index
    %c0_36 = arith.constant 0 : index
    %42 = vector.load %arg2[%c2_34, %c0_35, %c0_36] : memref<3x64x256xbf16, #tpu.memory_space<vmem>>, vector<1x64x256xbf16>
    %43 = vector.shape_cast %42 : vector<1x64x256xbf16> to vector<64x256xbf16>
    %cst_37 = arith.constant dense<0.000000e+00> : vector<16x256xf32>
    %44 = tpu.matmul %41, %43, %cst_37 {dimension_numbers = #tpu.dot_dimension_numbers<[1], [0], [0], [1], [0, 0, 1, 1], [], []>} : vector<16x64xbf16>, vector<64x256xbf16>, vector<16x256xf32> -> vector<16x256xf32>
    %45 = arith.addf %39, %44 : vector<16x256xf32>
    %c0_38 = arith.constant 0 : index
    %c0_39 = arith.constant 0 : index
    %46 = vector.load %arg19[%c0_38, %c0_39] : memref<18x256xf32, #tpu.memory_space<vmem>>, vector<16x64xf32>
    %47 = arith.truncf %46 : vector<16x64xf32> to vector<16x64xbf16>
    %c0_40 = arith.constant 0 : index
    %c0_41 = arith.constant 0 : index
    %c0_42 = arith.constant 0 : index
    %48 = vector.load %arg2[%c0_40, %c0_41, %c0_42] : memref<3x64x256xbf16, #tpu.memory_space<vmem>>, vector<1x64x256xbf16>
    %49 = vector.shape_cast %48 : vector<1x64x256xbf16> to vector<64x256xbf16>
    %cst_43 = arith.constant dense<0.000000e+00> : vector<16x256xf32>
    %50 = tpu.matmul %47, %49, %cst_43 {dimension_numbers = #tpu.dot_dimension_numbers<[1], [0], [0], [1], [0, 0, 1, 1], [], []>} : vector<16x64xbf16>, vector<64x256xbf16>, vector<16x256xf32> -> vector<16x256xf32>
    %51 = arith.addf %45, %50 : vector<16x256xf32>
    %c0_44 = arith.constant 0 : index
    %c0_45 = arith.constant 0 : index
    %52 = vector.load %arg3[%c0_44, %c0_45] : memref<1x256xf32, #tpu.memory_space<vmem>>, vector<1x256xf32>
    %53 = vector.broadcast %52 : vector<1x256xf32> to vector<16x256xf32>
    %54 = arith.addf %51, %53 : vector<16x256xf32>
    %cst_46 = arith.constant 0.000000e+00 : f32
    %55 = vector.broadcast %cst_46 : f32 to vector<16x256xf32>
    %56 = arith.cmpf ogt, %54, %55 : vector<16x256xf32>
    %cst_47 = arith.constant 0.000000e+00 : f32
    %57 = vector.broadcast %cst_47 : f32 to vector<16x256xf32>
    %58 = arith.minimumf %54, %57 : vector<16x256xf32>
    %59 = math.exp %58 : vector<16x256xf32>
    %cst_48 = arith.constant 1.000000e+00 : f32
    %60 = vector.broadcast %cst_48 : f32 to vector<16x256xf32>
    %61 = arith.subf %59, %60 : vector<16x256xf32>
    %62 = arith.select %56, %54, %61 : vector<16x256xi1>, vector<16x256xf32>
    %63 = vector.extract_strided_slice %62 {offsets = [0, 0], sizes = [2, 256], strides = [1, 1]} : vector<16x256xf32> to vector<2x256xf32>
    %c0_49 = arith.constant 0 : index
    %c0_50 = arith.constant 0 : index
    %64 = vector.load %arg18[%c0_49, %c0_50] : memref<16x256xf32, #tpu.memory_space<vmem>>, vector<2x256xf32>
    tpu.vector_store %arg18[%c0_49, %c0_50], %63 {strides = array<i32>} : memref<16x256xf32, #tpu.memory_space<vmem>>, vector<2x256xf32>,
    %65 = vector.extract_strided_slice %62 {offsets = [4, 0], sizes = [2, 256], strides = [1, 1]} : vector<16x256xf32> to vector<2x256xf32>
    %c2_51 = arith.constant 2 : index
    %c0_52 = arith.constant 0 : index
    %66 = vector.load %arg18[%c2_51, %c0_52] : memref<16x256xf32, #tpu.memory_space<vmem>>, vector<2x256xf32>
    tpu.vector_store %arg18[%c2_51, %c0_52], %65 {strides = array<i32>} : memref<16x256xf32, #tpu.memory_space<vmem>>, vector<2x256xf32>,
    %67 = vector.extract_strided_slice %62 {offsets = [8, 0], sizes = [2, 256], strides = [1, 1]} : vector<16x256xf32> to vector<2x256xf32>
    %c4_53 = arith.constant 4 : index
    %c0_54 = arith.constant 0 : index
    %68 = vector.load %arg18[%c4_53, %c0_54] : memref<16x256xf32, #tpu.memory_space<vmem>>, vector<2x256xf32>
    tpu.vector_store %arg18[%c4_53, %c0_54], %67 {strides = array<i32>} : memref<16x256xf32, #tpu.memory_space<vmem>>, vector<2x256xf32>,
    %69 = vector.extract_strided_slice %62 {offsets = [12, 0], sizes = [2, 256], strides = [1, 1]} : vector<16x256xf32> to vector<2x256xf32>
    %c6_55 = arith.constant 6 : index
    %c0_56 = arith.constant 0 : index
    %70 = vector.load %arg18[%c6_55, %c0_56] : memref<16x256xf32, #tpu.memory_space<vmem>>, vector<2x256xf32>
    tpu.vector_store %arg18[%c6_55, %c0_56], %69 {strides = array<i32>} : memref<16x256xf32, #tpu.memory_space<vmem>>, vector<2x256xf32>,
    %71 = vector.extract_strided_slice %62 {offsets = [2, 0], sizes = [2, 256], strides = [1, 1]} : vector<16x256xf32> to vector<2x256xf32>
    %c2_57 = arith.constant 2 : index
    %c0_58 = arith.constant 0 : index
    %72 = vector.load %arg19[%c2_57, %c0_58] : memref<18x256xf32, #tpu.memory_space<vmem>>, vector<2x256xf32>
    tpu.vector_store %arg19[%c2_57, %c0_58], %71 {strides = array<i32>} : memref<18x256xf32, #tpu.memory_space<vmem>>, vector<2x256xf32>,
    %73 = vector.extract_strided_slice %62 {offsets = [6, 0], sizes = [2, 256], strides = [1, 1]} : vector<16x256xf32> to vector<2x256xf32>
    %c4_59 = arith.constant 4 : index
    %c0_60 = arith.constant 0 : index
    %74 = vector.load %arg19[%c4_59, %c0_60] : memref<18x256xf32, #tpu.memory_space<vmem>>, vector<2x256xf32>
    tpu.vector_store %arg19[%c4_59, %c0_60], %73 {strides = array<i32>} : memref<18x256xf32, #tpu.memory_space<vmem>>, vector<2x256xf32>,
    %75 = vector.extract_strided_slice %62 {offsets = [10, 0], sizes = [2, 256], strides = [1, 1]} : vector<16x256xf32> to vector<2x256xf32>
    %c6_61 = arith.constant 6 : index
    %c0_62 = arith.constant 0 : index
    %76 = vector.load %arg19[%c6_61, %c0_62] : memref<18x256xf32, #tpu.memory_space<vmem>>, vector<2x256xf32>
    tpu.vector_store %arg19[%c6_61, %c0_62], %75 {strides = array<i32>} : memref<18x256xf32, #tpu.memory_space<vmem>>, vector<2x256xf32>,
    %77 = vector.extract_strided_slice %62 {offsets = [14, 0], sizes = [2, 256], strides = [1, 1]} : vector<16x256xf32> to vector<2x256xf32>
    %c8_63 = arith.constant 8 : index
    %c0_64 = arith.constant 0 : index
    %78 = vector.load %arg19[%c8_63, %c0_64] : memref<18x256xf32, #tpu.memory_space<vmem>>, vector<2x256xf32>
    tpu.vector_store %arg19[%c8_63, %c0_64], %77 {strides = array<i32>} : memref<18x256xf32, #tpu.memory_space<vmem>>, vector<2x256xf32>,
    %c0_65 = arith.constant 0 : index
    %c0_66 = arith.constant 0 : index
    %79 = vector.load %arg18[%c0_65, %c0_66] : memref<16x256xf32, #tpu.memory_space<vmem>>, vector<8x256xf32>
    %80 = arith.truncf %79 : vector<8x256xf32> to vector<8x256xbf16>
    %c1_67 = arith.constant 1 : index
    %c0_68 = arith.constant 0 : index
    %c0_69 = arith.constant 0 : index
    %81 = vector.load %arg4[%c1_67, %c0_68, %c0_69] : memref<3x256x128xbf16, #tpu.memory_space<vmem>>, vector<1x256x128xbf16>
    %82 = vector.shape_cast %81 : vector<1x256x128xbf16> to vector<256x128xbf16>
    %cst_70 = arith.constant dense<0.000000e+00> : vector<8x128xf32>
    %83 = tpu.matmul %80, %82, %cst_70 {dimension_numbers = #tpu.dot_dimension_numbers<[1], [0], [0], [1], [0, 0, 1, 1], [], []>} : vector<8x256xbf16>, vector<256x128xbf16>, vector<8x128xf32> -> vector<8x128xf32>
    %c2_71 = arith.constant 2 : index
    %c0_72 = arith.constant 0 : index
    %84 = vector.load %arg19[%c2_71, %c0_72] : memref<18x256xf32, #tpu.memory_space<vmem>>, vector<8x256xf32>
    %85 = arith.truncf %84 : vector<8x256xf32> to vector<8x256xbf16>
    %c2_73 = arith.constant 2 : index
    %c0_74 = arith.constant 0 : index
    %c0_75 = arith.constant 0 : index
    %86 = vector.load %arg4[%c2_73, %c0_74, %c0_75] : memref<3x256x128xbf16, #tpu.memory_space<vmem>>, vector<1x256x128xbf16>
    %87 = vector.shape_cast %86 : vector<1x256x128xbf16> to vector<256x128xbf16>
    %cst_76 = arith.constant dense<0.000000e+00> : vector<8x128xf32>
    %88 = tpu.matmul %85, %87, %cst_76 {dimension_numbers = #tpu.dot_dimension_numbers<[1], [0], [0], [1], [0, 0, 1, 1], [], []>} : vector<8x256xbf16>, vector<256x128xbf16>, vector<8x128xf32> -> vector<8x128xf32>
    %89 = arith.addf %83, %88 : vector<8x128xf32>
    %c0_77 = arith.constant 0 : index
    %c0_78 = arith.constant 0 : index
    %90 = vector.load %arg19[%c0_77, %c0_78] : memref<18x256xf32, #tpu.memory_space<vmem>>, vector<8x256xf32>
    %91 = arith.truncf %90 : vector<8x256xf32> to vector<8x256xbf16>
    %c0_79 = arith.constant 0 : index
    %c0_80 = arith.constant 0 : index
    %c0_81 = arith.constant 0 : index
    %92 = vector.load %arg4[%c0_79, %c0_80, %c0_81] : memref<3x256x128xbf16, #tpu.memory_space<vmem>>, vector<1x256x128xbf16>
    %93 = vector.shape_cast %92 : vector<1x256x128xbf16> to vector<256x128xbf16>
    %cst_82 = arith.constant dense<0.000000e+00> : vector<8x128xf32>
    %94 = tpu.matmul %91, %93, %cst_82 {dimension_numbers = #tpu.dot_dimension_numbers<[1], [0], [0], [1], [0, 0, 1, 1], [], []>} : vector<8x256xbf16>, vector<256x128xbf16>, vector<8x128xf32> -> vector<8x128xf32>
    %95 = arith.addf %89, %94 : vector<8x128xf32>
    %c0_83 = arith.constant 0 : index
    %c0_84 = arith.constant 0 : index
    %96 = vector.load %arg5[%c0_83, %c0_84] : memref<1x128xf32, #tpu.memory_space<vmem>>, vector<1x128xf32>
    %97 = vector.broadcast %96 : vector<1x128xf32> to vector<8x128xf32>
    %98 = arith.addf %95, %97 : vector<8x128xf32>
    %cst_85 = arith.constant 0.000000e+00 : f32
    %99 = vector.broadcast %cst_85 : f32 to vector<8x128xf32>
    %100 = arith.cmpf ogt, %98, %99 : vector<8x128xf32>
    %cst_86 = arith.constant 0.000000e+00 : f32
    %101 = vector.broadcast %cst_86 : f32 to vector<8x128xf32>
    %102 = arith.minimumf %98, %101 : vector<8x128xf32>
    %103 = math.exp %102 : vector<8x128xf32>
    %cst_87 = arith.constant 1.000000e+00 : f32
    %104 = vector.broadcast %cst_87 : f32 to vector<8x128xf32>
    %105 = arith.subf %103, %104 : vector<8x128xf32>
    %106 = arith.select %100, %98, %105 : vector<8x128xi1>, vector<8x128xf32>
    %107 = vector.extract_strided_slice %106 {offsets = [0, 0], sizes = [2, 128], strides = [1, 1]} : vector<8x128xf32> to vector<2x128xf32>
    %c0_88 = arith.constant 0 : index
    %c0_89 = arith.constant 0 : index
    %108 = vector.load %arg18[%c0_88, %c0_89] : memref<16x256xf32, #tpu.memory_space<vmem>>, vector<2x128xf32>
    tpu.vector_store %arg18[%c0_88, %c0_89], %107 {strides = array<i32>} : memref<16x256xf32, #tpu.memory_space<vmem>>, vector<2x128xf32>,
    %109 = vector.extract_strided_slice %106 {offsets = [4, 0], sizes = [2, 128], strides = [1, 1]} : vector<8x128xf32> to vector<2x128xf32>
    %c2_90 = arith.constant 2 : index
    %c0_91 = arith.constant 0 : index
    %110 = vector.load %arg18[%c2_90, %c0_91] : memref<16x256xf32, #tpu.memory_space<vmem>>, vector<2x128xf32>
    tpu.vector_store %arg18[%c2_90, %c0_91], %109 {strides = array<i32>} : memref<16x256xf32, #tpu.memory_space<vmem>>, vector<2x128xf32>,
    %111 = vector.extract_strided_slice %106 {offsets = [2, 0], sizes = [2, 128], strides = [1, 1]} : vector<8x128xf32> to vector<2x128xf32>
    %c2_92 = arith.constant 2 : index
    %c0_93 = arith.constant 0 : index
    %112 = vector.load %arg19[%c2_92, %c0_93] : memref<18x256xf32, #tpu.memory_space<vmem>>, vector<2x128xf32>
    tpu.vector_store %arg19[%c2_92, %c0_93], %111 {strides = array<i32>} : memref<18x256xf32, #tpu.memory_space<vmem>>, vector<2x128xf32>,
    %113 = vector.extract_strided_slice %106 {offsets = [6, 0], sizes = [2, 128], strides = [1, 1]} : vector<8x128xf32> to vector<2x128xf32>
    %c4_94 = arith.constant 4 : index
    %c0_95 = arith.constant 0 : index
    %114 = vector.load %arg19[%c4_94, %c0_95] : memref<18x256xf32, #tpu.memory_space<vmem>>, vector<2x128xf32>
    tpu.vector_store %arg19[%c4_94, %c0_95], %113 {strides = array<i32>} : memref<18x256xf32, #tpu.memory_space<vmem>>, vector<2x128xf32>,
    %c0_96 = arith.constant 0 : index
    %c0_97 = arith.constant 0 : index
    %115 = vector.load %arg18[%c0_96, %c0_97] : memref<16x256xf32, #tpu.memory_space<vmem>>, vector<4x128xf32>
    %116 = arith.truncf %115 : vector<4x128xf32> to vector<4x128xbf16>
    %c1_98 = arith.constant 1 : index
    %c0_99 = arith.constant 0 : index
    %c0_100 = arith.constant 0 : index
    %117 = vector.load %arg6[%c1_98, %c0_99, %c0_100] : memref<3x128x64xbf16, #tpu.memory_space<vmem>>, vector<1x128x64xbf16>
    %118 = vector.shape_cast %117 : vector<1x128x64xbf16> to vector<128x64xbf16>
    %cst_101 = arith.constant dense<0.000000e+00> : vector<4x64xf32>
    %119 = tpu.matmul %116, %118, %cst_101 {dimension_numbers = #tpu.dot_dimension_numbers<[1], [0], [0], [1], [0, 0, 1, 1], [], []>} : vector<4x128xbf16>, vector<128x64xbf16>, vector<4x64xf32> -> vector<4x64xf32>
    %c2_102 = arith.constant 2 : index
    %c0_103 = arith.constant 0 : index
    %120 = vector.load %arg19[%c2_102, %c0_103] : memref<18x256xf32, #tpu.memory_space<vmem>>, vector<4x128xf32>
    %121 = arith.truncf %120 : vector<4x128xf32> to vector<4x128xbf16>
    %c2_104 = arith.constant 2 : index
    %c0_105 = arith.constant 0 : index
    %c0_106 = arith.constant 0 : index
    %122 = vector.load %arg6[%c2_104, %c0_105, %c0_106] : memref<3x128x64xbf16, #tpu.memory_space<vmem>>, vector<1x128x64xbf16>
    %123 = vector.shape_cast %122 : vector<1x128x64xbf16> to vector<128x64xbf16>
    %cst_107 = arith.constant dense<0.000000e+00> : vector<4x64xf32>
    %124 = tpu.matmul %121, %123, %cst_107 {dimension_numbers = #tpu.dot_dimension_numbers<[1], [0], [0], [1], [0, 0, 1, 1], [], []>} : vector<4x128xbf16>, vector<128x64xbf16>, vector<4x64xf32> -> vector<4x64xf32>
    %125 = arith.addf %119, %124 : vector<4x64xf32>
    %c0_108 = arith.constant 0 : index
    %c0_109 = arith.constant 0 : index
    %126 = vector.load %arg19[%c0_108, %c0_109] : memref<18x256xf32, #tpu.memory_space<vmem>>, vector<4x128xf32>
    %127 = arith.truncf %126 : vector<4x128xf32> to vector<4x128xbf16>
    %c0_110 = arith.constant 0 : index
    %c0_111 = arith.constant 0 : index
    %c0_112 = arith.constant 0 : index
    %128 = vector.load %arg6[%c0_110, %c0_111, %c0_112] : memref<3x128x64xbf16, #tpu.memory_space<vmem>>, vector<1x128x64xbf16>
    %129 = vector.shape_cast %128 : vector<1x128x64xbf16> to vector<128x64xbf16>
    %cst_113 = arith.constant dense<0.000000e+00> : vector<4x64xf32>
    %130 = tpu.matmul %127, %129, %cst_113 {dimension_numbers = #tpu.dot_dimension_numbers<[1], [0], [0], [1], [0, 0, 1, 1], [], []>} : vector<4x128xbf16>, vector<128x64xbf16>, vector<4x64xf32> -> vector<4x64xf32>
    %131 = arith.addf %125, %130 : vector<4x64xf32>
    %c0_114 = arith.constant 0 : index
    %c0_115 = arith.constant 0 : index
    %132 = vector.load %arg7[%c0_114, %c0_115] : memref<1x64xf32, #tpu.memory_space<vmem>>, vector<1x64xf32>
    %133 = vector.broadcast %132 : vector<1x64xf32> to vector<4x64xf32>
    %134 = arith.addf %131, %133 : vector<4x64xf32>
    %cst_116 = arith.constant 0.000000e+00 : f32
    %135 = vector.broadcast %cst_116 : f32 to vector<4x64xf32>
    %136 = arith.cmpf ogt, %134, %135 : vector<4x64xf32>
    %cst_117 = arith.constant 0.000000e+00 : f32
    %137 = vector.broadcast %cst_117 : f32 to vector<4x64xf32>
    %138 = arith.minimumf %134, %137 : vector<4x64xf32>
    %139 = math.exp %138 : vector<4x64xf32>
    %cst_118 = arith.constant 1.000000e+00 : f32
    %140 = vector.broadcast %cst_118 : f32 to vector<4x64xf32>
    %141 = arith.subf %139, %140 : vector<4x64xf32>
    %142 = arith.select %136, %134, %141 : vector<4x64xi1>, vector<4x64xf32>
    %143 = vector.extract_strided_slice %142 {offsets = [0, 0], sizes = [2, 64], strides = [1, 1]} : vector<4x64xf32> to vector<2x64xf32>
    %c0_119 = arith.constant 0 : index
    %c0_120 = arith.constant 0 : index
    %144 = vector.load %arg18[%c0_119, %c0_120] : memref<16x256xf32, #tpu.memory_space<vmem>>, vector<2x64xf32>
    tpu.vector_store %arg18[%c0_119, %c0_120], %143 {strides = array<i32>} : memref<16x256xf32, #tpu.memory_space<vmem>>, vector<2x64xf32>,
    %145 = vector.extract_strided_slice %142 {offsets = [2, 0], sizes = [2, 64], strides = [1, 1]} : vector<4x64xf32> to vector<2x64xf32>
    %c2_121 = arith.constant 2 : index
    %c0_122 = arith.constant 0 : index
    %146 = vector.load %arg19[%c2_121, %c0_122] : memref<18x256xf32, #tpu.memory_space<vmem>>, vector<2x64xf32>
    tpu.vector_store %arg19[%c2_121, %c0_122], %145 {strides = array<i32>} : memref<18x256xf32, #tpu.memory_space<vmem>>, vector<2x64xf32>,
    %c0_123 = arith.constant 0 : index
    %c0_124 = arith.constant 0 : index
    %147 = vector.load %arg18[%c0_123, %c0_124] : memref<16x256xf32, #tpu.memory_space<vmem>>, vector<2x64xf32>
    %148 = arith.truncf %147 : vector<2x64xf32> to vector<2x64xbf16>
    %c1_125 = arith.constant 1 : index
    %c0_126 = arith.constant 0 : index
    %c0_127 = arith.constant 0 : index
    %149 = vector.load %arg8[%c1_125, %c0_126, %c0_127] : memref<3x64x32xbf16, #tpu.memory_space<vmem>>, vector<1x64x32xbf16>
    %150 = vector.shape_cast %149 : vector<1x64x32xbf16> to vector<64x32xbf16>
    %cst_128 = arith.constant dense<0.000000e+00> : vector<2x32xf32>
    %151 = tpu.matmul %148, %150, %cst_128 {dimension_numbers = #tpu.dot_dimension_numbers<[1], [0], [0], [1], [0, 0, 1, 1], [], []>} : vector<2x64xbf16>, vector<64x32xbf16>, vector<2x32xf32> -> vector<2x32xf32>
    %c2_129 = arith.constant 2 : index
    %c0_130 = arith.constant 0 : index
    %152 = vector.load %arg19[%c2_129, %c0_130] : memref<18x256xf32, #tpu.memory_space<vmem>>, vector<2x64xf32>
    %153 = arith.truncf %152 : vector<2x64xf32> to vector<2x64xbf16>
    %c2_131 = arith.constant 2 : index
    %c0_132 = arith.constant 0 : index
    %c0_133 = arith.constant 0 : index
    %154 = vector.load %arg8[%c2_131, %c0_132, %c0_133] : memref<3x64x32xbf16, #tpu.memory_space<vmem>>, vector<1x64x32xbf16>
    %155 = vector.shape_cast %154 : vector<1x64x32xbf16> to vector<64x32xbf16>
    %cst_134 = arith.constant dense<0.000000e+00> : vector<2x32xf32>
    %156 = tpu.matmul %153, %155, %cst_134 {dimension_numbers = #tpu.dot_dimension_numbers<[1], [0], [0], [1], [0, 0, 1, 1], [], []>} : vector<2x64xbf16>, vector<64x32xbf16>, vector<2x32xf32> -> vector<2x32xf32>
    %157 = arith.addf %151, %156 : vector<2x32xf32>
    %c0_135 = arith.constant 0 : index
    %c0_136 = arith.constant 0 : index
    %158 = vector.load %arg9[%c0_135, %c0_136] : memref<1x32xf32, #tpu.memory_space<vmem>>, vector<1x32xf32>
    %159 = vector.broadcast %158 : vector<1x32xf32> to vector<2x32xf32>
    %160 = arith.addf %157, %159 : vector<2x32xf32>
    %cst_137 = arith.constant 0.000000e+00 : f32
    %161 = vector.broadcast %cst_137 : f32 to vector<2x32xf32>
    %162 = arith.cmpf ogt, %160, %161 : vector<2x32xf32>
    %cst_138 = arith.constant 0.000000e+00 : f32
    %163 = vector.broadcast %cst_138 : f32 to vector<2x32xf32>
    %164 = arith.minimumf %160, %163 : vector<2x32xf32>
    %165 = math.exp %164 : vector<2x32xf32>
    %cst_139 = arith.constant 1.000000e+00 : f32
    %166 = vector.broadcast %cst_139 : f32 to vector<2x32xf32>
    %167 = arith.subf %165, %166 : vector<2x32xf32>
    %168 = arith.select %162, %160, %167 : vector<2x32xi1>, vector<2x32xf32>
    %c0_140 = arith.constant 0 : index
    %c0_141 = arith.constant 0 : index
    %169 = vector.load %arg1[%c0_140, %c0_141] : memref<2x256xf32, #tpu.memory_space<vmem>>, vector<2x256xf32>
    %170 = arith.truncf %168 : vector<2x32xf32> to vector<2x32xbf16>
    %c0_142 = arith.constant 0 : index
    %c0_143 = arith.constant 0 : index
    %171 = vector.load %arg10[%c0_142, %c0_143] : memref<32x768xbf16, #tpu.memory_space<vmem>>, vector<32x768xbf16>
    %cst_144 = arith.constant dense<0.000000e+00> : vector<2x768xf32>
    %172 = tpu.matmul %170, %171, %cst_144 {dimension_numbers = #tpu.dot_dimension_numbers<[1], [0], [0], [1], [0, 0, 1, 1], [], []>} : vector<2x32xbf16>, vector<32x768xbf16>, vector<2x768xf32> -> vector<2x768xf32>
    %c0_145 = arith.constant 0 : index
    %c0_146 = arith.constant 0 : index
    %173 = vector.load %arg12[%c0_145, %c0_146] : memref<1x768xf32, #tpu.memory_space<vmem>>, vector<1x768xf32>
    %174 = vector.broadcast %173 : vector<1x768xf32> to vector<2x768xf32>
    %175 = arith.addf %172, %174 : vector<2x768xf32>
    %176 = arith.truncf %169 : vector<2x256xf32> to vector<2x256xbf16>
    %c0_147 = arith.constant 0 : index
    %c0_148 = arith.constant 0 : index
    %177 = vector.load %arg11[%c0_147, %c0_148] : memref<256x768xbf16, #tpu.memory_space<vmem>>, vector<256x768xbf16>
    %cst_149 = arith.constant dense<0.000000e+00> : vector<2x768xf32>
    %178 = tpu.matmul %176, %177, %cst_149 {dimension_numbers = #tpu.dot_dimension_numbers<[1], [0], [0], [1], [0, 0, 1, 1], [], []>} : vector<2x256xbf16>, vector<256x768xbf16>, vector<2x768xf32> -> vector<2x768xf32>
    %c0_150 = arith.constant 0 : index
    %c0_151 = arith.constant 0 : index
    %179 = vector.load %arg13[%c0_150, %c0_151] : memref<1x768xf32, #tpu.memory_space<vmem>>, vector<1x768xf32>
    %180 = vector.broadcast %179 : vector<1x768xf32> to vector<2x768xf32>
    %181 = arith.addf %178, %180 : vector<2x768xf32>
    %182 = vector.extract_strided_slice %175 {offsets = [0, 0], sizes = [2, 256], strides = [1, 1]} : vector<2x768xf32> to vector<2x256xf32>
    %183 = vector.extract_strided_slice %181 {offsets = [0, 0], sizes = [2, 256], strides = [1, 1]} : vector<2x768xf32> to vector<2x256xf32>
    %184 = arith.addf %182, %183 : vector<2x256xf32>
    %185 = arith.negf %184 : vector<2x256xf32>
    %186 = math.exp %185 : vector<2x256xf32>
    %cst_152 = arith.constant 1.000000e+00 : f32
    %187 = vector.broadcast %cst_152 : f32 to vector<2x256xf32>
    %188 = arith.addf %187, %186 : vector<2x256xf32>
    %189 = arith.divf %187, %188 : vector<2x256xf32>
    %190 = vector.extract_strided_slice %175 {offsets = [0, 256], sizes = [2, 256], strides = [1, 1]} : vector<2x768xf32> to vector<2x256xf32>
    %191 = vector.extract_strided_slice %181 {offsets = [0, 256], sizes = [2, 256], strides = [1, 1]} : vector<2x768xf32> to vector<2x256xf32>
    %192 = arith.addf %190, %191 : vector<2x256xf32>
    %193 = arith.negf %192 : vector<2x256xf32>
    %194 = math.exp %193 : vector<2x256xf32>
    %cst_153 = arith.constant 1.000000e+00 : f32
    %195 = vector.broadcast %cst_153 : f32 to vector<2x256xf32>
    %196 = arith.addf %195, %194 : vector<2x256xf32>
    %197 = arith.divf %195, %196 : vector<2x256xf32>
    %198 = vector.extract_strided_slice %175 {offsets = [0, 512], sizes = [2, 256], strides = [1, 1]} : vector<2x768xf32> to vector<2x256xf32>
    %199 = vector.extract_strided_slice %181 {offsets = [0, 512], sizes = [2, 256], strides = [1, 1]} : vector<2x768xf32> to vector<2x256xf32>
    %200 = arith.mulf %189, %199 : vector<2x256xf32>
    %201 = arith.addf %198, %200 : vector<2x256xf32>
    %202 = math.tanh %201 : vector<2x256xf32>
    %cst_154 = arith.constant 1.000000e+00 : f32
    %203 = vector.broadcast %cst_154 : f32 to vector<2x256xf32>
    %204 = arith.subf %203, %197 : vector<2x256xf32>
    %205 = arith.mulf %204, %202 : vector<2x256xf32>
    %206 = arith.mulf %197, %169 : vector<2x256xf32>
    %207 = arith.addf %205, %206 : vector<2x256xf32>
    %c0_155 = arith.constant 0 : index
    %c0_156 = arith.constant 0 : index
    %208 = vector.load %arg16[%c0_155, %c0_156] : memref<2x256xf32, #tpu.memory_space<vmem>>, vector<2x256xf32>
    tpu.vector_store %arg16[%c0_155, %c0_156], %207 {strides = array<i32>} : memref<2x256xf32, #tpu.memory_space<vmem>>, vector<2x256xf32>,
    %209 = arith.truncf %207 : vector<2x256xf32> to vector<2x256xbf16>
    %c0_157 = arith.constant 0 : index
    %c0_158 = arith.constant 0 : index
    %210 = vector.load %arg14[%c0_157, %c0_158] : memref<256x7xbf16, #tpu.memory_space<vmem>>, vector<256x7xbf16>
    %cst_159 = arith.constant dense<0.000000e+00> : vector<2x7xf32>
    %211 = tpu.matmul %209, %210, %cst_159 {dimension_numbers = #tpu.dot_dimension_numbers<[1], [0], [0], [1], [0, 0, 1, 1], [], []>} : vector<2x256xbf16>, vector<256x7xbf16>, vector<2x7xf32> -> vector<2x7xf32>
    %c0_160 = arith.constant 0 : index
    %c0_161 = arith.constant 0 : index
    %212 = vector.load %arg15[%c0_160, %c0_161] : memref<1x7xf32, #tpu.memory_space<vmem>>, vector<1x7xf32>
    %213 = vector.broadcast %212 : vector<1x7xf32> to vector<2x7xf32>
    %214 = arith.addf %211, %213 : vector<2x7xf32>
    %215 = vector.extract_strided_slice %214 {offsets = [0, 0], sizes = [2, 6], strides = [1, 1]} : vector<2x7xf32> to vector<2x6xf32>
    %cst_162 = arith.constant dense<0xFF800000> : vector<2xf32>
    %216 = vector.multi_reduction <maximumf>, %215, %cst_162 [1] : vector<2x6xf32> to vector<2xf32>
    %217 = vector.shape_cast %216 : vector<2xf32> to vector<2x1xf32>
    %218 = vector.broadcast %217 : vector<2x1xf32> to vector<2x6xf32>
    %219 = arith.subf %215, %218 : vector<2x6xf32>
    %220 = math.exp %219 : vector<2x6xf32>
    %cst_163 = arith.constant dense<0.000000e+00> : vector<2xf32>
    %221 = vector.multi_reduction <add>, %220, %cst_163 [1] : vector<2x6xf32> to vector<2xf32>
    %222 = vector.shape_cast %221 : vector<2xf32> to vector<2x1xf32>
    %223 = math.log %222 : vector<2x1xf32>
    %224 = arith.addf %223, %217 : vector<2x1xf32>
    %225 = vector.broadcast %224 : vector<2x1xf32> to vector<2x6xf32>
    %226 = arith.subf %215, %225 : vector<2x6xf32>
    %c0_164 = arith.constant 0 : index
    %c0_165 = arith.constant 0 : index
    %227 = vector.load %arg17[%c0_164, %c0_165] : memref<2x7xf32, #tpu.memory_space<vmem>>, vector<2x6xf32>
    tpu.vector_store %arg17[%c0_164, %c0_165], %226 {strides = array<i32>} : memref<2x7xf32, #tpu.memory_space<vmem>>, vector<2x6xf32>,
    %228 = vector.extract_strided_slice %214 {offsets = [0, 6], sizes = [2, 1], strides = [1, 1]} : vector<2x7xf32> to vector<2x1xf32>
    %c0_166 = arith.constant 0 : index
    %c6_167 = arith.constant 6 : index
    %229 = vector.load %arg17[%c0_166, %c6_167] : memref<2x7xf32, #tpu.memory_space<vmem>>, vector<2x1xf32>
    tpu.vector_store %arg17[%c0_166, %c6_167], %228 {strides = array<i32>} : memref<2x7xf32, #tpu.memory_space<vmem>>, vector<2x1xf32>,
    return
  }
}

</mosaic_0001>

<llo_original>
// kernel: actor_critic_forward.1
$region0: #{actor_critic_forward.1}
  #allocation0 [shape = 'u32[]', space=smem, size = 0x4, offset = 0x4, fixed_abs, tag = 'smem constant byte address 0x4 - core index']
  #allocation1 [shape = 'u32[144,128]{1,0:T(1,128)}', space=vmem, size = 0x12000, scoped, tag = 'internal scratch']
  #allocation2 [shape = 'f32[16,256]{1,0:T(8,128)}', space=vmem, size = 0x4000, scoped, tag = 'scratch operand']
  #allocation3 [shape = 'f32[18,256]{1,0:T(8,128)}', space=vmem, size = 0x6000, scoped, tag = 'scratch operand']
  %s0 = inlined_call_operand.vmem [shape: f32[32,64], index: 0, kind: input, shape index: {}]
  %s1 = inlined_call_operand.vmem [shape: f32[2,256], index: 1, kind: input, shape index: {}]
  %s2 = inlined_call_operand.vmem [shape: bf16[3,64,256], index: 2, kind: input, shape index: {}]
  %s3 = inlined_call_operand.vmem [shape: f32[1,256], index: 3, kind: input, shape index: {}]
  %s4 = inlined_call_operand.vmem [shape: bf16[3,256,128], index: 4, kind: input, shape index: {}]
  %s5 = inlined_call_operand.vmem [shape: f32[1,128], index: 5, kind: input, shape index: {}]
  %s6 = inlined_call_operand.vmem [shape: bf16[3,128,64], index: 6, kind: input, shape index: {}]
  %s7 = inlined_call_operand.vmem [shape: f32[1,64], index: 7, kind: input, shape index: {}]
  %s8 = inlined_call_operand.vmem [shape: bf16[3,64,32], index: 8, kind: input, shape index: {}]
  %s9 = inlined_call_operand.vmem [shape: f32[1,32], index: 9, kind: input, shape index: {}]
  %s10 = inlined_call_operand.vmem [shape: bf16[32,768], index: 10, kind: input, shape index: {}]
  %s11 = inlined_call_operand.vmem [shape: bf16[256,768], index: 11, kind: input, shape index: {}]
  %s12 = inlined_call_operand.vmem [shape: f32[1,768], index: 12, kind: input, shape index: {}]
  %s13 = inlined_call_operand.vmem [shape: f32[1,768], index: 13, kind: input, shape index: {}]
  %s14 = inlined_call_operand.vmem [shape: bf16[256,7], index: 14, kind: input, shape index: {}]
  %s15 = inlined_call_operand.vmem [shape: f32[1,7], index: 15, kind: input, shape index: {}]
  %s16 = inlined_call_operand.hbm [shape: f32[2,256], index: 16, kind: output, shape index: {0}]
  %s17 = inlined_call_operand.vmem [shape: f32[2,7], index: 17, kind: output, shape index: {1}]
  %18 = xla_tuple %s16, %s17
  %s19 = sld [smem:[#allocation0]]
  $region82: #{actor_critic_forward.1} parent=0
    _
  %s21 = ssub.s32 1, %s19
  %s22 = scalar_select 0, %s21, %s19
  $region1: #{actor_critic_forward.1} parent=0
    #allocation4 [shape = 'u8[2048]{0}', space=vmem, size = 0x800, scoped, tag = 'output window, operand 0, single buffered']
    #allocation5 [shape = 's32[1]{0}', space=sflag, size = 0x4, scoped, tag = 'scoped memory for actor_critic_forward.1']
    %23 = vsyncpa [#allocation5], 0
    // Predicated region
    $region2: #{actor_critic_forward.1} parent=1 // pred_check
      _
    $region3: #{actor_critic_forward.1} parent=1 // pred_check_branch
      %25 = sbr.rel (0) target = $region5
    $region4: #{actor_critic_forward.1} parent=1 // pred_region
      _
    $region5: #{actor_critic_forward.1} parent=1 // pred_fallthru
      _
    // Predicated region
    $region6: #{actor_critic_forward.1} parent=1 // pred_check
      _
    $region7: #{actor_critic_forward.1} parent=1 // pred_check_branch
      %27 = sbr.rel (0) target = $region9
    $region8: #{actor_critic_forward.1} parent=1 // pred_region
      _
    $region9: #{actor_critic_forward.1} parent=1 // pred_fallthru
      _
    // Predicated region
    $region10: #{actor_critic_forward.1} parent=1 // pred_check
      _
    $region11: #{actor_critic_forward.1} parent=1 // pred_check_branch
      %29 = sbr.rel (0) target = $region13
    $region12: #{actor_critic_forward.1} parent=1 // pred_region
      _
    $region13: #{actor_critic_forward.1} parent=1 // pred_fallthru
      _
    // Predicated region
    $region14: #{actor_critic_forward.1} parent=1 // pred_check
      _
    $region15: #{actor_critic_forward.1} parent=1 // pred_check_branch
      %31 = sbr.rel (0) target = $region17
    $region16: #{actor_critic_forward.1} parent=1 // pred_region
      _
    $region17: #{actor_critic_forward.1} parent=1 // pred_fallthru
      _
    // Predicated region
    $region18: #{actor_critic_forward.1} parent=1 // pred_check
      _
    $region19: #{actor_critic_forward.1} parent=1 // pred_check_branch
      %33 = sbr.rel (0) target = $region21
    $region20: #{actor_critic_forward.1} parent=1 // pred_region
      _
    $region21: #{actor_critic_forward.1} parent=1 // pred_fallthru
      _
    // Predicated region
    $region22: #{actor_critic_forward.1} parent=1 // pred_check
      _
    $region23: #{actor_critic_forward.1} parent=1 // pred_check_branch
      %35 = sbr.rel (0) target = $region25
    $region24: #{actor_critic_forward.1} parent=1 // pred_region
      _
    $region25: #{actor_critic_forward.1} parent=1 // pred_fallthru
      _
    // Predicated region
    $region26: #{actor_critic_forward.1} parent=1 // pred_check
      _
    $region27: #{actor_critic_forward.1} parent=1 // pred_check_branch
      %37 = sbr.rel (0) target = $region29
    $region28: #{actor_critic_forward.1} parent=1 // pred_region
      _
    $region29: #{actor_critic_forward.1} parent=1 // pred_fallthru
      _
    // Predicated region
    $region30: #{actor_critic_forward.1} parent=1 // pred_check
      _
    $region31: #{actor_critic_forward.1} parent=1 // pred_check_branch
      %39 = sbr.rel (0) target = $region33
    $region32: #{actor_critic_forward.1} parent=1 // pred_region
      _
    $region33: #{actor_critic_forward.1} parent=1 // pred_fallthru
      _
    // Predicated region
    $region34: #{actor_critic_forward.1} parent=1 // pred_check
      _
    $region35: #{actor_critic_forward.1} parent=1 // pred_check_branch
      %41 = sbr.rel (0) target = $region37
    $region36: #{actor_critic_forward.1} parent=1 // pred_region
      _
    $region37: #{actor_critic_forward.1} parent=1 // pred_fallthru
      _
    // Predicated region
    $region38: #{actor_critic_forward.1} parent=1 // pred_check
      _
    $region39: #{actor_critic_forward.1} parent=1 // pred_check_branch
      %43 = sbr.rel (0) target = $region41
    $region40: #{actor_critic_forward.1} parent=1 // pred_region
      _
    $region41: #{actor_critic_forward.1} parent=1 // pred_fallthru
      _
    // Predicated region
    $region42: #{actor_critic_forward.1} parent=1 // pred_check
      _
    $region43: #{actor_critic_forward.1} parent=1 // pred_check_branch
      %45 = sbr.rel (0) target = $region45
    $region44: #{actor_critic_forward.1} parent=1 // pred_region
      _
    $region45: #{actor_critic_forward.1} parent=1 // pred_fallthru
      _
    // Predicated region
    $region46: #{actor_critic_forward.1} parent=1 // pred_check
      _
    $region47: #{actor_critic_forward.1} parent=1 // pred_check_branch
      %47 = sbr.rel (0) target = $region49
    $region48: #{actor_critic_forward.1} parent=1 // pred_region
      _
    $region49: #{actor_critic_forward.1} parent=1 // pred_fallthru
      _
    // Predicated region
    $region50: #{actor_critic_forward.1} parent=1 // pred_check
      _
    $region51: #{actor_critic_forward.1} parent=1 // pred_check_branch
      %49 = sbr.rel (0) target = $region53
    $region52: #{actor_critic_forward.1} parent=1 // pred_region
      _
    $region53: #{actor_critic_forward.1} parent=1 // pred_fallthru
      _
    // Predicated region
    $region54: #{actor_critic_forward.1} parent=1 // pred_check
      _
    $region55: #{actor_critic_forward.1} parent=1 // pred_check_branch
      %51 = sbr.rel (0) target = $region57
    $region56: #{actor_critic_forward.1} parent=1 // pred_region
      _
    $region57: #{actor_critic_forward.1} parent=1 // pred_fallthru
      _
    // Predicated region
    $region58: #{actor_critic_forward.1} parent=1 // pred_check
      _
    $region59: #{actor_critic_forward.1} parent=1 // pred_check_branch
      %53 = sbr.rel (0) target = $region61
    $region60: #{actor_critic_forward.1} parent=1 // pred_region
      _
    $region61: #{actor_critic_forward.1} parent=1 // pred_fallthru
      _
    // Predicated region
    $region62: #{actor_critic_forward.1} parent=1 // pred_check
      _
    $region63: #{actor_critic_forward.1} parent=1 // pred_check_branch
      %55 = sbr.rel (0) target = $region65
    $region64: #{actor_critic_forward.1} parent=1 // pred_region
      _
    $region65: #{actor_critic_forward.1} parent=1 // pred_fallthru
      _
    %57 = vst [vmem:[#allocation3] sm:$0x3] 0.0
    %58 = vst [vmem:[#allocation3 + $0x8] sm:$0x3] 0.0
    %v59 = vld [vmem:[%s0] sm:$0xff]
    %v60 = vld [vmem:[%s0 + $0x8] sm:$0xff]
    %v61 = vld [vmem:[%s0 + $0x10] sm:$0xff]
    %v62 = vld [vmem:[%s0 + $0x18] sm:$0xff]
    %vm63 = vcmask 517120
    %64 = vst.msk [vmem:[#allocation2] sm:$0x3] %vm63, %v59
    %v66 = vrot.slane %v59, 2
    %vm68 = vcmask 519170
    %69 = vst.msk [vmem:[#allocation2] sm:$0xc] %vm68, %v66
    %v71 = vrot.slane %v60, 4
    %vm73 = vcmask 521220
    %74 = vst.msk [vmem:[#allocation2] sm:$0x30] %vm73, %v71
    %v75 = vrot.slane %v60, 6
    %vm77 = vcmask 523270
    %78 = vst.msk [vmem:[#allocation2] sm:$0xc0] %vm77, %v75
    %79 = vst.msk [vmem:[#allocation2 + $0x10] sm:$0x3] %vm63, %v61
    %v81 = vrot.slane %v61, 2
    %83 = vst.msk [vmem:[#allocation2 + $0x10] sm:$0xc] %vm68, %v81
    %v85 = vrot.slane %v62, 4
    %87 = vst.msk [vmem:[#allocation2 + $0x10] sm:$0x30] %vm73, %v85
    %v88 = vrot.slane %v62, 6
    %90 = vst.msk [vmem:[#allocation2 + $0x10] sm:$0xc0] %vm77, %v88
    %91 = vst.msk [vmem:[#allocation3] sm:$0xc] %vm68, %v59
    %92 = vst.msk [vmem:[#allocation3] sm:$0x30] %vm73, %v66
    %93 = vst.msk [vmem:[#allocation3] sm:$0xc0] %vm77, %v71
    %94 = vst.msk [vmem:[#allocation3 + $0x10] sm:$0x3] %vm63, %v75
    %95 = vst.msk [vmem:[#allocation3 + $0x10] sm:$0xc] %vm68, %v61
    %96 = vst.msk [vmem:[#allocation3 + $0x10] sm:$0x30] %vm73, %v81
    %97 = vst.msk [vmem:[#allocation3 + $0x10] sm:$0xc0] %vm77, %v85
    %98 = vst.msk [vmem:[#allocation3 + $0x20] sm:$0x3] %vm63, %v88
    %v99 = vld [vmem:[#allocation2] sm:$0xff]
    %v100 = vld [vmem:[#allocation2 + $0x10] sm:$0xff]
    %v101 = vpack.c.bf16 %v100, %v99
    %s102 = scalar_lea.vmem %s2, 64
    %v103 = vld [vmem:[%s102] sm:$0xff]
    %v104 = vld [vmem:[%s102 + $0x8] sm:$0xff]
    %v105 = vld [vmem:[%s102 + $0x10] sm:$0xff]
    %v106 = vld [vmem:[%s102 + $0x18] sm:$0xff]
    %v107 = vld [vmem:[%s102 + $0x20] sm:$0xff]
    %v108 = vld [vmem:[%s102 + $0x28] sm:$0xff]
    %v109 = vld [vmem:[%s102 + $0x30] sm:$0xff]
    %v110 = vld [vmem:[%s102 + $0x38] sm:$0xff]
    %v111 = vld [vmem:[#allocation3] sm:$0xfc]
    %v112 = vld [vmem:[#allocation3 + $0x10] sm:$0xff]
    %v113 = vld [vmem:[#allocation3 + $0x20] sm:$0x3]
    %v114 = vpack.c.bf16 %v112, %v111
    %v115 = vpack.c.bf16 %v113, %v113
    %s116 = scalar_lea.vmem %s2, 128
    %v117 = vld [vmem:[%s116] sm:$0xff]
    %v118 = vld [vmem:[%s116 + $0x8] sm:$0xff]
    %v119 = vld [vmem:[%s116 + $0x10] sm:$0xff]
    %v120 = vld [vmem:[%s116 + $0x18] sm:$0xff]
    %v121 = vld [vmem:[%s116 + $0x20] sm:$0xff]
    %v122 = vld [vmem:[%s116 + $0x28] sm:$0xff]
    %v123 = vld [vmem:[%s116 + $0x30] sm:$0xff]
    %v124 = vld [vmem:[%s116 + $0x38] sm:$0xff]
    %vm127 = vcmask 1046528
    %v128 = vrot.slane %v114, 1
    %v129 = vrot.slane %v115, 1
    %v130 = vsel %vm127, %v128, %v129
    %v139 = vunpack.c.l.b16 %v117
    %v140 = vunpack.c.h.b16 %v117
    %v141 = vunpack.c.l.b16 %v118
    %v142 = vunpack.c.h.b16 %v118
    %v143 = vunpack.c.l.b16 %v119
    %v144 = vunpack.c.h.b16 %v119
    %v145 = vunpack.c.l.b16 %v120
    %v146 = vunpack.c.h.b16 %v120
    %v147 = vunpack.c.l.b16 %v121
    %v148 = vunpack.c.h.b16 %v121
    %v149 = vunpack.c.l.b16 %v122
    %v150 = vunpack.c.h.b16 %v122
    %v151 = vunpack.c.l.b16 %v123
    %v152 = vunpack.c.h.b16 %v123
    %v153 = vunpack.c.l.b16 %v124
    %v154 = vunpack.c.h.b16 %v124
    %v155 = vpack.c.b16 %v141, %v139
    %v156 = vpack.c.b16 %v142, %v140
    %v157 = vpack.c.b16 %v145, %v143
    %v158 = vpack.c.b16 %v146, %v144
    %v159 = vpack.c.b16 %v149, %v147
    %v160 = vpack.c.b16 %v150, %v148
    %v161 = vpack.c.b16 %v153, %v151
    %v162 = vpack.c.b16 %v154, %v152
    %vm171 = vcmask 523264
    %v173 = vsel %vm171, %v130, 0
    %175 = vmatprep.subr.bf16.mxu0 %v156
    %176 = vmatpush1.bf16.msra.mxu0 %v155
    %177 = vmatprep.subr.bf16.mxu0 %v158
    %178 = vmatpush1.bf16.msra.mxu0 %v157
    %179 = vmatprep.subr.bf16.mxu0 %v160
    %180 = vmatpush1.bf16.msra.mxu0 %v159
    %181 = vmatprep.subr.bf16.mxu0 %v162
    %182 = vmatpush1.bf16.msra.mxu0 %v161
    %183 = vmatprep.subr.bf16.mxu0 0
    %184 = vmatpush1.bf16.msra.mxu0 0
    %185 = vmatprep.subr.bf16.mxu0 0
    %186 = vmatpush1.bf16.msra.mxu0 0
    %187 = vmatprep.subr.bf16.mxu0 0
    %188 = vmatpush1.bf16.msra.mxu0 0
    %189 = vmatprep.subr.bf16.mxu0 0
    %190 = vmatpush1.bf16.msra.mxu0 0
    %191 = vmatprep.subr.bf16.mxu0 0
    %192 = vmatpush1.bf16.msra.mxu0 0
    %193 = vmatprep.subr.bf16.mxu0 0
    %194 = vmatpush1.bf16.msra.mxu0 0
    %195 = vmatprep.subr.bf16.mxu0 0
    %196 = vmatpush1.bf16.msra.mxu0 0
    %197 = vmatprep.subr.bf16.mxu0 0
    %198 = vmatpush1.bf16.msra.mxu0 0
    %199 = vmatprep.subr.bf16.mxu0 0
    %200 = vmatpush1.bf16.msra.mxu0 0
    %201 = vmatprep.subr.bf16.mxu0 0
    %202 = vmatpush1.bf16.msra.mxu0 0
    %203 = vmatprep.subr.bf16.mxu0 0
    %204 = vmatpush1.bf16.msra.mxu0 0
    %205 = vmatprep.subr.bf16.mxu0 0
    %206 = vmatpush1.bf16.msra.mxu0 0
    %207 = vmatprep.mubr.bf16.mxu0 0
    %208 = vmatmul.mubr.bf16.gmra.mrb[0].mxu0 %v173
    %v209 = vpop.f32.mrb[0].mxu0
    %v210 = vadd.f32 0.0, %v209
    %v211 = vpop.f32.mrb[0].mxu0
    %v212 = vadd.f32 0.0, %v211
    %v213 = vpop.f32.mrb[0].mxu0
    %v214 = vadd.f32 0.0, %v213
    %v215 = vpop.f32.mrb[0].mxu0
    %v216 = vadd.f32 0.0, %v215
    %217 = vdwg.mxu0
    %v226 = vunpack.c.l.b16 %v103
    %v227 = vunpack.c.h.b16 %v103
    %v228 = vunpack.c.l.b16 %v104
    %v229 = vunpack.c.h.b16 %v104
    %v230 = vunpack.c.l.b16 %v105
    %v231 = vunpack.c.h.b16 %v105
    %v232 = vunpack.c.l.b16 %v106
    %v233 = vunpack.c.h.b16 %v106
    %v234 = vunpack.c.l.b16 %v107
    %v235 = vunpack.c.h.b16 %v107
    %v236 = vunpack.c.l.b16 %v108
    %v237 = vunpack.c.h.b16 %v108
    %v238 = vunpack.c.l.b16 %v109
    %v239 = vunpack.c.h.b16 %v109
    %v240 = vunpack.c.l.b16 %v110
    %v241 = vunpack.c.h.b16 %v110
    %v242 = vpack.c.b16 %v228, %v226
    %v243 = vpack.c.b16 %v229, %v227
    %v244 = vpack.c.b16 %v232, %v230
    %v245 = vpack.c.b16 %v233, %v231
    %v246 = vpack.c.b16 %v236, %v234
    %v247 = vpack.c.b16 %v237, %v235
    %v248 = vpack.c.b16 %v240, %v238
    %v249 = vpack.c.b16 %v241, %v239
    %v259 = vsel %vm171, %v101, 0
    %261 = vmatprep.subr.bf16.mxu0 %v243
    %262 = vmatpush1.bf16.msra.mxu0 %v242
    %263 = vmatprep.subr.bf16.mxu0 %v245
    %264 = vmatpush1.bf16.msra.mxu0 %v244
    %265 = vmatprep.subr.bf16.mxu0 %v247
    %266 = vmatpush1.bf16.msra.mxu0 %v246
    %267 = vmatprep.subr.bf16.mxu0 %v249
    %268 = vmatpush1.bf16.msra.mxu0 %v248
    %269 = vmatprep.subr.bf16.mxu0 0
    %270 = vmatpush1.bf16.msra.mxu0 0
    %271 = vmatprep.subr.bf16.mxu0 0
    %272 = vmatpush1.bf16.msra.mxu0 0
    %273 = vmatprep.subr.bf16.mxu0 0
    %274 = vmatpush1.bf16.msra.mxu0 0
    %275 = vmatprep.subr.bf16.mxu0 0
    %276 = vmatpush1.bf16.msra.mxu0 0
    %277 = vmatprep.subr.bf16.mxu0 0
    %278 = vmatpush1.bf16.msra.mxu0 0
    %279 = vmatprep.subr.bf16.mxu0 0
    %280 = vmatpush1.bf16.msra.mxu0 0
    %281 = vmatprep.subr.bf16.mxu0 0
    %282 = vmatpush1.bf16.msra.mxu0 0
    %283 = vmatprep.subr.bf16.mxu0 0
    %284 = vmatpush1.bf16.msra.mxu0 0
    %285 = vmatprep.subr.bf16.mxu0 0
    %286 = vmatpush1.bf16.msra.mxu0 0
    %287 = vmatprep.subr.bf16.mxu0 0
    %288 = vmatpush1.bf16.msra.mxu0 0
    %289 = vmatprep.subr.bf16.mxu0 0
    %290 = vmatpush1.bf16.msra.mxu0 0
    %291 = vmatprep.subr.bf16.mxu0 0
    %292 = vmatpush1.bf16.msra.mxu0 0
    %293 = vmatprep.mubr.bf16.mxu0 0
    %294 = vmatmul.mubr.bf16.gmra.mrb[0].mxu0 %v259
    %v295 = vpop.f32.mrb[0].mxu0
    %v296 = vadd.f32 %v210, %v295
    %v297 = vpop.f32.mrb[0].mxu0
    %v298 = vadd.f32 %v212, %v297
    %v299 = vpop.f32.mrb[0].mxu0
    %v300 = vadd.f32 %v214, %v299
    %v301 = vpop.f32.mrb[0].mxu0
    %v302 = vadd.f32 %v216, %v301
    %303 = vdwg.mxu0
    %v304 = vld [vmem:[#allocation3] sm:$0xff]
    %v305 = vld [vmem:[#allocation3 + $0x10] sm:$0xff]
    %v306 = vpack.c.bf16 %v305, %v304
    %v307 = vld [vmem:[%s2] sm:$0xff]
    %v308 = vld [vmem:[%s2 + $0x8] sm:$0xff]
    %v309 = vld [vmem:[%s2 + $0x10] sm:$0xff]
    %v310 = vld [vmem:[%s2 + $0x18] sm:$0xff]
    %v311 = vld [vmem:[%s2 + $0x20] sm:$0xff]
    %v312 = vld [vmem:[%s2 + $0x28] sm:$0xff]
    %v313 = vld [vmem:[%s2 + $0x30] sm:$0xff]
    %v314 = vld [vmem:[%s2 + $0x38] sm:$0xff]
    %v323 = vunpack.c.l.b16 %v307
    %v324 = vunpack.c.h.b16 %v307
    %v325 = vunpack.c.l.b16 %v308
    %v326 = vunpack.c.h.b16 %v308
    %v327 = vunpack.c.l.b16 %v309
    %v328 = vunpack.c.h.b16 %v309
    %v329 = vunpack.c.l.b16 %v310
    %v330 = vunpack.c.h.b16 %v310
    %v331 = vunpack.c.l.b16 %v311
    %v332 = vunpack.c.h.b16 %v311
    %v333 = vunpack.c.l.b16 %v312
    %v334 = vunpack.c.h.b16 %v312
    %v335 = vunpack.c.l.b16 %v313
    %v336 = vunpack.c.h.b16 %v313
    %v337 = vunpack.c.l.b16 %v314
    %v338 = vunpack.c.h.b16 %v314
    %v339 = vpack.c.b16 %v325, %v323
    %v340 = vpack.c.b16 %v326, %v324
    %v341 = vpack.c.b16 %v329, %v327
    %v342 = vpack.c.b16 %v330, %v328
    %v343 = vpack.c.b16 %v333, %v331
    %v344 = vpack.c.b16 %v334, %v332
    %v345 = vpack.c.b16 %v337, %v335
    %v346 = vpack.c.b16 %v338, %v336
    %v356 = vsel %vm171, %v306, 0
    %358 = vmatprep.subr.bf16.mxu0 %v340
    %359 = vmatpush1.bf16.msra.mxu0 %v339
    %360 = vmatprep.subr.bf16.mxu0 %v342
    %361 = vmatpush1.bf16.msra.mxu0 %v341
    %362 = vmatprep.subr.bf16.mxu0 %v344
    %363 = vmatpush1.bf16.msra.mxu0 %v343
    %364 = vmatprep.subr.bf16.mxu0 %v346
    %365 = vmatpush1.bf16.msra.mxu0 %v345
    %366 = vmatprep.subr.bf16.mxu0 0
    %367 = vmatpush1.bf16.msra.mxu0 0
    %368 = vmatprep.subr.bf16.mxu0 0
    %369 = vmatpush1.bf16.msra.mxu0 0
    %370 = vmatprep.subr.bf16.mxu0 0
    %371 = vmatpush1.bf16.msra.mxu0 0
    %372 = vmatprep.subr.bf16.mxu0 0
    %373 = vmatpush1.bf16.msra.mxu0 0
    %374 = vmatprep.subr.bf16.mxu0 0
    %375 = vmatpush1.bf16.msra.mxu0 0
    %376 = vmatprep.subr.bf16.mxu0 0
    %377 = vmatpush1.bf16.msra.mxu0 0
    %378 = vmatprep.subr.bf16.mxu0 0
    %379 = vmatpush1.bf16.msra.mxu0 0
    %380 = vmatprep.subr.bf16.mxu0 0
    %381 = vmatpush1.bf16.msra.mxu0 0
    %382 = vmatprep.subr.bf16.mxu0 0
    %383 = vmatpush1.bf16.msra.mxu0 0
    %384 = vmatprep.subr.bf16.mxu0 0
    %385 = vmatpush1.bf16.msra.mxu0 0
    %386 = vmatprep.subr.bf16.mxu0 0
    %387 = vmatpush1.bf16.msra.mxu0 0
    %388 = vmatprep.subr.bf16.mxu0 0
    %389 = vmatpush1.bf16.msra.mxu0 0
    %390 = vmatprep.mubr.bf16.mxu0 0
    %391 = vmatmul.mubr.bf16.gmra.mrb[0].mxu0 %v356
    %v392 = vpop.f32.mrb[0].mxu0
    %v393 = vadd.f32 0.0, %v392
    %v394 = vpop.f32.mrb[0].mxu0
    %v395 = vadd.f32 0.0, %v394
    %v396 = vpop.f32.mrb[0].mxu0
    %v397 = vadd.f32 0.0, %v396
    %v398 = vpop.f32.mrb[0].mxu0
    %v399 = vadd.f32 0.0, %v398
    %400 = vdwg.mxu0
    %v401 = vadd.f32 %v296, %v393
    %v402 = vadd.f32 %v298, %v395
    %v403 = vadd.f32 %v300, %v397
    %v404 = vadd.f32 %v302, %v399
    %v405 = vld [vmem:[%s3] sm:$0x3]
    %v407 = vlaneseq
    %v408 = vshrl.u32 %v407, 7
    %v409 = vsub.s32 0, %v408
    %v410 = vrot.slane %v405, %v409
    %v411 = vlaneseq
    %v412 = vshrl.u32 %v411, 7
    %v413 = vsub.s32 1, %v412
    %v414 = vrot.slane %v405, %v413
    %v417 = vadd.f32 %v401, %v410
    %v418 = vadd.f32 %v402, %v414
    %v419 = vadd.f32 %v403, %v410
    %v420 = vadd.f32 %v404, %v414
    %vm421 = vcmp.gt.f32.partialorder %v417, 0.0
    %vm422 = vcmp.gt.f32.partialorder %v418, 0.0
    %vm423 = vcmp.gt.f32.partialorder %v419, 0.0
    %vm424 = vcmp.gt.f32.partialorder %v420, 0.0
    %v425 = vmin.f32 %v417, 0.0
    %v426 = vmin.f32 %v418, 0.0
    %v427 = vmin.f32 %v419, 0.0
    %v428 = vmin.f32 %v420, 0.0
    %v429 = vmul.f32 %v425, 1.442695
    %v430 = vpow.pop %v429
    %v431 = vmul.f32 %v426, 1.442695
    %v432 = vpow.pop %v431
    %v433 = vmul.f32 %v427, 1.442695
    %v434 = vpow.pop %v433
    %v435 = vmul.f32 %v428, 1.442695
    %v436 = vpow.pop %v435
    %v437 = vsub.f32 %v430, 1.0
    %v438 = vsub.f32 %v432, 1.0
    %v439 = vsub.f32 %v434, 1.0
    %v440 = vsub.f32 %v436, 1.0
    %v441 = vsel %vm421, %v417, %v437
    %v442 = vsel %vm422, %v418, %v438
    %v443 = vsel %vm423, %v419, %v439
    %v444 = vsel %vm424, %v420, %v440
    %445 = vst [vmem:[#allocation2] sm:$0x3] %v441
    %446 = vst [vmem:[#allocation2 + $0x8] sm:$0x3] %v442
    %v449 = vrot.slane %v441, 2
    %v450 = vrot.slane %v442, 2
    %453 = vst [vmem:[#allocation2] sm:$0xc] %v449
    %454 = vst [vmem:[#allocation2 + $0x8] sm:$0xc] %v450
    %v457 = vrot.slane %v443, 4
    %v458 = vrot.slane %v444, 4
    %461 = vst [vmem:[#allocation2] sm:$0x30] %v457
    %462 = vst [vmem:[#allocation2 + $0x8] sm:$0x30] %v458
    %v463 = vrot.slane %v443, 6
    %v464 = vrot.slane %v444, 6
    %467 = vst [vmem:[#allocation2] sm:$0xc0] %v463
    %468 = vst [vmem:[#allocation2 + $0x8] sm:$0xc0] %v464
    %469 = vst [vmem:[#allocation3] sm:$0xc] %v441
    %470 = vst [vmem:[#allocation3 + $0x8] sm:$0xc] %v442
    %471 = vst [vmem:[#allocation3] sm:$0x30] %v449
    %472 = vst [vmem:[#allocation3 + $0x8] sm:$0x30] %v450
    %473 = vst [vmem:[#allocation3] sm:$0xc0] %v457
    %474 = vst [vmem:[#allocation3 + $0x8] sm:$0xc0] %v458
    %475 = vst [vmem:[#allocation3 + $0x10] sm:$0x3] %v463
    %476 = vst [vmem:[#allocation3 + $0x18] sm:$0x3] %v464
    %v477 = vld [vmem:[#allocation2] sm:$0xff]
    %v478 = vld [vmem:[#allocation2 + $0x8] sm:$0xff]
    %v479 = vpack.c.bf16 %v477, %v477
    %v480 = vpack.c.bf16 %v478, %v478
    %s481 = scalar_lea.vmem %s4, 128
    %v482 = vld [vmem:[%s481] sm:$0xf]
    %v483 = vld [vmem:[%s481 + $0x4] sm:$0xf]
    %v484 = vld [vmem:[%s481 + $0x8] sm:$0xf]
    %v485 = vld [vmem:[%s481 + $0xc] sm:$0xf]
    %v486 = vld [vmem:[%s481 + $0x10] sm:$0xf]
    %v487 = vld [vmem:[%s481 + $0x14] sm:$0xf]
    %v488 = vld [vmem:[%s481 + $0x18] sm:$0xf]
    %v489 = vld [vmem:[%s481 + $0x1c] sm:$0xf]
    %v490 = vld [vmem:[%s481 + $0x20] sm:$0xf]
    %v491 = vld [vmem:[%s481 + $0x24] sm:$0xf]
    %v492 = vld [vmem:[%s481 + $0x28] sm:$0xf]
    %v493 = vld [vmem:[%s481 + $0x2c] sm:$0xf]
    %v494 = vld [vmem:[%s481 + $0x30] sm:$0xf]
    %v495 = vld [vmem:[%s481 + $0x34] sm:$0xf]
    %v496 = vld [vmem:[%s481 + $0x38] sm:$0xf]
    %v497 = vld [vmem:[%s481 + $0x3c] sm:$0xf]
    %v498 = vld [vmem:[%s481 + $0x40] sm:$0xf]
    %v499 = vld [vmem:[%s481 + $0x44] sm:$0xf]
    %v500 = vld [vmem:[%s481 + $0x48] sm:$0xf]
    %v501 = vld [vmem:[%s481 + $0x4c] sm:$0xf]
    %v502 = vld [vmem:[%s481 + $0x50] sm:$0xf]
    %v503 = vld [vmem:[%s481 + $0x54] sm:$0xf]
    %v504 = vld [vmem:[%s481 + $0x58] sm:$0xf]
    %v505 = vld [vmem:[%s481 + $0x5c] sm:$0xf]
    %v506 = vld [vmem:[%s481 + $0x60] sm:$0xf]
    %v507 = vld [vmem:[%s481 + $0x64] sm:$0xf]
    %v508 = vld [vmem:[%s481 + $0x68] sm:$0xf]
    %v509 = vld [vmem:[%s481 + $0x6c] sm:$0xf]
    %v510 = vld [vmem:[%s481 + $0x70] sm:$0xf]
    %v511 = vld [vmem:[%s481 + $0x74] sm:$0xf]
    %v512 = vld [vmem:[%s481 + $0x78] sm:$0xf]
    %v513 = vld [vmem:[%s481 + $0x7c] sm:$0xf]
    %v514 = vld [vmem:[#allocation3] sm:$0xfc]
    %v515 = vld [vmem:[#allocation3 + $0x8] sm:$0xfc]
    %v516 = vld [vmem:[#allocation3 + $0x10] sm:$0x3]
    %v517 = vld [vmem:[#allocation3 + $0x18] sm:$0x3]
    %v518 = vpack.c.bf16 %v516, %v514
    %v519 = vpack.c.bf16 %v517, %v515
    %s520 = scalar_lea.vmem %s4, 256
    %v521 = vld [vmem:[%s520] sm:$0xf]
    %v522 = vld [vmem:[%s520 + $0x4] sm:$0xf]
    %v523 = vld [vmem:[%s520 + $0x8] sm:$0xf]
    %v524 = vld [vmem:[%s520 + $0xc] sm:$0xf]
    %v525 = vld [vmem:[%s520 + $0x10] sm:$0xf]
    %v526 = vld [vmem:[%s520 + $0x14] sm:$0xf]
    %v527 = vld [vmem:[%s520 + $0x18] sm:$0xf]
    %v528 = vld [vmem:[%s520 + $0x1c] sm:$0xf]
    %v529 = vld [vmem:[%s520 + $0x20] sm:$0xf]
    %v530 = vld [vmem:[%s520 + $0x24] sm:$0xf]
    %v531 = vld [vmem:[%s520 + $0x28] sm:$0xf]
    %v532 = vld [vmem:[%s520 + $0x2c] sm:$0xf]
    %v533 = vld [vmem:[%s520 + $0x30] sm:$0xf]
    %v534 = vld [vmem:[%s520 + $0x34] sm:$0xf]
    %v535 = vld [vmem:[%s520 + $0x38] sm:$0xf]
    %v536 = vld [vmem:[%s520 + $0x3c] sm:$0xf]
    %v537 = vld [vmem:[%s520 + $0x40] sm:$0xf]
    %v538 = vld [vmem:[%s520 + $0x44] sm:$0xf]
    %v539 = vld [vmem:[%s520 + $0x48] sm:$0xf]
    %v540 = vld [vmem:[%s520 + $0x4c] sm:$0xf]
    %v541 = vld [vmem:[%s520 + $0x50] sm:$0xf]
    %v542 = vld [vmem:[%s520 + $0x54] sm:$0xf]
    %v543 = vld [vmem:[%s520 + $0x58] sm:$0xf]
    %v544 = vld [vmem:[%s520 + $0x5c] sm:$0xf]
    %v545 = vld [vmem:[%s520 + $0x60] sm:$0xf]
    %v546 = vld [vmem:[%s520 + $0x64] sm:$0xf]
    %v547 = vld [vmem:[%s520 + $0x68] sm:$0xf]
    %v548 = vld [vmem:[%s520 + $0x6c] sm:$0xf]
    %v549 = vld [vmem:[%s520 + $0x70] sm:$0xf]
    %v550 = vld [vmem:[%s520 + $0x74] sm:$0xf]
    %v551 = vld [vmem:[%s520 + $0x78] sm:$0xf]
    %v552 = vld [vmem:[%s520 + $0x7c] sm:$0xf]
    %v555 = vrot.slane %v518, 1
    %v556 = vrot.slane %v519, 1
    %v591 = vunpack.c.l.b16 %v521
    %v592 = vunpack.c.l.b16 %v522
    %v593 = vunpack.c.l.b16 %v523
    %v594 = vunpack.c.l.b16 %v524
    %v595 = vunpack.c.l.b16 %v525
    %v596 = vunpack.c.l.b16 %v526
    %v597 = vunpack.c.l.b16 %v527
    %v598 = vunpack.c.l.b16 %v528
    %v599 = vunpack.c.l.b16 %v529
    %v600 = vunpack.c.l.b16 %v530
    %v601 = vunpack.c.l.b16 %v531
    %v602 = vunpack.c.l.b16 %v532
    %v603 = vunpack.c.l.b16 %v533
    %v604 = vunpack.c.l.b16 %v534
    %v605 = vunpack.c.l.b16 %v535
    %v606 = vunpack.c.l.b16 %v536
    %v607 = vunpack.c.l.b16 %v537
    %v608 = vunpack.c.l.b16 %v538
    %v609 = vunpack.c.l.b16 %v539
    %v610 = vunpack.c.l.b16 %v540
    %v611 = vunpack.c.l.b16 %v541
    %v612 = vunpack.c.l.b16 %v542
    %v613 = vunpack.c.l.b16 %v543
    %v614 = vunpack.c.l.b16 %v544
    %v615 = vunpack.c.l.b16 %v545
    %v616 = vunpack.c.l.b16 %v546
    %v617 = vunpack.c.l.b16 %v547
    %v618 = vunpack.c.l.b16 %v548
    %v619 = vunpack.c.l.b16 %v549
    %v620 = vunpack.c.l.b16 %v550
    %v621 = vunpack.c.l.b16 %v551
    %v622 = vunpack.c.l.b16 %v552
    %v623 = vpack.c.b16 %v592, %v591
    %v624 = vpack.c.b16 %v594, %v593
    %v625 = vpack.c.b16 %v596, %v595
    %v626 = vpack.c.b16 %v598, %v597
    %v627 = vpack.c.b16 %v600, %v599
    %v628 = vpack.c.b16 %v602, %v601
    %v629 = vpack.c.b16 %v604, %v603
    %v630 = vpack.c.b16 %v606, %v605
    %v631 = vpack.c.b16 %v608, %v607
    %v632 = vpack.c.b16 %v610, %v609
    %v633 = vpack.c.b16 %v612, %v611
    %v634 = vpack.c.b16 %v614, %v613
    %v635 = vpack.c.b16 %v616, %v615
    %v636 = vpack.c.b16 %v618, %v617
    %v637 = vpack.c.b16 %v620, %v619
    %v638 = vpack.c.b16 %v622, %v621
    %655 = vmatprep.subr.bf16.mxu0 0
    %656 = vmatpush1.bf16.msra.mxu0 %v623
    %657 = vmatprep.subr.bf16.mxu0 0
    %658 = vmatpush1.bf16.msra.mxu0 %v624
    %659 = vmatprep.subr.bf16.mxu0 0
    %660 = vmatpush1.bf16.msra.mxu0 %v625
    %661 = vmatprep.subr.bf16.mxu0 0
    %662 = vmatpush1.bf16.msra.mxu0 %v626
    %663 = vmatprep.subr.bf16.mxu0 0
    %664 = vmatpush1.bf16.msra.mxu0 %v627
    %665 = vmatprep.subr.bf16.mxu0 0
    %666 = vmatpush1.bf16.msra.mxu0 %v628
    %667 = vmatprep.subr.bf16.mxu0 0
    %668 = vmatpush1.bf16.msra.mxu0 %v629
    %669 = vmatprep.subr.bf16.mxu0 0
    %670 = vmatpush1.bf16.msra.mxu0 %v630
    %671 = vmatprep.subr.bf16.mxu0 0
    %672 = vmatpush1.bf16.msra.mxu0 %v631
    %673 = vmatprep.subr.bf16.mxu0 0
    %674 = vmatpush1.bf16.msra.mxu0 %v632
    %675 = vmatprep.subr.bf16.mxu0 0
    %676 = vmatpush1.bf16.msra.mxu0 %v633
    %677 = vmatprep.subr.bf16.mxu0 0
    %678 = vmatpush1.bf16.msra.mxu0 %v634
    %679 = vmatprep.subr.bf16.mxu0 0
    %680 = vmatpush1.bf16.msra.mxu0 %v635
    %681 = vmatprep.subr.bf16.mxu0 0
    %682 = vmatpush1.bf16.msra.mxu0 %v636
    %683 = vmatprep.subr.bf16.mxu0 0
    %684 = vmatpush1.bf16.msra.mxu0 %v637
    %685 = vmatprep.subr.bf16.mxu0 0
    %686 = vmatpush1.bf16.msra.mxu0 %v638
    %687 = vmatprep.mubr.bf16.mxu0 %v556
    %688 = vmatmul.mubr.bf16.gmra.mrb[0].mxu0 %v555
    %v689 = vpop.f32.mrb[0].mxu0
    %v690 = vadd.f32 0.0, %v689
    %v691 = vpop.f32.mrb[0].mxu0
    %v692 = vpop.f32.mrb[0].mxu0
    %v693 = vpop.f32.mrb[0].mxu0
    %694 = vdwg.mxu0
    %v727 = vunpack.c.l.b16 %v482
    %v728 = vunpack.c.l.b16 %v483
    %v729 = vunpack.c.l.b16 %v484
    %v730 = vunpack.c.l.b16 %v485
    %v731 = vunpack.c.l.b16 %v486
    %v732 = vunpack.c.l.b16 %v487
    %v733 = vunpack.c.l.b16 %v488
    %v734 = vunpack.c.l.b16 %v489
    %v735 = vunpack.c.l.b16 %v490
    %v736 = vunpack.c.l.b16 %v491
    %v737 = vunpack.c.l.b16 %v492
    %v738 = vunpack.c.l.b16 %v493
    %v739 = vunpack.c.l.b16 %v494
    %v740 = vunpack.c.l.b16 %v495
    %v741 = vunpack.c.l.b16 %v496
    %v742 = vunpack.c.l.b16 %v497
    %v743 = vunpack.c.l.b16 %v498
    %v744 = vunpack.c.l.b16 %v499
    %v745 = vunpack.c.l.b16 %v500
    %v746 = vunpack.c.l.b16 %v501
    %v747 = vunpack.c.l.b16 %v502
    %v748 = vunpack.c.l.b16 %v503
    %v749 = vunpack.c.l.b16 %v504
    %v750 = vunpack.c.l.b16 %v505
    %v751 = vunpack.c.l.b16 %v506
    %v752 = vunpack.c.l.b16 %v507
    %v753 = vunpack.c.l.b16 %v508
    %v754 = vunpack.c.l.b16 %v509
    %v755 = vunpack.c.l.b16 %v510
    %v756 = vunpack.c.l.b16 %v511
    %v757 = vunpack.c.l.b16 %v512
    %v758 = vunpack.c.l.b16 %v513
    %v759 = vpack.c.b16 %v728, %v727
    %v760 = vpack.c.b16 %v730, %v729
    %v761 = vpack.c.b16 %v732, %v731
    %v762 = vpack.c.b16 %v734, %v733
    %v763 = vpack.c.b16 %v736, %v735
    %v764 = vpack.c.b16 %v738, %v737
    %v765 = vpack.c.b16 %v740, %v739
    %v766 = vpack.c.b16 %v742, %v741
    %v767 = vpack.c.b16 %v744, %v743
    %v768 = vpack.c.b16 %v746, %v745
    %v769 = vpack.c.b16 %v748, %v747
    %v770 = vpack.c.b16 %v750, %v749
    %v771 = vpack.c.b16 %v752, %v751
    %v772 = vpack.c.b16 %v754, %v753
    %v773 = vpack.c.b16 %v756, %v755
    %v774 = vpack.c.b16 %v758, %v757
    %791 = vmatprep.subr.bf16.mxu0 0
    %792 = vmatpush1.bf16.msra.mxu0 %v759
    %793 = vmatprep.subr.bf16.mxu0 0
    %794 = vmatpush1.bf16.msra.mxu0 %v760
    %795 = vmatprep.subr.bf16.mxu0 0
    %796 = vmatpush1.bf16.msra.mxu0 %v761
    %797 = vmatprep.subr.bf16.mxu0 0
    %798 = vmatpush1.bf16.msra.mxu0 %v762
    %799 = vmatprep.subr.bf16.mxu0 0
    %800 = vmatpush1.bf16.msra.mxu0 %v763
    %801 = vmatprep.subr.bf16.mxu0 0
    %802 = vmatpush1.bf16.msra.mxu0 %v764
    %803 = vmatprep.subr.bf16.mxu0 0
    %804 = vmatpush1.bf16.msra.mxu0 %v765
    %805 = vmatprep.subr.bf16.mxu0 0
    %806 = vmatpush1.bf16.msra.mxu0 %v766
    %807 = vmatprep.subr.bf16.mxu0 0
    %808 = vmatpush1.bf16.msra.mxu0 %v767
    %809 = vmatprep.subr.bf16.mxu0 0
    %810 = vmatpush1.bf16.msra.mxu0 %v768
    %811 = vmatprep.subr.bf16.mxu0 0
    %812 = vmatpush1.bf16.msra.mxu0 %v769
    %813 = vmatprep.subr.bf16.mxu0 0
    %814 = vmatpush1.bf16.msra.mxu0 %v770
    %815 = vmatprep.subr.bf16.mxu0 0
    %816 = vmatpush1.bf16.msra.mxu0 %v771
    %817 = vmatprep.subr.bf16.mxu0 0
    %818 = vmatpush1.bf16.msra.mxu0 %v772
    %819 = vmatprep.subr.bf16.mxu0 0
    %820 = vmatpush1.bf16.msra.mxu0 %v773
    %821 = vmatprep.subr.bf16.mxu0 0
    %822 = vmatpush1.bf16.msra.mxu0 %v774
    %823 = vmatprep.mubr.bf16.mxu0 %v480
    %824 = vmatmul.mubr.bf16.gmra.mrb[0].mxu0 %v479
    %v825 = vpop.f32.mrb[0].mxu0
    %v826 = vadd.f32 %v690, %v825
    %v827 = vpop.f32.mrb[0].mxu0
    %v828 = vpop.f32.mrb[0].mxu0
    %v829 = vpop.f32.mrb[0].mxu0
    %830 = vdwg.mxu0
    %v831 = vld [vmem:[#allocation3] sm:$0xff]
    %v832 = vld [vmem:[#allocation3 + $0x8] sm:$0xff]
    %v833 = vpack.c.bf16 %v831, %v831
    %v834 = vpack.c.bf16 %v832, %v832
    %v835 = vld [vmem:[%s4] sm:$0xf]
    %v836 = vld [vmem:[%s4 + $0x4] sm:$0xf]
    %v837 = vld [vmem:[%s4 + $0x8] sm:$0xf]
    %v838 = vld [vmem:[%s4 + $0xc] sm:$0xf]
    %v839 = vld [vmem:[%s4 + $0x10] sm:$0xf]
    %v840 = vld [vmem:[%s4 + $0x14] sm:$0xf]
    %v841 = vld [vmem:[%s4 + $0x18] sm:$0xf]
    %v842 = vld [vmem:[%s4 + $0x1c] sm:$0xf]
    %v843 = vld [vmem:[%s4 + $0x20] sm:$0xf]
    %v844 = vld [vmem:[%s4 + $0x24] sm:$0xf]
    %v845 = vld [vmem:[%s4 + $0x28] sm:$0xf]
    %v846 = vld [vmem:[%s4 + $0x2c] sm:$0xf]
    %v847 = vld [vmem:[%s4 + $0x30] sm:$0xf]
    %v848 = vld [vmem:[%s4 + $0x34] sm:$0xf]
    %v849 = vld [vmem:[%s4 + $0x38] sm:$0xf]
    %v850 = vld [vmem:[%s4 + $0x3c] sm:$0xf]
    %v851 = vld [vmem:[%s4 + $0x40] sm:$0xf]
    %v852 = vld [vmem:[%s4 + $0x44] sm:$0xf]
    %v853 = vld [vmem:[%s4 + $0x48] sm:$0xf]
    %v854 = vld [vmem:[%s4 + $0x4c] sm:$0xf]
    %v855 = vld [vmem:[%s4 + $0x50] sm:$0xf]
    %v856 = vld [vmem:[%s4 + $0x54] sm:$0xf]
    %v857 = vld [vmem:[%s4 + $0x58] sm:$0xf]
    %v858 = vld [vmem:[%s4 + $0x5c] sm:$0xf]
    %v859 = vld [vmem:[%s4 + $0x60] sm:$0xf]
    %v860 = vld [vmem:[%s4 + $0x64] sm:$0xf]
    %v861 = vld [vmem:[%s4 + $0x68] sm:$0xf]
    %v862 = vld [vmem:[%s4 + $0x6c] sm:$0xf]
    %v863 = vld [vmem:[%s4 + $0x70] sm:$0xf]
    %v864 = vld [vmem:[%s4 + $0x74] sm:$0xf]
    %v865 = vld [vmem:[%s4 + $0x78] sm:$0xf]
    %v866 = vld [vmem:[%s4 + $0x7c] sm:$0xf]
    %v899 = vunpack.c.l.b16 %v835
    %v900 = vunpack.c.l.b16 %v836
    %v901 = vunpack.c.l.b16 %v837
    %v902 = vunpack.c.l.b16 %v838
    %v903 = vunpack.c.l.b16 %v839
    %v904 = vunpack.c.l.b16 %v840
    %v905 = vunpack.c.l.b16 %v841
    %v906 = vunpack.c.l.b16 %v842
    %v907 = vunpack.c.l.b16 %v843
    %v908 = vunpack.c.l.b16 %v844
    %v909 = vunpack.c.l.b16 %v845
    %v910 = vunpack.c.l.b16 %v846
    %v911 = vunpack.c.l.b16 %v847
    %v912 = vunpack.c.l.b16 %v848
    %v913 = vunpack.c.l.b16 %v849
    %v914 = vunpack.c.l.b16 %v850
    %v915 = vunpack.c.l.b16 %v851
    %v916 = vunpack.c.l.b16 %v852
    %v917 = vunpack.c.l.b16 %v853
    %v918 = vunpack.c.l.b16 %v854
    %v919 = vunpack.c.l.b16 %v855
    %v920 = vunpack.c.l.b16 %v856
    %v921 = vunpack.c.l.b16 %v857
    %v922 = vunpack.c.l.b16 %v858
    %v923 = vunpack.c.l.b16 %v859
    %v924 = vunpack.c.l.b16 %v860
    %v925 = vunpack.c.l.b16 %v861
    %v926 = vunpack.c.l.b16 %v862
    %v927 = vunpack.c.l.b16 %v863
    %v928 = vunpack.c.l.b16 %v864
    %v929 = vunpack.c.l.b16 %v865
    %v930 = vunpack.c.l.b16 %v866
    %v931 = vpack.c.b16 %v900, %v899
    %v932 = vpack.c.b16 %v902, %v901
    %v933 = vpack.c.b16 %v904, %v903
    %v934 = vpack.c.b16 %v906, %v905
    %v935 = vpack.c.b16 %v908, %v907
    %v936 = vpack.c.b16 %v910, %v909
    %v937 = vpack.c.b16 %v912, %v911
    %v938 = vpack.c.b16 %v914, %v913
    %v939 = vpack.c.b16 %v916, %v915
    %v940 = vpack.c.b16 %v918, %v917
    %v941 = vpack.c.b16 %v920, %v919
    %v942 = vpack.c.b16 %v922, %v921
    %v943 = vpack.c.b16 %v924, %v923
    %v944 = vpack.c.b16 %v926, %v925
    %v945 = vpack.c.b16 %v928, %v927
    %v946 = vpack.c.b16 %v930, %v929
    %963 = vmatprep.subr.bf16.mxu0 0
    %964 = vmatpush1.bf16.msra.mxu0 %v931
    %965 = vmatprep.subr.bf16.mxu0 0
    %966 = vmatpush1.bf16.msra.mxu0 %v932
    %967 = vmatprep.subr.bf16.mxu0 0
    %968 = vmatpush1.bf16.msra.mxu0 %v933
    %969 = vmatprep.subr.bf16.mxu0 0
    %970 = vmatpush1.bf16.msra.mxu0 %v934
    %971 = vmatprep.subr.bf16.mxu0 0
    %972 = vmatpush1.bf16.msra.mxu0 %v935
    %973 = vmatprep.subr.bf16.mxu0 0
    %974 = vmatpush1.bf16.msra.mxu0 %v936
    %975 = vmatprep.subr.bf16.mxu0 0
    %976 = vmatpush1.bf16.msra.mxu0 %v937
    %977 = vmatprep.subr.bf16.mxu0 0
    %978 = vmatpush1.bf16.msra.mxu0 %v938
    %979 = vmatprep.subr.bf16.mxu0 0
    %980 = vmatpush1.bf16.msra.mxu0 %v939
    %981 = vmatprep.subr.bf16.mxu0 0
    %982 = vmatpush1.bf16.msra.mxu0 %v940
    %983 = vmatprep.subr.bf16.mxu0 0
    %984 = vmatpush1.bf16.msra.mxu0 %v941
    %985 = vmatprep.subr.bf16.mxu0 0
    %986 = vmatpush1.bf16.msra.mxu0 %v942
    %987 = vmatprep.subr.bf16.mxu0 0
    %988 = vmatpush1.bf16.msra.mxu0 %v943
    %989 = vmatprep.subr.bf16.mxu0 0
    %990 = vmatpush1.bf16.msra.mxu0 %v944
    %991 = vmatprep.subr.bf16.mxu0 0
    %992 = vmatpush1.bf16.msra.mxu0 %v945
    %993 = vmatprep.subr.bf16.mxu0 0
    %994 = vmatpush1.bf16.msra.mxu0 %v946
    %995 = vmatprep.mubr.bf16.mxu0 %v834
    %996 = vmatmul.mubr.bf16.gmra.mrb[0].mxu0 %v833
    %v997 = vpop.f32.mrb[0].mxu0
    %v998 = vadd.f32 0.0, %v997
    %v999 = vpop.f32.mrb[0].mxu0
    %v1000 = vpop.f32.mrb[0].mxu0
    %v1001 = vpop.f32.mrb[0].mxu0
    %1002 = vdwg.mxu0
    %v1003 = vadd.f32 %v826, %v998
    %v1004 = vld [vmem:[%s5] sm:$0x1]
    %v1006 = vlaneseq
    %v1007 = vshrl.u32 %v1006, 7
    %v1008 = vsub.s32 0, %v1007
    %v1009 = vrot.slane %v1004, %v1008
    %v1011 = vadd.f32 %v1003, %v1009
    %vm1012 = vcmp.gt.f32.partialorder %v1011, 0.0
    %v1013 = vmin.f32 %v1011, 0.0
    %v1014 = vmul.f32 %v1013, 1.442695
    %v1015 = vpow.pop %v1014
    %v1016 = vsub.f32 %v1015, 1.0
    %v1017 = vsel %vm1012, %v1011, %v1016
    %1018 = vst [vmem:[#allocation2] sm:$0x3] %v1017
    %v1020 = vrot.slane %v1017, 2
    %1022 = vst [vmem:[#allocation2] sm:$0xc] %v1020
    %1023 = vst [vmem:[#allocation3] sm:$0xc] %v1017
    %1024 = vst [vmem:[#allocation3] sm:$0x30] %v1020
    %v1025 = vld [vmem:[#allocation2] sm:$0xf]
    %v1026 = vpack.c.bf16 %v1025, %v1025
    %s1027 = scalar_lea.vmem %s6, 64
    %v1028 = vld [vmem:[%s1027] sm:$0xf]
    %v1029 = vld [vmem:[%s1027 + $0x4] sm:$0xf]
    %v1030 = vld [vmem:[%s1027 + $0x8] sm:$0xf]
    %v1031 = vld [vmem:[%s1027 + $0xc] sm:$0xf]
    %v1032 = vld [vmem:[%s1027 + $0x10] sm:$0xf]
    %v1033 = vld [vmem:[%s1027 + $0x14] sm:$0xf]
    %v1034 = vld [vmem:[%s1027 + $0x18] sm:$0xf]
    %v1035 = vld [vmem:[%s1027 + $0x1c] sm:$0xf]
    %v1036 = vld [vmem:[%s1027 + $0x20] sm:$0xf]
    %v1037 = vld [vmem:[%s1027 + $0x24] sm:$0xf]
    %v1038 = vld [vmem:[%s1027 + $0x28] sm:$0xf]
    %v1039 = vld [vmem:[%s1027 + $0x2c] sm:$0xf]
    %v1040 = vld [vmem:[%s1027 + $0x30] sm:$0xf]
    %v1041 = vld [vmem:[%s1027 + $0x34] sm:$0xf]
    %v1042 = vld [vmem:[%s1027 + $0x38] sm:$0xf]
    %v1043 = vld [vmem:[%s1027 + $0x3c] sm:$0xf]
    %v1044 = vld [vmem:[#allocation3] sm:$0x3c]
    %v1045 = vpack.c.bf16 %v1044, %v1044
    %s1046 = scalar_lea.vmem %s6, 128
    %v1047 = vld [vmem:[%s1046] sm:$0xf]
    %v1048 = vld [vmem:[%s1046 + $0x4] sm:$0xf]
    %v1049 = vld [vmem:[%s1046 + $0x8] sm:$0xf]
    %v1050 = vld [vmem:[%s1046 + $0xc] sm:$0xf]
    %v1051 = vld [vmem:[%s1046 + $0x10] sm:$0xf]
    %v1052 = vld [vmem:[%s1046 + $0x14] sm:$0xf]
    %v1053 = vld [vmem:[%s1046 + $0x18] sm:$0xf]
    %v1054 = vld [vmem:[%s1046 + $0x1c] sm:$0xf]
    %v1055 = vld [vmem:[%s1046 + $0x20] sm:$0xf]
    %v1056 = vld [vmem:[%s1046 + $0x24] sm:$0xf]
    %v1057 = vld [vmem:[%s1046 + $0x28] sm:$0xf]
    %v1058 = vld [vmem:[%s1046 + $0x2c] sm:$0xf]
    %v1059 = vld [vmem:[%s1046 + $0x30] sm:$0xf]
    %v1060 = vld [vmem:[%s1046 + $0x34] sm:$0xf]
    %v1061 = vld [vmem:[%s1046 + $0x38] sm:$0xf]
    %v1062 = vld [vmem:[%s1046 + $0x3c] sm:$0xf]
    %v1064 = vrot.slane %v1045, 1
    %v1082 = vunpack.c.l.b16 %v1047
    %v1083 = vunpack.c.l.b16 %v1048
    %v1084 = vunpack.c.l.b16 %v1049
    %v1085 = vunpack.c.l.b16 %v1050
    %v1086 = vunpack.c.l.b16 %v1051
    %v1087 = vunpack.c.l.b16 %v1052
    %v1088 = vunpack.c.l.b16 %v1053
    %v1089 = vunpack.c.l.b16 %v1054
    %v1090 = vunpack.c.l.b16 %v1055
    %v1091 = vunpack.c.l.b16 %v1056
    %v1092 = vunpack.c.l.b16 %v1057
    %v1093 = vunpack.c.l.b16 %v1058
    %v1094 = vunpack.c.l.b16 %v1059
    %v1095 = vunpack.c.l.b16 %v1060
    %v1096 = vunpack.c.l.b16 %v1061
    %v1097 = vunpack.c.l.b16 %v1062
    %v1098 = vpack.c.b16 %v1083, %v1082
    %v1099 = vpack.c.b16 %v1085, %v1084
    %v1100 = vpack.c.b16 %v1087, %v1086
    %v1101 = vpack.c.b16 %v1089, %v1088
    %v1102 = vpack.c.b16 %v1091, %v1090
    %v1103 = vpack.c.b16 %v1093, %v1092
    %v1104 = vpack.c.b16 %v1095, %v1094
    %v1105 = vpack.c.b16 %v1097, %v1096
    %1114 = vmatprep.subr.bf16.mxu0 0
    %1115 = vmatpush1.bf16.msra.mxu0 %v1098
    %1116 = vmatprep.subr.bf16.mxu0 0
    %1117 = vmatpush1.bf16.msra.mxu0 %v1099
    %1118 = vmatprep.subr.bf16.mxu0 0
    %1119 = vmatpush1.bf16.msra.mxu0 %v1100
    %1120 = vmatprep.subr.bf16.mxu0 0
    %1121 = vmatpush1.bf16.msra.mxu0 %v1101
    %1122 = vmatprep.subr.bf16.mxu0 0
    %1123 = vmatpush1.bf16.msra.mxu0 %v1102
    %1124 = vmatprep.subr.bf16.mxu0 0
    %1125 = vmatpush1.bf16.msra.mxu0 %v1103
    %1126 = vmatprep.subr.bf16.mxu0 0
    %1127 = vmatpush1.bf16.msra.mxu0 %v1104
    %1128 = vmatprep.subr.bf16.mxu0 0
    %1129 = vmatpush1.bf16.msra.mxu0 %v1105
    %1130 = vmatprep.subr.bf16.mxu0 0
    %1131 = vmatpush1.bf16.msra.mxu0 0
    %1132 = vmatprep.subr.bf16.mxu0 0
    %1133 = vmatpush1.bf16.msra.mxu0 0
    %1134 = vmatprep.subr.bf16.mxu0 0
    %1135 = vmatpush1.bf16.msra.mxu0 0
    %1136 = vmatprep.subr.bf16.mxu0 0
    %1137 = vmatpush1.bf16.msra.mxu0 0
    %1138 = vmatprep.subr.bf16.mxu0 0
    %1139 = vmatpush1.bf16.msra.mxu0 0
    %1140 = vmatprep.subr.bf16.mxu0 0
    %1141 = vmatpush1.bf16.msra.mxu0 0
    %1142 = vmatprep.subr.bf16.mxu0 0
    %1143 = vmatpush1.bf16.msra.mxu0 0
    %1144 = vmatprep.subr.bf16.mxu0 0
    %1145 = vmatpush1.bf16.msra.mxu0 0
    %1146 = vmatprep.mubr.bf16.mxu0 0
    %1147 = vmatmul.mubr.bf16.gmra.mrb[0].mxu0 %v1064
    %v1148 = vpop.f32.mrb[0].mxu0
    %v1149 = vadd.f32 0.0, %v1148
    %v1150 = vpop.f32.mrb[0].mxu0
    %v1151 = vpop.f32.mrb[0].mxu0
    %v1152 = vpop.f32.mrb[0].mxu0
    %1153 = vdwg.mxu0
    %v1170 = vunpack.c.l.b16 %v1028
    %v1171 = vunpack.c.l.b16 %v1029
    %v1172 = vunpack.c.l.b16 %v1030
    %v1173 = vunpack.c.l.b16 %v1031
    %v1174 = vunpack.c.l.b16 %v1032
    %v1175 = vunpack.c.l.b16 %v1033
    %v1176 = vunpack.c.l.b16 %v1034
    %v1177 = vunpack.c.l.b16 %v1035
    %v1178 = vunpack.c.l.b16 %v1036
    %v1179 = vunpack.c.l.b16 %v1037
    %v1180 = vunpack.c.l.b16 %v1038
    %v1181 = vunpack.c.l.b16 %v1039
    %v1182 = vunpack.c.l.b16 %v1040
    %v1183 = vunpack.c.l.b16 %v1041
    %v1184 = vunpack.c.l.b16 %v1042
    %v1185 = vunpack.c.l.b16 %v1043
    %v1186 = vpack.c.b16 %v1171, %v1170
    %v1187 = vpack.c.b16 %v1173, %v1172
    %v1188 = vpack.c.b16 %v1175, %v1174
    %v1189 = vpack.c.b16 %v1177, %v1176
    %v1190 = vpack.c.b16 %v1179, %v1178
    %v1191 = vpack.c.b16 %v1181, %v1180
    %v1192 = vpack.c.b16 %v1183, %v1182
    %v1193 = vpack.c.b16 %v1185, %v1184
    %1202 = vmatprep.subr.bf16.mxu0 0
    %1203 = vmatpush1.bf16.msra.mxu0 %v1186
    %1204 = vmatprep.subr.bf16.mxu0 0
    %1205 = vmatpush1.bf16.msra.mxu0 %v1187
    %1206 = vmatprep.subr.bf16.mxu0 0
    %1207 = vmatpush1.bf16.msra.mxu0 %v1188
    %1208 = vmatprep.subr.bf16.mxu0 0
    %1209 = vmatpush1.bf16.msra.mxu0 %v1189
    %1210 = vmatprep.subr.bf16.mxu0 0
    %1211 = vmatpush1.bf16.msra.mxu0 %v1190
    %1212 = vmatprep.subr.bf16.mxu0 0
    %1213 = vmatpush1.bf16.msra.mxu0 %v1191
    %1214 = vmatprep.subr.bf16.mxu0 0
    %1215 = vmatpush1.bf16.msra.mxu0 %v1192
    %1216 = vmatprep.subr.bf16.mxu0 0
    %1217 = vmatpush1.bf16.msra.mxu0 %v1193
    %1218 = vmatprep.subr.bf16.mxu0 0
    %1219 = vmatpush1.bf16.msra.mxu0 0
    %1220 = vmatprep.subr.bf16.mxu0 0
    %1221 = vmatpush1.bf16.msra.mxu0 0
    %1222 = vmatprep.subr.bf16.mxu0 0
    %1223 = vmatpush1.bf16.msra.mxu0 0
    %1224 = vmatprep.subr.bf16.mxu0 0
    %1225 = vmatpush1.bf16.msra.mxu0 0
    %1226 = vmatprep.subr.bf16.mxu0 0
    %1227 = vmatpush1.bf16.msra.mxu0 0
    %1228 = vmatprep.subr.bf16.mxu0 0
    %1229 = vmatpush1.bf16.msra.mxu0 0
    %1230 = vmatprep.subr.bf16.mxu0 0
    %1231 = vmatpush1.bf16.msra.mxu0 0
    %1232 = vmatprep.subr.bf16.mxu0 0
    %1233 = vmatpush1.bf16.msra.mxu0 0
    %1234 = vmatprep.mubr.bf16.mxu0 0
    %1235 = vmatmul.mubr.bf16.gmra.mrb[0].mxu0 %v1026
    %v1236 = vpop.f32.mrb[0].mxu0
    %v1237 = vadd.f32 %v1149, %v1236
    %v1238 = vpop.f32.mrb[0].mxu0
    %v1239 = vpop.f32.mrb[0].mxu0
    %v1240 = vpop.f32.mrb[0].mxu0
    %1241 = vdwg.mxu0
    %v1242 = vld [vmem:[#allocation3] sm:$0xf]
    %v1243 = vpack.c.bf16 %v1242, %v1242
    %v1244 = vld [vmem:[%s6] sm:$0xf]
    %v1245 = vld [vmem:[%s6 + $0x4] sm:$0xf]
    %v1246 = vld [vmem:[%s6 + $0x8] sm:$0xf]
    %v1247 = vld [vmem:[%s6 + $0xc] sm:$0xf]
    %v1248 = vld [vmem:[%s6 + $0x10] sm:$0xf]
    %v1249 = vld [vmem:[%s6 + $0x14] sm:$0xf]
    %v1250 = vld [vmem:[%s6 + $0x18] sm:$0xf]
    %v1251 = vld [vmem:[%s6 + $0x1c] sm:$0xf]
    %v1252 = vld [vmem:[%s6 + $0x20] sm:$0xf]
    %v1253 = vld [vmem:[%s6 + $0x24] sm:$0xf]
    %v1254 = vld [vmem:[%s6 + $0x28] sm:$0xf]
    %v1255 = vld [vmem:[%s6 + $0x2c] sm:$0xf]
    %v1256 = vld [vmem:[%s6 + $0x30] sm:$0xf]
    %v1257 = vld [vmem:[%s6 + $0x34] sm:$0xf]
    %v1258 = vld [vmem:[%s6 + $0x38] sm:$0xf]
    %v1259 = vld [vmem:[%s6 + $0x3c] sm:$0xf]
    %v1276 = vunpack.c.l.b16 %v1244
    %v1277 = vunpack.c.l.b16 %v1245
    %v1278 = vunpack.c.l.b16 %v1246
    %v1279 = vunpack.c.l.b16 %v1247
    %v1280 = vunpack.c.l.b16 %v1248
    %v1281 = vunpack.c.l.b16 %v1249
    %v1282 = vunpack.c.l.b16 %v1250
    %v1283 = vunpack.c.l.b16 %v1251
    %v1284 = vunpack.c.l.b16 %v1252
    %v1285 = vunpack.c.l.b16 %v1253
    %v1286 = vunpack.c.l.b16 %v1254
    %v1287 = vunpack.c.l.b16 %v1255
    %v1288 = vunpack.c.l.b16 %v1256
    %v1289 = vunpack.c.l.b16 %v1257
    %v1290 = vunpack.c.l.b16 %v1258
    %v1291 = vunpack.c.l.b16 %v1259
    %v1292 = vpack.c.b16 %v1277, %v1276
    %v1293 = vpack.c.b16 %v1279, %v1278
    %v1294 = vpack.c.b16 %v1281, %v1280
    %v1295 = vpack.c.b16 %v1283, %v1282
    %v1296 = vpack.c.b16 %v1285, %v1284
    %v1297 = vpack.c.b16 %v1287, %v1286
    %v1298 = vpack.c.b16 %v1289, %v1288
    %v1299 = vpack.c.b16 %v1291, %v1290
    %1308 = vmatprep.subr.bf16.mxu0 0
    %1309 = vmatpush1.bf16.msra.mxu0 %v1292
    %1310 = vmatprep.subr.bf16.mxu0 0
    %1311 = vmatpush1.bf16.msra.mxu0 %v1293
    %1312 = vmatprep.subr.bf16.mxu0 0
    %1313 = vmatpush1.bf16.msra.mxu0 %v1294
    %1314 = vmatprep.subr.bf16.mxu0 0
    %1315 = vmatpush1.bf16.msra.mxu0 %v1295
    %1316 = vmatprep.subr.bf16.mxu0 0
    %1317 = vmatpush1.bf16.msra.mxu0 %v1296
    %1318 = vmatprep.subr.bf16.mxu0 0
    %1319 = vmatpush1.bf16.msra.mxu0 %v1297
    %1320 = vmatprep.subr.bf16.mxu0 0
    %1321 = vmatpush1.bf16.msra.mxu0 %v1298
    %1322 = vmatprep.subr.bf16.mxu0 0
    %1323 = vmatpush1.bf16.msra.mxu0 %v1299
    %1324 = vmatprep.subr.bf16.mxu0 0
    %1325 = vmatpush1.bf16.msra.mxu0 0
    %1326 = vmatprep.subr.bf16.mxu0 0
    %1327 = vmatpush1.bf16.msra.mxu0 0
    %1328 = vmatprep.subr.bf16.mxu0 0
    %1329 = vmatpush1.bf16.msra.mxu0 0
    %1330 = vmatprep.subr.bf16.mxu0 0
    %1331 = vmatpush1.bf16.msra.mxu0 0
    %1332 = vmatprep.subr.bf16.mxu0 0
    %1333 = vmatpush1.bf16.msra.mxu0 0
    %1334 = vmatprep.subr.bf16.mxu0 0
    %1335 = vmatpush1.bf16.msra.mxu0 0
    %1336 = vmatprep.subr.bf16.mxu0 0
    %1337 = vmatpush1.bf16.msra.mxu0 0
    %1338 = vmatprep.subr.bf16.mxu0 0
    %1339 = vmatpush1.bf16.msra.mxu0 0
    %1340 = vmatprep.mubr.bf16.mxu0 0
    %1341 = vmatmul.mubr.bf16.gmra.mrb[0].mxu0 %v1243
    %v1342 = vpop.f32.mrb[0].mxu0
    %v1343 = vadd.f32 0.0, %v1342
    %v1344 = vpop.f32.mrb[0].mxu0
    %v1345 = vpop.f32.mrb[0].mxu0
    %v1346 = vpop.f32.mrb[0].mxu0
    %1347 = vdwg.mxu0
    %v1348 = vadd.f32 %v1237, %v1343
    %v1349 = vld [vmem:[%s7] sm:$0x1]
    %v1351 = vlaneseq
    %v1352 = vshrl.u32 %v1351, 7
    %v1353 = vsub.s32 0, %v1352
    %v1354 = vrot.slane %v1349, %v1353
    %v1356 = vadd.f32 %v1348, %v1354
    %vm1357 = vcmp.gt.f32.partialorder %v1356, 0.0
    %v1358 = vmin.f32 %v1356, 0.0
    %v1359 = vmul.f32 %v1358, 1.442695
    %v1360 = vpow.pop %v1359
    %v1361 = vsub.f32 %v1360, 1.0
    %v1362 = vsel %vm1357, %v1356, %v1361
    %1363 = vst.msk [vmem:[#allocation2] sm:$0x3] %vm63, %v1362
    %1364 = vst.msk [vmem:[#allocation3] sm:$0xc] %vm68, %v1362
    %v1365 = vld [vmem:[#allocation2] sm:$0x3]
    %v1366 = vpack.c.bf16 %v1365, %v1365
    %s1367 = scalar_lea.vmem %s8, 32
    %v1368 = vld [vmem:[%s1367] sm:$0xf]
    %v1369 = vld [vmem:[%s1367 + $0x4] sm:$0xf]
    %v1370 = vld [vmem:[%s1367 + $0x8] sm:$0xf]
    %v1371 = vld [vmem:[%s1367 + $0xc] sm:$0xf]
    %v1372 = vld [vmem:[%s1367 + $0x10] sm:$0xf]
    %v1373 = vld [vmem:[%s1367 + $0x14] sm:$0xf]
    %v1374 = vld [vmem:[%s1367 + $0x18] sm:$0xf]
    %v1375 = vld [vmem:[%s1367 + $0x1c] sm:$0xf]
    %v1376 = vld [vmem:[#allocation3] sm:$0xc]
    %v1377 = vpack.c.bf16 %v1376, %v1376
    %s1378 = scalar_lea.vmem %s8, 64
    %v1379 = vld [vmem:[%s1378] sm:$0xf]
    %v1380 = vld [vmem:[%s1378 + $0x4] sm:$0xf]
    %v1381 = vld [vmem:[%s1378 + $0x8] sm:$0xf]
    %v1382 = vld [vmem:[%s1378 + $0xc] sm:$0xf]
    %v1383 = vld [vmem:[%s1378 + $0x10] sm:$0xf]
    %v1384 = vld [vmem:[%s1378 + $0x14] sm:$0xf]
    %v1385 = vld [vmem:[%s1378 + $0x18] sm:$0xf]
    %v1386 = vld [vmem:[%s1378 + $0x1c] sm:$0xf]
    %v1388 = vrot.slane %v1377, 1
    %v1397 = vunpack.c.l.b16 %v1379
    %v1398 = vunpack.c.l.b16 %v1380
    %v1399 = vunpack.c.l.b16 %v1381
    %v1400 = vunpack.c.l.b16 %v1382
    %v1401 = vunpack.c.l.b16 %v1383
    %v1402 = vunpack.c.l.b16 %v1384
    %v1403 = vunpack.c.l.b16 %v1385
    %v1404 = vunpack.c.l.b16 %v1386
    %v1405 = vpack.c.b16 %v1398, %v1397
    %v1406 = vpack.c.b16 %v1400, %v1399
    %v1407 = vpack.c.b16 %v1402, %v1401
    %v1408 = vpack.c.b16 %v1404, %v1403
    %v1414 = vsel %vm171, %v1388, 0
    %1416 = vmatprep.subr.bf16.mxu0 0
    %1417 = vmatpush1.bf16.msra.mxu0 %v1405
    %1418 = vmatprep.subr.bf16.mxu0 0
    %1419 = vmatpush1.bf16.msra.mxu0 %v1406
    %1420 = vmatprep.subr.bf16.mxu0 0
    %1421 = vmatpush1.bf16.msra.mxu0 %v1407
    %1422 = vmatprep.subr.bf16.mxu0 0
    %1423 = vmatpush1.bf16.msra.mxu0 %v1408
    %1424 = vmatprep.subr.bf16.mxu0 0
    %1425 = vmatpush1.bf16.msra.mxu0 0
    %1426 = vmatprep.subr.bf16.mxu0 0
    %1427 = vmatpush1.bf16.msra.mxu0 0
    %1428 = vmatprep.subr.bf16.mxu0 0
    %1429 = vmatpush1.bf16.msra.mxu0 0
    %1430 = vmatprep.subr.bf16.mxu0 0
    %1431 = vmatpush1.bf16.msra.mxu0 0
    %1432 = vmatprep.subr.bf16.mxu0 0
    %1433 = vmatpush1.bf16.msra.mxu0 0
    %1434 = vmatprep.subr.bf16.mxu0 0
    %1435 = vmatpush1.bf16.msra.mxu0 0
    %1436 = vmatprep.subr.bf16.mxu0 0
    %1437 = vmatpush1.bf16.msra.mxu0 0
    %1438 = vmatprep.subr.bf16.mxu0 0
    %1439 = vmatpush1.bf16.msra.mxu0 0
    %1440 = vmatprep.subr.bf16.mxu0 0
    %1441 = vmatpush1.bf16.msra.mxu0 0
    %1442 = vmatprep.subr.bf16.mxu0 0
    %1443 = vmatpush1.bf16.msra.mxu0 0
    %1444 = vmatprep.subr.bf16.mxu0 0
    %1445 = vmatpush1.bf16.msra.mxu0 0
    %1446 = vmatprep.subr.bf16.mxu0 0
    %1447 = vmatpush1.bf16.msra.mxu0 0
    %1448 = vmatprep.mubr.bf16.mxu0 0
    %1449 = vmatmul.mubr.bf16.gmra.mrb[0].mxu0 %v1414
    %v1450 = vpop.f32.mrb[0].mxu0
    %v1451 = vadd.f32 0.0, %v1450
    %v1452 = vpop.f32.mrb[0].mxu0
    %v1453 = vpop.f32.mrb[0].mxu0
    %v1454 = vpop.f32.mrb[0].mxu0
    %1455 = vdwg.mxu0
    %v1464 = vunpack.c.l.b16 %v1368
    %v1465 = vunpack.c.l.b16 %v1369
    %v1466 = vunpack.c.l.b16 %v1370
    %v1467 = vunpack.c.l.b16 %v1371
    %v1468 = vunpack.c.l.b16 %v1372
    %v1469 = vunpack.c.l.b16 %v1373
    %v1470 = vunpack.c.l.b16 %v1374
    %v1471 = vunpack.c.l.b16 %v1375
    %v1472 = vpack.c.b16 %v1465, %v1464
    %v1473 = vpack.c.b16 %v1467, %v1466
    %v1474 = vpack.c.b16 %v1469, %v1468
    %v1475 = vpack.c.b16 %v1471, %v1470
    %v1481 = vsel %vm171, %v1366, 0
    %1483 = vmatprep.subr.bf16.mxu0 0
    %1484 = vmatpush1.bf16.msra.mxu0 %v1472
    %1485 = vmatprep.subr.bf16.mxu0 0
    %1486 = vmatpush1.bf16.msra.mxu0 %v1473
    %1487 = vmatprep.subr.bf16.mxu0 0
    %1488 = vmatpush1.bf16.msra.mxu0 %v1474
    %1489 = vmatprep.subr.bf16.mxu0 0
    %1490 = vmatpush1.bf16.msra.mxu0 %v1475
    %1491 = vmatprep.subr.bf16.mxu0 0
    %1492 = vmatpush1.bf16.msra.mxu0 0
    %1493 = vmatprep.subr.bf16.mxu0 0
    %1494 = vmatpush1.bf16.msra.mxu0 0
    %1495 = vmatprep.subr.bf16.mxu0 0
    %1496 = vmatpush1.bf16.msra.mxu0 0
    %1497 = vmatprep.subr.bf16.mxu0 0
    %1498 = vmatpush1.bf16.msra.mxu0 0
    %1499 = vmatprep.subr.bf16.mxu0 0
    %1500 = vmatpush1.bf16.msra.mxu0 0
    %1501 = vmatprep.subr.bf16.mxu0 0
    %1502 = vmatpush1.bf16.msra.mxu0 0
    %1503 = vmatprep.subr.bf16.mxu0 0
    %1504 = vmatpush1.bf16.msra.mxu0 0
    %1505 = vmatprep.subr.bf16.mxu0 0
    %1506 = vmatpush1.bf16.msra.mxu0 0
    %1507 = vmatprep.subr.bf16.mxu0 0
    %1508 = vmatpush1.bf16.msra.mxu0 0
    %1509 = vmatprep.subr.bf16.mxu0 0
    %1510 = vmatpush1.bf16.msra.mxu0 0
    %1511 = vmatprep.subr.bf16.mxu0 0
    %1512 = vmatpush1.bf16.msra.mxu0 0
    %1513 = vmatprep.subr.bf16.mxu0 0
    %1514 = vmatpush1.bf16.msra.mxu0 0
    %1515 = vmatprep.mubr.bf16.mxu0 0
    %1516 = vmatmul.mubr.bf16.gmra.mrb[0].mxu0 %v1481
    %v1517 = vpop.f32.mrb[0].mxu0
    %v1518 = vadd.f32 %v1451, %v1517
    %v1519 = vpop.f32.mrb[0].mxu0
    %v1520 = vpop.f32.mrb[0].mxu0
    %v1521 = vpop.f32.mrb[0].mxu0
    %1522 = vdwg.mxu0
    %v1523 = vld [vmem:[%s9] sm:$0x1]
    %v1525 = vlaneseq
    %v1526 = vshrl.u32 %v1525, 7
    %v1527 = vsub.s32 0, %v1526
    %v1528 = vrot.slane %v1523, %v1527
    %v1530 = vadd.f32 %v1518, %v1528
    %vm1531 = vcmp.gt.f32.partialorder %v1530, 0.0
    %v1532 = vmin.f32 %v1530, 0.0
    %v1533 = vmul.f32 %v1532, 1.442695
    %v1534 = vpow.pop %v1533
    %v1535 = vsub.f32 %v1534, 1.0
    %v1536 = vsel %vm1531, %v1530, %v1535
    %v1537 = vld [vmem:[%s1] sm:$0xf]
    %v1538 = vpack.c.bf16 %v1536, %v1536
    %v1539 = vld [vmem:[%s10] sm:$0xff]
    %v1540 = vld [vmem:[%s10 + $0x8] sm:$0xff]
    %v1541 = vld [vmem:[%s10 + $0x10] sm:$0xff]
    %v1542 = vld [vmem:[%s10 + $0x18] sm:$0xff]
    %v1543 = vld [vmem:[%s10 + $0x20] sm:$0xff]
    %v1544 = vld [vmem:[%s10 + $0x28] sm:$0xff]
    %v1545 = vld [vmem:[%s10 + $0x30] sm:$0xff]
    %v1546 = vld [vmem:[%s10 + $0x38] sm:$0xff]
    %v1547 = vld [vmem:[%s10 + $0x40] sm:$0xff]
    %v1548 = vld [vmem:[%s10 + $0x48] sm:$0xff]
    %v1549 = vld [vmem:[%s10 + $0x50] sm:$0xff]
    %v1550 = vld [vmem:[%s10 + $0x58] sm:$0xff]
    %v1551 = vld [vmem:[%s12] sm:$0x3f]
    %v1553 = vlaneseq
    %v1554 = vshrl.u32 %v1553, 7
    %v1555 = vsub.s32 0, %v1554
    %v1556 = vrot.slane %v1551, %v1555
    %v1557 = vlaneseq
    %v1558 = vshrl.u32 %v1557, 7
    %v1559 = vsub.s32 1, %v1558
    %v1560 = vrot.slane %v1551, %v1559
    %v1561 = vlaneseq
    %v1562 = vshrl.u32 %v1561, 7
    %v1563 = vsub.s32 2, %v1562
    %v1564 = vrot.slane %v1551, %v1563
    %v1565 = vlaneseq
    %v1566 = vshrl.u32 %v1565, 7
    %v1567 = vsub.s32 3, %v1566
    %v1568 = vrot.slane %v1551, %v1567
    %v1569 = vlaneseq
    %v1570 = vshrl.u32 %v1569, 7
    %v1571 = vsub.s32 4, %v1570
    %v1572 = vrot.slane %v1551, %v1571
    %v1573 = vlaneseq
    %v1574 = vshrl.u32 %v1573, 7
    %v1575 = vsub.s32 5, %v1574
    %v1576 = vrot.slane %v1551, %v1575
    %v1595 = vunpack.c.l.b16 %v1539
    %v1596 = vunpack.c.h.b16 %v1539
    %v1597 = vunpack.c.l.b16 %v1540
    %v1598 = vunpack.c.h.b16 %v1540
    %v1599 = vunpack.c.l.b16 %v1541
    %v1600 = vunpack.c.h.b16 %v1541
    %v1601 = vunpack.c.l.b16 %v1542
    %v1602 = vunpack.c.h.b16 %v1542
    %v1603 = vunpack.c.l.b16 %v1543
    %v1604 = vunpack.c.h.b16 %v1543
    %v1605 = vunpack.c.l.b16 %v1544
    %v1606 = vunpack.c.h.b16 %v1544
    %v1607 = vunpack.c.l.b16 %v1545
    %v1608 = vunpack.c.h.b16 %v1545
    %v1609 = vunpack.c.l.b16 %v1546
    %v1610 = vunpack.c.h.b16 %v1546
    %v1611 = vunpack.c.l.b16 %v1547
    %v1612 = vunpack.c.h.b16 %v1547
    %v1613 = vunpack.c.l.b16 %v1548
    %v1614 = vunpack.c.h.b16 %v1548
    %v1615 = vunpack.c.l.b16 %v1549
    %v1616 = vunpack.c.h.b16 %v1549
    %v1617 = vunpack.c.l.b16 %v1550
    %v1618 = vunpack.c.h.b16 %v1550
    %v1619 = vpack.c.b16 %v1601, %v1595
    %v1620 = vpack.c.b16 %v1602, %v1596
    %v1621 = vpack.c.b16 %v1603, %v1597
    %v1622 = vpack.c.b16 %v1604, %v1598
    %v1623 = vpack.c.b16 %v1605, %v1599
    %v1624 = vpack.c.b16 %v1606, %v1600
    %v1625 = vpack.c.b16 %v1613, %v1607
    %v1626 = vpack.c.b16 %v1614, %v1608
    %v1627 = vpack.c.b16 %v1615, %v1609
    %v1628 = vpack.c.b16 %v1616, %v1610
    %v1629 = vpack.c.b16 %v1617, %v1611
    %v1630 = vpack.c.b16 %v1618, %v1612
    %vm1643 = vcmask 261120
    %v1645 = vsel %vm1643, %v1538, 0
    %1647 = vmatprep.subr.bf16.mxu0 %v1620
    %1648 = vmatpush1.bf16.msra.mxu0 %v1619
    %1649 = vmatprep.subr.bf16.mxu0 %v1626
    %1650 = vmatpush1.bf16.msra.mxu0 %v1625
    %1651 = vmatprep.subr.bf16.mxu0 0
    %1652 = vmatpush1.bf16.msra.mxu0 0
    %1653 = vmatprep.subr.bf16.mxu0 0
    %1654 = vmatpush1.bf16.msra.mxu0 0
    %1655 = vmatprep.subr.bf16.mxu0 0
    %1656 = vmatpush1.bf16.msra.mxu0 0
    %1657 = vmatprep.subr.bf16.mxu0 0
    %1658 = vmatpush1.bf16.msra.mxu0 0
    %1659 = vmatprep.subr.bf16.mxu0 0
    %1660 = vmatpush1.bf16.msra.mxu0 0
    %1661 = vmatprep.subr.bf16.mxu0 0
    %1662 = vmatpush1.bf16.msra.mxu0 0
    %1663 = vmatprep.subr.bf16.mxu0 0
    %1664 = vmatpush1.bf16.msra.mxu0 0
    %1665 = vmatprep.subr.bf16.mxu0 0
    %1666 = vmatpush1.bf16.msra.mxu0 0
    %1667 = vmatprep.subr.bf16.mxu0 0
    %1668 = vmatpush1.bf16.msra.mxu0 0
    %1669 = vmatprep.subr.bf16.mxu0 0
    %1670 = vmatpush1.bf16.msra.mxu0 0
    %1671 = vmatprep.subr.bf16.mxu0 0
    %1672 = vmatpush1.bf16.msra.mxu0 0
    %1673 = vmatprep.subr.bf16.mxu0 0
    %1674 = vmatpush1.bf16.msra.mxu0 0
    %1675 = vmatprep.subr.bf16.mxu0 0
    %1676 = vmatpush1.bf16.msra.mxu0 0
    %1677 = vmatprep.subr.bf16.mxu0 0
    %1678 = vmatpush1.bf16.msra.mxu0 0
    %1679 = vmatprep.mubr.bf16.mxu0 0
    %1680 = vmatmul.mubr.bf16.gmra.mrb[0].mxu0 %v1645
    %v1681 = vpop.f32.mrb[0].mxu0
    %v1682 = vadd.f32 %v1556, %v1681
    %v1683 = vpop.f32.mrb[0].mxu0
    %v1684 = vadd.f32 %v1560, %v1683
    %v1685 = vpop.f32.mrb[0].mxu0
    %v1686 = vpop.f32.mrb[0].mxu0
    %1687 = vdwg.mxu0
    %1688 = vmatprep.subr.bf16.mxu0 %v1622
    %1689 = vmatpush1.bf16.msra.mxu0 %v1621
    %1690 = vmatprep.subr.bf16.mxu0 %v1628
    %1691 = vmatpush1.bf16.msra.mxu0 %v1627
    %1692 = vmatprep.subr.bf16.mxu0 0
    %1693 = vmatpush1.bf16.msra.mxu0 0
    %1694 = vmatprep.subr.bf16.mxu0 0
    %1695 = vmatpush1.bf16.msra.mxu0 0
    %1696 = vmatprep.subr.bf16.mxu0 0
    %1697 = vmatpush1.bf16.msra.mxu0 0
    %1698 = vmatprep.subr.bf16.mxu0 0
    %1699 = vmatpush1.bf16.msra.mxu0 0
    %1700 = vmatprep.subr.bf16.mxu0 0
    %1701 = vmatpush1.bf16.msra.mxu0 0
    %1702 = vmatprep.subr.bf16.mxu0 0
    %1703 = vmatpush1.bf16.msra.mxu0 0
    %1704 = vmatprep.subr.bf16.mxu0 0
    %1705 = vmatpush1.bf16.msra.mxu0 0
    %1706 = vmatprep.subr.bf16.mxu0 0
    %1707 = vmatpush1.bf16.msra.mxu0 0
    %1708 = vmatprep.subr.bf16.mxu0 0
    %1709 = vmatpush1.bf16.msra.mxu0 0
    %1710 = vmatprep.subr.bf16.mxu0 0
    %1711 = vmatpush1.bf16.msra.mxu0 0
    %1712 = vmatprep.subr.bf16.mxu0 0
    %1713 = vmatpush1.bf16.msra.mxu0 0
    %1714 = vmatprep.subr.bf16.mxu0 0
    %1715 = vmatpush1.bf16.msra.mxu0 0
    %1716 = vmatprep.subr.bf16.mxu0 0
    %1717 = vmatpush1.bf16.msra.mxu0 0
    %1718 = vmatprep.subr.bf16.mxu0 0
    %1719 = vmatpush1.bf16.msra.mxu0 0
    %1720 = vmatprep.mubr.bf16.mxu0 0
    %1721 = vmatmul.mubr.bf16.gmra.mrb[0].mxu0 %v1645
    %v1722 = vpop.f32.mrb[0].mxu0
    %v1723 = vadd.f32 %v1564, %v1722
    %v1724 = vpop.f32.mrb[0].mxu0
    %v1725 = vadd.f32 %v1568, %v1724
    %v1726 = vpop.f32.mrb[0].mxu0
    %v1727 = vpop.f32.mrb[0].mxu0
    %1728 = vdwg.mxu0
    %1729 = vmatprep.subr.bf16.mxu0 %v1624
    %1730 = vmatpush1.bf16.msra.mxu0 %v1623
    %1731 = vmatprep.subr.bf16.mxu0 %v1630
    %1732 = vmatpush1.bf16.msra.mxu0 %v1629
    %1733 = vmatprep.subr.bf16.mxu0 0
    %1734 = vmatpush1.bf16.msra.mxu0 0
    %1735 = vmatprep.subr.bf16.mxu0 0
    %1736 = vmatpush1.bf16.msra.mxu0 0
    %1737 = vmatprep.subr.bf16.mxu0 0
    %1738 = vmatpush1.bf16.msra.mxu0 0
    %1739 = vmatprep.subr.bf16.mxu0 0
    %1740 = vmatpush1.bf16.msra.mxu0 0
    %1741 = vmatprep.subr.bf16.mxu0 0
    %1742 = vmatpush1.bf16.msra.mxu0 0
    %1743 = vmatprep.subr.bf16.mxu0 0
    %1744 = vmatpush1.bf16.msra.mxu0 0
    %1745 = vmatprep.subr.bf16.mxu0 0
    %1746 = vmatpush1.bf16.msra.mxu0 0
    %1747 = vmatprep.subr.bf16.mxu0 0
    %1748 = vmatpush1.bf16.msra.mxu0 0
    %1749 = vmatprep.subr.bf16.mxu0 0
    %1750 = vmatpush1.bf16.msra.mxu0 0
    %1751 = vmatprep.subr.bf16.mxu0 0
    %1752 = vmatpush1.bf16.msra.mxu0 0
    %1753 = vmatprep.subr.bf16.mxu0 0
    %1754 = vmatpush1.bf16.msra.mxu0 0
    %1755 = vmatprep.subr.bf16.mxu0 0
    %1756 = vmatpush1.bf16.msra.mxu0 0
    %1757 = vmatprep.subr.bf16.mxu0 0
    %1758 = vmatpush1.bf16.msra.mxu0 0
    %1759 = vmatprep.subr.bf16.mxu0 0
    %1760 = vmatpush1.bf16.msra.mxu0 0
    %1761 = vmatprep.mubr.bf16.mxu0 0
    %1762 = vmatmul.mubr.bf16.gmra.mrb[0].mxu0 %v1645
    %v1763 = vpop.f32.mrb[0].mxu0
    %v1764 = vadd.f32 %v1572, %v1763
    %v1765 = vpop.f32.mrb[0].mxu0
    %v1766 = vadd.f32 %v1576, %v1765
    %v1767 = vpop.f32.mrb[0].mxu0
    %v1768 = vpop.f32.mrb[0].mxu0
    %1769 = vdwg.mxu0
    %v1772 = vunpack.c.l.s4 1983009808
    %v1773 = vunpack.c.0.s8 %v1772
    %v1774 = vlaneseq
    %v1775 = vshrl.u32 %v1774, 7
    %v1776 = vsub.s32 %v1773, %v1775
    %v1777 = vrot.slane %v1537, %v1776
    %v1778 = vcombine.high %v1777, %v1777
    %v1781 = vpack.c.bf16 %v1777, %v1777
    %v1782 = vpack.c.bf16 %v1778, %v1778
    %v1783 = vld [vmem:[%s11] sm:$0xff]
    %v1784 = vld [vmem:[%s11 + $0x8] sm:$0xff]
    %v1785 = vld [vmem:[%s11 + $0x10] sm:$0xff]
    %v1786 = vld [vmem:[%s11 + $0x18] sm:$0xff]
    %v1787 = vld [vmem:[%s11 + $0x20] sm:$0xff]
    %v1788 = vld [vmem:[%s11 + $0x28] sm:$0xff]
    %v1789 = vld [vmem:[%s11 + $0x30] sm:$0xff]
    %v1790 = vld [vmem:[%s11 + $0x38] sm:$0xff]
    %v1791 = vld [vmem:[%s11 + $0x40] sm:$0xff]
    %v1792 = vld [vmem:[%s11 + $0x48] sm:$0xff]
    %v1793 = vld [vmem:[%s11 + $0x50] sm:$0xff]
    %v1794 = vld [vmem:[%s11 + $0x58] sm:$0xff]
    %v1795 = vld [vmem:[%s11 + $0x60] sm:$0xff]
    %v1796 = vld [vmem:[%s11 + $0x68] sm:$0xff]
    %v1797 = vld [vmem:[%s11 + $0x70] sm:$0xff]
    %v1798 = vld [vmem:[%s11 + $0x78] sm:$0xff]
    %v1799 = vld [vmem:[%s11 + $0x80] sm:$0xff]
    %v1800 = vld [vmem:[%s11 + $0x88] sm:$0xff]
    %v1801 = vld [vmem:[%s11 + $0x90] sm:$0xff]
    %v1802 = vld [vmem:[%s11 + $0x98] sm:$0xff]
    %v1803 = vld [vmem:[%s11 + $0xa0] sm:$0xff]
    %v1804 = vld [vmem:[%s11 + $0xa8] sm:$0xff]
    %v1805 = vld [vmem:[%s11 + $0xb0] sm:$0xff]
    %v1806 = vld [vmem:[%s11 + $0xb8] sm:$0xff]
    %v1807 = vld [vmem:[%s11 + $0xc0] sm:$0xff]
    %v1808 = vld [vmem:[%s11 + $0xc8] sm:$0xff]
    %v1809 = vld [vmem:[%s11 + $0xd0] sm:$0xff]
    %v1810 = vld [vmem:[%s11 + $0xd8] sm:$0xff]
    %v1811 = vld [vmem:[%s11 + $0xe0] sm:$0xff]
    %v1812 = vld [vmem:[%s11 + $0xe8] sm:$0xff]
    %v1813 = vld [vmem:[%s11 + $0xf0] sm:$0xff]
    %v1814 = vld [vmem:[%s11 + $0xf8] sm:$0xff]
    %v1815 = vld [vmem:[%s11 + $0x100] sm:$0xff]
    %v1816 = vld [vmem:[%s11 + $0x108] sm:$0xff]
    %v1817 = vld [vmem:[%s11 + $0x110] sm:$0xff]
    %v1818 = vld [vmem:[%s11 + $0x118] sm:$0xff]
    %v1819 = vld [vmem:[%s11 + $0x120] sm:$0xff]
    %v1820 = vld [vmem:[%s11 + $0x128] sm:$0xff]
    %v1821 = vld [vmem:[%s11 + $0x130] sm:$0xff]
    %v1822 = vld [vmem:[%s11 + $0x138] sm:$0xff]
    %v1823 = vld [vmem:[%s11 + $0x140] sm:$0xff]
    %v1824 = vld [vmem:[%s11 + $0x148] sm:$0xff]
    %v1825 = vld [vmem:[%s11 + $0x150] sm:$0xff]
    %v1826 = vld [vmem:[%s11 + $0x158] sm:$0xff]
    %v1827 = vld [vmem:[%s11 + $0x160] sm:$0xff]
    %v1828 = vld [vmem:[%s11 + $0x168] sm:$0xff]
    %v1829 = vld [vmem:[%s11 + $0x170] sm:$0xff]
    %v1830 = vld [vmem:[%s11 + $0x178] sm:$0xff]
    %v1831 = vld [vmem:[%s11 + $0x180] sm:$0xff]
    %v1832 = vld [vmem:[%s11 + $0x188] sm:$0xff]
    %v1833 = vld [vmem:[%s11 + $0x190] sm:$0xff]
    %v1834 = vld [vmem:[%s11 + $0x198] sm:$0xff]
    %v1835 = vld [vmem:[%s11 + $0x1a0] sm:$0xff]
    %v1836 = vld [vmem:[%s11 + $0x1a8] sm:$0xff]
    %v1837 = vld [vmem:[%s11 + $0x1b0] sm:$0xff]
    %v1838 = vld [vmem:[%s11 + $0x1b8] sm:$0xff]
    %v1839 = vld [vmem:[%s11 + $0x1c0] sm:$0xff]
    %v1840 = vld [vmem:[%s11 + $0x1c8] sm:$0xff]
    %v1841 = vld [vmem:[%s11 + $0x1d0] sm:$0xff]
    %v1842 = vld [vmem:[%s11 + $0x1d8] sm:$0xff]
    %v1843 = vld [vmem:[%s11 + $0x1e0] sm:$0xff]
    %v1844 = vld [vmem:[%s11 + $0x1e8] sm:$0xff]
    %v1845 = vld [vmem:[%s11 + $0x1f0] sm:$0xff]
    %v1846 = vld [vmem:[%s11 + $0x1f8] sm:$0xff]
    %v1847 = vld [vmem:[%s11 + $0x200] sm:$0xff]
    %v1848 = vld [vmem:[%s11 + $0x208] sm:$0xff]
    %v1849 = vld [vmem:[%s11 + $0x210] sm:$0xff]
    %v1850 = vld [vmem:[%s11 + $0x218] sm:$0xff]
    %v1851 = vld [vmem:[%s11 + $0x220] sm:$0xff]
    %v1852 = vld [vmem:[%s11 + $0x228] sm:$0xff]
    %v1853 = vld [vmem:[%s11 + $0x230] sm:$0xff]
    %v1854 = vld [vmem:[%s11 + $0x238] sm:$0xff]
    %v1855 = vld [vmem:[%s11 + $0x240] sm:$0xff]
    %v1856 = vld [vmem:[%s11 + $0x248] sm:$0xff]
    %v1857 = vld [vmem:[%s11 + $0x250] sm:$0xff]
    %v1858 = vld [vmem:[%s11 + $0x258] sm:$0xff]
    %v1859 = vld [vmem:[%s11 + $0x260] sm:$0xff]
    %v1860 = vld [vmem:[%s11 + $0x268] sm:$0xff]
    %v1861 = vld [vmem:[%s11 + $0x270] sm:$0xff]
    %v1862 = vld [vmem:[%s11 + $0x278] sm:$0xff]
    %v1863 = vld [vmem:[%s11 + $0x280] sm:$0xff]
    %v1864 = vld [vmem:[%s11 + $0x288] sm:$0xff]
    %v1865 = vld [vmem:[%s11 + $0x290] sm:$0xff]
    %v1866 = vld [vmem:[%s11 + $0x298] sm:$0xff]
    %v1867 = vld [vmem:[%s11 + $0x2a0] sm:$0xff]
    %v1868 = vld [vmem:[%s11 + $0x2a8] sm:$0xff]
    %v1869 = vld [vmem:[%s11 + $0x2b0] sm:$0xff]
    %v1870 = vld [vmem:[%s11 + $0x2b8] sm:$0xff]
    %v1871 = vld [vmem:[%s11 + $0x2c0] sm:$0xff]
    %v1872 = vld [vmem:[%s11 + $0x2c8] sm:$0xff]
    %v1873 = vld [vmem:[%s11 + $0x2d0] sm:$0xff]
    %v1874 = vld [vmem:[%s11 + $0x2d8] sm:$0xff]
    %v1875 = vld [vmem:[%s11 + $0x2e0] sm:$0xff]
    %v1876 = vld [vmem:[%s11 + $0x2e8] sm:$0xff]
    %v1877 = vld [vmem:[%s11 + $0x2f0] sm:$0xff]
    %v1878 = vld [vmem:[%s11 + $0x2f8] sm:$0xff]
    %v1879 = vld [vmem:[%s13] sm:$0x3f]
    %v1881 = vlaneseq
    %v1882 = vshrl.u32 %v1881, 7
    %v1883 = vsub.s32 0, %v1882
    %v1884 = vrot.slane %v1879, %v1883
    %v1885 = vlaneseq
    %v1886 = vshrl.u32 %v1885, 7
    %v1887 = vsub.s32 1, %v1886
    %v1888 = vrot.slane %v1879, %v1887
    %v1889 = vlaneseq
    %v1890 = vshrl.u32 %v1889, 7
    %v1891 = vsub.s32 2, %v1890
    %v1892 = vrot.slane %v1879, %v1891
    %v1893 = vlaneseq
    %v1894 = vshrl.u32 %v1893, 7
    %v1895 = vsub.s32 3, %v1894
    %v1896 = vrot.slane %v1879, %v1895
    %v1897 = vlaneseq
    %v1898 = vshrl.u32 %v1897, 7
    %v1899 = vsub.s32 4, %v1898
    %v1900 = vrot.slane %v1879, %v1899
    %v1901 = vlaneseq
    %v1902 = vshrl.u32 %v1901, 7
    %v1903 = vsub.s32 5, %v1902
    %v1904 = vrot.slane %v1879, %v1903
    %v2007 = vunpack.c.l.b16 %v1783
    %v2008 = vunpack.c.h.b16 %v1783
    %v2009 = vunpack.c.l.b16 %v1784
    %v2010 = vunpack.c.h.b16 %v1784
    %v2011 = vunpack.c.l.b16 %v1785
    %v2012 = vunpack.c.h.b16 %v1785
    %v2013 = vunpack.c.l.b16 %v1786
    %v2014 = vunpack.c.h.b16 %v1786
    %v2015 = vunpack.c.l.b16 %v1787
    %v2016 = vunpack.c.h.b16 %v1787
    %v2017 = vunpack.c.l.b16 %v1788
    %v2018 = vunpack.c.h.b16 %v1788
    %v2019 = vunpack.c.l.b16 %v1789
    %v2020 = vunpack.c.h.b16 %v1789
    %v2021 = vunpack.c.l.b16 %v1790
    %v2022 = vunpack.c.h.b16 %v1790
    %v2023 = vunpack.c.l.b16 %v1791
    %v2024 = vunpack.c.h.b16 %v1791
    %v2025 = vunpack.c.l.b16 %v1792
    %v2026 = vunpack.c.h.b16 %v1792
    %v2027 = vunpack.c.l.b16 %v1793
    %v2028 = vunpack.c.h.b16 %v1793
    %v2029 = vunpack.c.l.b16 %v1794
    %v2030 = vunpack.c.h.b16 %v1794
    %v2031 = vunpack.c.l.b16 %v1795
    %v2032 = vunpack.c.h.b16 %v1795
    %v2033 = vunpack.c.l.b16 %v1796
    %v2034 = vunpack.c.h.b16 %v1796
    %v2035 = vunpack.c.l.b16 %v1797
    %v2036 = vunpack.c.h.b16 %v1797
    %v2037 = vunpack.c.l.b16 %v1798
    %v2038 = vunpack.c.h.b16 %v1798
    %v2039 = vunpack.c.l.b16 %v1799
    %v2040 = vunpack.c.h.b16 %v1799
    %v2041 = vunpack.c.l.b16 %v1800
    %v2042 = vunpack.c.h.b16 %v1800
    %v2043 = vunpack.c.l.b16 %v1801
    %v2044 = vunpack.c.h.b16 %v1801
    %v2045 = vunpack.c.l.b16 %v1802
    %v2046 = vunpack.c.h.b16 %v1802
    %v2047 = vunpack.c.l.b16 %v1803
    %v2048 = vunpack.c.h.b16 %v1803
    %v2049 = vunpack.c.l.b16 %v1804
    %v2050 = vunpack.c.h.b16 %v1804
    %v2051 = vunpack.c.l.b16 %v1805
    %v2052 = vunpack.c.h.b16 %v1805
    %v2053 = vunpack.c.l.b16 %v1806
    %v2054 = vunpack.c.h.b16 %v1806
    %v2055 = vunpack.c.l.b16 %v1807
    %v2056 = vunpack.c.h.b16 %v1807
    %v2057 = vunpack.c.l.b16 %v1808
    %v2058 = vunpack.c.h.b16 %v1808
    %v2059 = vunpack.c.l.b16 %v1809
    %v2060 = vunpack.c.h.b16 %v1809
    %v2061 = vunpack.c.l.b16 %v1810
    %v2062 = vunpack.c.h.b16 %v1810
    %v2063 = vunpack.c.l.b16 %v1811
    %v2064 = vunpack.c.h.b16 %v1811
    %v2065 = vunpack.c.l.b16 %v1812
    %v2066 = vunpack.c.h.b16 %v1812
    %v2067 = vunpack.c.l.b16 %v1813
    %v2068 = vunpack.c.h.b16 %v1813
    %v2069 = vunpack.c.l.b16 %v1814
    %v2070 = vunpack.c.h.b16 %v1814
    %v2071 = vunpack.c.l.b16 %v1815
    %v2072 = vunpack.c.h.b16 %v1815
    %v2073 = vunpack.c.l.b16 %v1816
    %v2074 = vunpack.c.h.b16 %v1816
    %v2075 = vunpack.c.l.b16 %v1817
    %v2076 = vunpack.c.h.b16 %v1817
    %v2077 = vunpack.c.l.b16 %v1818
    %v2078 = vunpack.c.h.b16 %v1818
    %v2079 = vunpack.c.l.b16 %v1819
    %v2080 = vunpack.c.h.b16 %v1819
    %v2081 = vunpack.c.l.b16 %v1820
    %v2082 = vunpack.c.h.b16 %v1820
    %v2083 = vunpack.c.l.b16 %v1821
    %v2084 = vunpack.c.h.b16 %v1821
    %v2085 = vunpack.c.l.b16 %v1822
    %v2086 = vunpack.c.h.b16 %v1822
    %v2087 = vunpack.c.l.b16 %v1823
    %v2088 = vunpack.c.h.b16 %v1823
    %v2089 = vunpack.c.l.b16 %v1824
    %v2090 = vunpack.c.h.b16 %v1824
    %v2091 = vunpack.c.l.b16 %v1825
    %v2092 = vunpack.c.h.b16 %v1825
    %v2093 = vunpack.c.l.b16 %v1826
    %v2094 = vunpack.c.h.b16 %v1826
    %v2095 = vunpack.c.l.b16 %v1827
    %v2096 = vunpack.c.h.b16 %v1827
    %v2097 = vunpack.c.l.b16 %v1828
    %v2098 = vunpack.c.h.b16 %v1828
    %v2099 = vunpack.c.l.b16 %v1829
    %v2100 = vunpack.c.h.b16 %v1829
    %v2101 = vunpack.c.l.b16 %v1830
    %v2102 = vunpack.c.h.b16 %v1830
    %v2103 = vunpack.c.l.b16 %v1831
    %v2104 = vunpack.c.h.b16 %v1831
    %v2105 = vunpack.c.l.b16 %v1832
    %v2106 = vunpack.c.h.b16 %v1832
    %v2107 = vunpack.c.l.b16 %v1833
    %v2108 = vunpack.c.h.b16 %v1833
    %v2109 = vunpack.c.l.b16 %v1834
    %v2110 = vunpack.c.h.b16 %v1834
    %v2111 = vunpack.c.l.b16 %v1835
    %v2112 = vunpack.c.h.b16 %v1835
    %v2113 = vunpack.c.l.b16 %v1836
    %v2114 = vunpack.c.h.b16 %v1836
    %v2115 = vunpack.c.l.b16 %v1837
    %v2116 = vunpack.c.h.b16 %v1837
    %v2117 = vunpack.c.l.b16 %v1838
    %v2118 = vunpack.c.h.b16 %v1838
    %v2119 = vunpack.c.l.b16 %v1839
    %v2120 = vunpack.c.h.b16 %v1839
    %v2121 = vunpack.c.l.b16 %v1840
    %v2122 = vunpack.c.h.b16 %v1840
    %v2123 = vunpack.c.l.b16 %v1841
    %v2124 = vunpack.c.h.b16 %v1841
    %v2125 = vunpack.c.l.b16 %v1842
    %v2126 = vunpack.c.h.b16 %v1842
    %v2127 = vunpack.c.l.b16 %v1843
    %v2128 = vunpack.c.h.b16 %v1843
    %v2129 = vunpack.c.l.b16 %v1844
    %v2130 = vunpack.c.h.b16 %v1844
    %v2131 = vunpack.c.l.b16 %v1845
    %v2132 = vunpack.c.h.b16 %v1845
    %v2133 = vunpack.c.l.b16 %v1846
    %v2134 = vunpack.c.h.b16 %v1846
    %v2135 = vunpack.c.l.b16 %v1847
    %v2136 = vunpack.c.h.b16 %v1847
    %v2137 = vunpack.c.l.b16 %v1848
    %v2138 = vunpack.c.h.b16 %v1848
    %v2139 = vunpack.c.l.b16 %v1849
    %v2140 = vunpack.c.h.b16 %v1849
    %v2141 = vunpack.c.l.b16 %v1850
    %v2142 = vunpack.c.h.b16 %v1850
    %v2143 = vunpack.c.l.b16 %v1851
    %v2144 = vunpack.c.h.b16 %v1851
    %v2145 = vunpack.c.l.b16 %v1852
    %v2146 = vunpack.c.h.b16 %v1852
    %v2147 = vunpack.c.l.b16 %v1853
    %v2148 = vunpack.c.h.b16 %v1853
    %v2149 = vunpack.c.l.b16 %v1854
    %v2150 = vunpack.c.h.b16 %v1854
    %v2151 = vunpack.c.l.b16 %v1855
    %v2152 = vunpack.c.h.b16 %v1855
    %v2153 = vunpack.c.l.b16 %v1856
    %v2154 = vunpack.c.h.b16 %v1856
    %v2155 = vunpack.c.l.b16 %v1857
    %v2156 = vunpack.c.h.b16 %v1857
    %v2157 = vunpack.c.l.b16 %v1858
    %v2158 = vunpack.c.h.b16 %v1858
    %v2159 = vunpack.c.l.b16 %v1859
    %v2160 = vunpack.c.h.b16 %v1859
    %v2161 = vunpack.c.l.b16 %v1860
    %v2162 = vunpack.c.h.b16 %v1860
    %v2163 = vunpack.c.l.b16 %v1861
    %v2164 = vunpack.c.h.b16 %v1861
    %v2165 = vunpack.c.l.b16 %v1862
    %v2166 = vunpack.c.h.b16 %v1862
    %v2167 = vunpack.c.l.b16 %v1863
    %v2168 = vunpack.c.h.b16 %v1863
    %v2169 = vunpack.c.l.b16 %v1864
    %v2170 = vunpack.c.h.b16 %v1864
    %v2171 = vunpack.c.l.b16 %v1865
    %v2172 = vunpack.c.h.b16 %v1865
    %v2173 = vunpack.c.l.b16 %v1866
    %v2174 = vunpack.c.h.b16 %v1866
    %v2175 = vunpack.c.l.b16 %v1867
    %v2176 = vunpack.c.h.b16 %v1867
    %v2177 = vunpack.c.l.b16 %v1868
    %v2178 = vunpack.c.h.b16 %v1868
    %v2179 = vunpack.c.l.b16 %v1869
    %v2180 = vunpack.c.h.b16 %v1869
    %v2181 = vunpack.c.l.b16 %v1870
    %v2182 = vunpack.c.h.b16 %v1870
    %v2183 = vunpack.c.l.b16 %v1871
    %v2184 = vunpack.c.h.b16 %v1871
    %v2185 = vunpack.c.l.b16 %v1872
    %v2186 = vunpack.c.h.b16 %v1872
    %v2187 = vunpack.c.l.b16 %v1873
    %v2188 = vunpack.c.h.b16 %v1873
    %v2189 = vunpack.c.l.b16 %v1874
    %v2190 = vunpack.c.h.b16 %v1874
    %v2191 = vunpack.c.l.b16 %v1875
    %v2192 = vunpack.c.h.b16 %v1875
    %v2193 = vunpack.c.l.b16 %v1876
    %v2194 = vunpack.c.h.b16 %v1876
    %v2195 = vunpack.c.l.b16 %v1877
    %v2196 = vunpack.c.h.b16 %v1877
    %v2197 = vunpack.c.l.b16 %v1878
    %v2198 = vunpack.c.h.b16 %v1878
    %v2199 = vpack.c.b16 %v2013, %v2007
    %v2200 = vpack.c.b16 %v2014, %v2008
    %v2201 = vpack.c.b16 %v2015, %v2009
    %v2202 = vpack.c.b16 %v2016, %v2010
    %v2203 = vpack.c.b16 %v2017, %v2011
    %v2204 = vpack.c.b16 %v2018, %v2012
    %v2205 = vpack.c.b16 %v2025, %v2019
    %v2206 = vpack.c.b16 %v2026, %v2020
    %v2207 = vpack.c.b16 %v2027, %v2021
    %v2208 = vpack.c.b16 %v2028, %v2022
    %v2209 = vpack.c.b16 %v2029, %v2023
    %v2210 = vpack.c.b16 %v2030, %v2024
    %v2211 = vpack.c.b16 %v2037, %v2031
    %v2212 = vpack.c.b16 %v2038, %v2032
    %v2213 = vpack.c.b16 %v2039, %v2033
    %v2214 = vpack.c.b16 %v2040, %v2034
    %v2215 = vpack.c.b16 %v2041, %v2035
    %v2216 = vpack.c.b16 %v2042, %v2036
    %v2217 = vpack.c.b16 %v2049, %v2043
    %v2218 = vpack.c.b16 %v2050, %v2044
    %v2219 = vpack.c.b16 %v2051, %v2045
    %v2220 = vpack.c.b16 %v2052, %v2046
    %v2221 = vpack.c.b16 %v2053, %v2047
    %v2222 = vpack.c.b16 %v2054, %v2048
    %v2223 = vpack.c.b16 %v2061, %v2055
    %v2224 = vpack.c.b16 %v2062, %v2056
    %v2225 = vpack.c.b16 %v2063, %v2057
    %v2226 = vpack.c.b16 %v2064, %v2058
    %v2227 = vpack.c.b16 %v2065, %v2059
    %v2228 = vpack.c.b16 %v2066, %v2060
    %v2229 = vpack.c.b16 %v2073, %v2067
    %v2230 = vpack.c.b16 %v2074, %v2068
    %v2231 = vpack.c.b16 %v2075, %v2069
    %v2232 = vpack.c.b16 %v2076, %v2070
    %v2233 = vpack.c.b16 %v2077, %v2071
    %v2234 = vpack.c.b16 %v2078, %v2072
    %v2235 = vpack.c.b16 %v2085, %v2079
    %v2236 = vpack.c.b16 %v2086, %v2080
    %v2237 = vpack.c.b16 %v2087, %v2081
    %v2238 = vpack.c.b16 %v2088, %v2082
    %v2239 = vpack.c.b16 %v2089, %v2083
    %v2240 = vpack.c.b16 %v2090, %v2084
    %v2241 = vpack.c.b16 %v2097, %v2091
    %v2242 = vpack.c.b16 %v2098, %v2092
    %v2243 = vpack.c.b16 %v2099, %v2093
    %v2244 = vpack.c.b16 %v2100, %v2094
    %v2245 = vpack.c.b16 %v2101, %v2095
    %v2246 = vpack.c.b16 %v2102, %v2096
    %v2247 = vpack.c.b16 %v2109, %v2103
    %v2248 = vpack.c.b16 %v2110, %v2104
    %v2249 = vpack.c.b16 %v2111, %v2105
    %v2250 = vpack.c.b16 %v2112, %v2106
    %v2251 = vpack.c.b16 %v2113, %v2107
    %v2252 = vpack.c.b16 %v2114, %v2108
    %v2253 = vpack.c.b16 %v2121, %v2115
    %v2254 = vpack.c.b16 %v2122, %v2116
    %v2255 = vpack.c.b16 %v2123, %v2117
    %v2256 = vpack.c.b16 %v2124, %v2118
    %v2257 = vpack.c.b16 %v2125, %v2119
    %v2258 = vpack.c.b16 %v2126, %v2120
    %v2259 = vpack.c.b16 %v2133, %v2127
    %v2260 = vpack.c.b16 %v2134, %v2128
    %v2261 = vpack.c.b16 %v2135, %v2129
    %v2262 = vpack.c.b16 %v2136, %v2130
    %v2263 = vpack.c.b16 %v2137, %v2131
    %v2264 = vpack.c.b16 %v2138, %v2132
    %v2265 = vpack.c.b16 %v2145, %v2139
    %v2266 = vpack.c.b16 %v2146, %v2140
    %v2267 = vpack.c.b16 %v2147, %v2141
    %v2268 = vpack.c.b16 %v2148, %v2142
    %v2269 = vpack.c.b16 %v2149, %v2143
    %v2270 = vpack.c.b16 %v2150, %v2144
    %v2271 = vpack.c.b16 %v2157, %v2151
    %v2272 = vpack.c.b16 %v2158, %v2152
    %v2273 = vpack.c.b16 %v2159, %v2153
    %v2274 = vpack.c.b16 %v2160, %v2154
    %v2275 = vpack.c.b16 %v2161, %v2155
    %v2276 = vpack.c.b16 %v2162, %v2156
    %v2277 = vpack.c.b16 %v2169, %v2163
    %v2278 = vpack.c.b16 %v2170, %v2164
    %v2279 = vpack.c.b16 %v2171, %v2165
    %v2280 = vpack.c.b16 %v2172, %v2166
    %v2281 = vpack.c.b16 %v2173, %v2167
    %v2282 = vpack.c.b16 %v2174, %v2168
    %v2283 = vpack.c.b16 %v2181, %v2175
    %v2284 = vpack.c.b16 %v2182, %v2176
    %v2285 = vpack.c.b16 %v2183, %v2177
    %v2286 = vpack.c.b16 %v2184, %v2178
    %v2287 = vpack.c.b16 %v2185, %v2179
    %v2288 = vpack.c.b16 %v2186, %v2180
    %v2289 = vpack.c.b16 %v2193, %v2187
    %v2290 = vpack.c.b16 %v2194, %v2188
    %v2291 = vpack.c.b16 %v2195, %v2189
    %v2292 = vpack.c.b16 %v2196, %v2190
    %v2293 = vpack.c.b16 %v2197, %v2191
    %v2294 = vpack.c.b16 %v2198, %v2192
    %2391 = vmatprep.subr.bf16.mxu0 %v2200
    %2392 = vmatpush1.bf16.msra.mxu0 %v2199
    %2393 = vmatprep.subr.bf16.mxu0 %v2206
    %2394 = vmatpush1.bf16.msra.mxu0 %v2205
    %2395 = vmatprep.subr.bf16.mxu0 %v2212
    %2396 = vmatpush1.bf16.msra.mxu0 %v2211
    %2397 = vmatprep.subr.bf16.mxu0 %v2218
    %2398 = vmatpush1.bf16.msra.mxu0 %v2217
    %2399 = vmatprep.subr.bf16.mxu0 %v2224
    %2400 = vmatpush1.bf16.msra.mxu0 %v2223
    %2401 = vmatprep.subr.bf16.mxu0 %v2230
    %2402 = vmatpush1.bf16.msra.mxu0 %v2229
    %2403 = vmatprep.subr.bf16.mxu0 %v2236
    %2404 = vmatpush1.bf16.msra.mxu0 %v2235
    %2405 = vmatprep.subr.bf16.mxu0 %v2242
    %2406 = vmatpush1.bf16.msra.mxu0 %v2241
    %2407 = vmatprep.subr.bf16.mxu0 %v2248
    %2408 = vmatpush1.bf16.msra.mxu0 %v2247
    %2409 = vmatprep.subr.bf16.mxu0 %v2254
    %2410 = vmatpush1.bf16.msra.mxu0 %v2253
    %2411 = vmatprep.subr.bf16.mxu0 %v2260
    %2412 = vmatpush1.bf16.msra.mxu0 %v2259
    %2413 = vmatprep.subr.bf16.mxu0 %v2266
    %2414 = vmatpush1.bf16.msra.mxu0 %v2265
    %2415 = vmatprep.subr.bf16.mxu0 %v2272
    %2416 = vmatpush1.bf16.msra.mxu0 %v2271
    %2417 = vmatprep.subr.bf16.mxu0 %v2278
    %2418 = vmatpush1.bf16.msra.mxu0 %v2277
    %2419 = vmatprep.subr.bf16.mxu0 %v2284
    %2420 = vmatpush1.bf16.msra.mxu0 %v2283
    %2421 = vmatprep.subr.bf16.mxu0 %v2290
    %2422 = vmatpush1.bf16.msra.mxu0 %v2289
    %2423 = vmatprep.mubr.bf16.mxu0 %v1782
    %2424 = vmatmul.mubr.bf16.gmra.mrb[0].mxu0 %v1781
    %v2425 = vpop.f32.mrb[0].mxu0
    %v2426 = vadd.f32 %v1884, %v2425
    %v2427 = vpop.f32.mrb[0].mxu0
    %v2428 = vadd.f32 %v1888, %v2427
    %v2429 = vpop.f32.mrb[0].mxu0
    %v2430 = vpop.f32.mrb[0].mxu0
    %2431 = vdwg.mxu0
    %2432 = vmatprep.subr.bf16.mxu0 %v2202
    %2433 = vmatpush1.bf16.msra.mxu0 %v2201
    %2434 = vmatprep.subr.bf16.mxu0 %v2208
    %2435 = vmatpush1.bf16.msra.mxu0 %v2207
    %2436 = vmatprep.subr.bf16.mxu0 %v2214
    %2437 = vmatpush1.bf16.msra.mxu0 %v2213
    %2438 = vmatprep.subr.bf16.mxu0 %v2220
    %2439 = vmatpush1.bf16.msra.mxu0 %v2219
    %2440 = vmatprep.subr.bf16.mxu0 %v2226
    %2441 = vmatpush1.bf16.msra.mxu0 %v2225
    %2442 = vmatprep.subr.bf16.mxu0 %v2232
    %2443 = vmatpush1.bf16.msra.mxu0 %v2231
    %2444 = vmatprep.subr.bf16.mxu0 %v2238
    %2445 = vmatpush1.bf16.msra.mxu0 %v2237
    %2446 = vmatprep.subr.bf16.mxu0 %v2244
    %2447 = vmatpush1.bf16.msra.mxu0 %v2243
    %2448 = vmatprep.subr.bf16.mxu0 %v2250
    %2449 = vmatpush1.bf16.msra.mxu0 %v2249
    %2450 = vmatprep.subr.bf16.mxu0 %v2256
    %2451 = vmatpush1.bf16.msra.mxu0 %v2255
    %2452 = vmatprep.subr.bf16.mxu0 %v2262
    %2453 = vmatpush1.bf16.msra.mxu0 %v2261
    %2454 = vmatprep.subr.bf16.mxu0 %v2268
    %2455 = vmatpush1.bf16.msra.mxu0 %v2267
    %2456 = vmatprep.subr.bf16.mxu0 %v2274
    %2457 = vmatpush1.bf16.msra.mxu0 %v2273
    %2458 = vmatprep.subr.bf16.mxu0 %v2280
    %2459 = vmatpush1.bf16.msra.mxu0 %v2279
    %2460 = vmatprep.subr.bf16.mxu0 %v2286
    %2461 = vmatpush1.bf16.msra.mxu0 %v2285
    %2462 = vmatprep.subr.bf16.mxu0 %v2292
    %2463 = vmatpush1.bf16.msra.mxu0 %v2291
    %2464 = vmatprep.mubr.bf16.mxu0 %v1782
    %2465 = vmatmul.mubr.bf16.gmra.mrb[0].mxu0 %v1781
    %v2466 = vpop.f32.mrb[0].mxu0
    %v2467 = vadd.f32 %v1892, %v2466
    %v2468 = vpop.f32.mrb[0].mxu0
    %v2469 = vadd.f32 %v1896, %v2468
    %v2470 = vpop.f32.mrb[0].mxu0
    %v2471 = vpop.f32.mrb[0].mxu0
    %2472 = vdwg.mxu0
    %2473 = vmatprep.subr.bf16.mxu0 %v2204
    %2474 = vmatpush1.bf16.msra.mxu0 %v2203
    %2475 = vmatprep.subr.bf16.mxu0 %v2210
    %2476 = vmatpush1.bf16.msra.mxu0 %v2209
    %2477 = vmatprep.subr.bf16.mxu0 %v2216
    %2478 = vmatpush1.bf16.msra.mxu0 %v2215
    %2479 = vmatprep.subr.bf16.mxu0 %v2222
    %2480 = vmatpush1.bf16.msra.mxu0 %v2221
    %2481 = vmatprep.subr.bf16.mxu0 %v2228
    %2482 = vmatpush1.bf16.msra.mxu0 %v2227
    %2483 = vmatprep.subr.bf16.mxu0 %v2234
    %2484 = vmatpush1.bf16.msra.mxu0 %v2233
    %2485 = vmatprep.subr.bf16.mxu0 %v2240
    %2486 = vmatpush1.bf16.msra.mxu0 %v2239
    %2487 = vmatprep.subr.bf16.mxu0 %v2246
    %2488 = vmatpush1.bf16.msra.mxu0 %v2245
    %2489 = vmatprep.subr.bf16.mxu0 %v2252
    %2490 = vmatpush1.bf16.msra.mxu0 %v2251
    %2491 = vmatprep.subr.bf16.mxu0 %v2258
    %2492 = vmatpush1.bf16.msra.mxu0 %v2257
    %2493 = vmatprep.subr.bf16.mxu0 %v2264
    %2494 = vmatpush1.bf16.msra.mxu0 %v2263
    %2495 = vmatprep.subr.bf16.mxu0 %v2270
    %2496 = vmatpush1.bf16.msra.mxu0 %v2269
    %2497 = vmatprep.subr.bf16.mxu0 %v2276
    %2498 = vmatpush1.bf16.msra.mxu0 %v2275
    %2499 = vmatprep.subr.bf16.mxu0 %v2282
    %2500 = vmatpush1.bf16.msra.mxu0 %v2281
    %2501 = vmatprep.subr.bf16.mxu0 %v2288
    %2502 = vmatpush1.bf16.msra.mxu0 %v2287
    %2503 = vmatprep.subr.bf16.mxu0 %v2294
    %2504 = vmatpush1.bf16.msra.mxu0 %v2293
    %2505 = vmatprep.mubr.bf16.mxu0 %v1782
    %2506 = vmatmul.mubr.bf16.gmra.mrb[0].mxu0 %v1781
    %v2507 = vpop.f32.mrb[0].mxu0
    %v2508 = vadd.f32 %v1900, %v2507
    %v2509 = vpop.f32.mrb[0].mxu0
    %v2510 = vadd.f32 %v1904, %v2509
    %v2511 = vpop.f32.mrb[0].mxu0
    %v2512 = vpop.f32.mrb[0].mxu0
    %2513 = vdwg.mxu0
    %v2514 = vadd.f32 %v1682, %v2426
    %v2515 = vadd.f32 %v1684, %v2428
    %v2516 = vxor.u32 %v2514, 2147483648
    %v2517 = vxor.u32 %v2515, 2147483648
    %v2518 = vmul.f32 %v2516, 1.442695
    %v2519 = vpow.pop %v2518
    %v2520 = vmul.f32 %v2517, 1.442695
    %v2521 = vpow.pop %v2520
    %v2522 = vadd.f32 %v2519, 1.0
    %v2523 = vadd.f32 %v2521, 1.0
    %v2524 = vrcp.pop %v2522
    %v2525 = vmul.f32 1.0, %v2524
    %v2526 = vrcp.pop %v2523
    %v2527 = vmul.f32 1.0, %v2526
    %v2528 = vadd.f32 %v1723, %v2467
    %v2529 = vadd.f32 %v1725, %v2469
    %v2530 = vxor.u32 %v2528, 2147483648
    %v2531 = vxor.u32 %v2529, 2147483648
    %v2532 = vmul.f32 %v2530, 1.442695
    %v2533 = vpow.pop %v2532
    %v2534 = vmul.f32 %v2531, 1.442695
    %v2535 = vpow.pop %v2534
    %v2536 = vadd.f32 %v2533, 1.0
    %v2537 = vadd.f32 %v2535, 1.0
    %v2538 = vrcp.pop %v2536
    %v2539 = vmul.f32 1.0, %v2538
    %v2540 = vrcp.pop %v2537
    %v2541 = vmul.f32 1.0, %v2540
    %v2542 = vmul.f32 %v2525, %v2508
    %v2543 = vmul.f32 %v2527, %v2510
    %v2544 = vadd.f32 %v1764, %v2542
    %v2545 = vadd.f32 %v1766, %v2543
    %v2546 = vtanh.pop %v2544
    %v2547 = vtanh.pop %v2545
    %v2548 = vsub.f32 1.0, %v2539
    %v2549 = vsub.f32 1.0, %v2541
    %v2550 = vmul.f32 %v2548, %v2546
    %v2551 = vmul.f32 %v2549, %v2547
    %v2552 = vmul.f32 %v2539, %v1777
    %v2553 = vmul.f32 %v2541, %v1778
    %v2554 = vadd.f32 %v2550, %v2552
    %v2555 = vadd.f32 %v2551, %v2553
    %v2558 = vcombine.low %v2554, %v2555
    %v2560 = vunpack.c.l.s4 1983009808
    %v2561 = vunpack.c.0.s8 %v2560
    %v2562 = vlaneseq
    %v2563 = vshrl.u32 %v2562, 7
    %v2564 = vsub.s32 %v2561, %v2563
    %v2565 = vrot.slane %v2558, %v2564
    %2567 = vst [vmem:[#allocation4] sm:$0xf] %v2565
    %v2568 = vpack.c.bf16 %v2554, %v2554
    %v2569 = vpack.c.bf16 %v2555, %v2555
    %v2570 = vld [vmem:[%s14] sm:$0xf]
    %v2571 = vld [vmem:[%s14 + $0x4] sm:$0xf]
    %v2572 = vld [vmem:[%s14 + $0x8] sm:$0xf]
    %v2573 = vld [vmem:[%s14 + $0xc] sm:$0xf]
    %v2574 = vld [vmem:[%s14 + $0x10] sm:$0xf]
    %v2575 = vld [vmem:[%s14 + $0x14] sm:$0xf]
    %v2576 = vld [vmem:[%s14 + $0x18] sm:$0xf]
    %v2577 = vld [vmem:[%s14 + $0x1c] sm:$0xf]
    %v2578 = vld [vmem:[%s14 + $0x20] sm:$0xf]
    %v2579 = vld [vmem:[%s14 + $0x24] sm:$0xf]
    %v2580 = vld [vmem:[%s14 + $0x28] sm:$0xf]
    %v2581 = vld [vmem:[%s14 + $0x2c] sm:$0xf]
    %v2582 = vld [vmem:[%s14 + $0x30] sm:$0xf]
    %v2583 = vld [vmem:[%s14 + $0x34] sm:$0xf]
    %v2584 = vld [vmem:[%s14 + $0x38] sm:$0xf]
    %v2585 = vld [vmem:[%s14 + $0x3c] sm:$0xf]
    %v2586 = vld [vmem:[%s14 + $0x40] sm:$0xf]
    %v2587 = vld [vmem:[%s14 + $0x44] sm:$0xf]
    %v2588 = vld [vmem:[%s14 + $0x48] sm:$0xf]
    %v2589 = vld [vmem:[%s14 + $0x4c] sm:$0xf]
    %v2590 = vld [vmem:[%s14 + $0x50] sm:$0xf]
    %v2591 = vld [vmem:[%s14 + $0x54] sm:$0xf]
    %v2592 = vld [vmem:[%s14 + $0x58] sm:$0xf]
    %v2593 = vld [vmem:[%s14 + $0x5c] sm:$0xf]
    %v2594 = vld [vmem:[%s14 + $0x60] sm:$0xf]
    %v2595 = vld [vmem:[%s14 + $0x64] sm:$0xf]
    %v2596 = vld [vmem:[%s14 + $0x68] sm:$0xf]
    %v2597 = vld [vmem:[%s14 + $0x6c] sm:$0xf]
    %v2598 = vld [vmem:[%s14 + $0x70] sm:$0xf]
    %v2599 = vld [vmem:[%s14 + $0x74] sm:$0xf]
    %v2600 = vld [vmem:[%s14 + $0x78] sm:$0xf]
    %v2601 = vld [vmem:[%s14 + $0x7c] sm:$0xf]
    %v2602 = vld [vmem:[%s15] sm:$0x1]
    %v2604 = vlaneseq
    %v2605 = vshrl.u32 %v2604, 7
    %v2606 = vsub.s32 0, %v2605
    %v2607 = vrot.slane %v2602, %v2606
    %v2641 = vunpack.c.l.b16 %v2570
    %v2642 = vunpack.c.l.b16 %v2571
    %v2643 = vunpack.c.l.b16 %v2572
    %v2644 = vunpack.c.l.b16 %v2573
    %v2645 = vunpack.c.l.b16 %v2574
    %v2646 = vunpack.c.l.b16 %v2575
    %v2647 = vunpack.c.l.b16 %v2576
    %v2648 = vunpack.c.l.b16 %v2577
    %v2649 = vunpack.c.l.b16 %v2578
    %v2650 = vunpack.c.l.b16 %v2579
    %v2651 = vunpack.c.l.b16 %v2580
    %v2652 = vunpack.c.l.b16 %v2581
    %v2653 = vunpack.c.l.b16 %v2582
    %v2654 = vunpack.c.l.b16 %v2583
    %v2655 = vunpack.c.l.b16 %v2584
    %v2656 = vunpack.c.l.b16 %v2585
    %v2657 = vunpack.c.l.b16 %v2586
    %v2658 = vunpack.c.l.b16 %v2587
    %v2659 = vunpack.c.l.b16 %v2588
    %v2660 = vunpack.c.l.b16 %v2589
    %v2661 = vunpack.c.l.b16 %v2590
    %v2662 = vunpack.c.l.b16 %v2591
    %v2663 = vunpack.c.l.b16 %v2592
    %v2664 = vunpack.c.l.b16 %v2593
    %v2665 = vunpack.c.l.b16 %v2594
    %v2666 = vunpack.c.l.b16 %v2595
    %v2667 = vunpack.c.l.b16 %v2596
    %v2668 = vunpack.c.l.b16 %v2597
    %v2669 = vunpack.c.l.b16 %v2598
    %v2670 = vunpack.c.l.b16 %v2599
    %v2671 = vunpack.c.l.b16 %v2600
    %v2672 = vunpack.c.l.b16 %v2601
    %v2673 = vpack.c.b16 %v2642, %v2641
    %v2674 = vpack.c.b16 %v2644, %v2643
    %v2675 = vpack.c.b16 %v2646, %v2645
    %v2676 = vpack.c.b16 %v2648, %v2647
    %v2677 = vpack.c.b16 %v2650, %v2649
    %v2678 = vpack.c.b16 %v2652, %v2651
    %v2679 = vpack.c.b16 %v2654, %v2653
    %v2680 = vpack.c.b16 %v2656, %v2655
    %v2681 = vpack.c.b16 %v2658, %v2657
    %v2682 = vpack.c.b16 %v2660, %v2659
    %v2683 = vpack.c.b16 %v2662, %v2661
    %v2684 = vpack.c.b16 %v2664, %v2663
    %v2685 = vpack.c.b16 %v2666, %v2665
    %v2686 = vpack.c.b16 %v2668, %v2667
    %v2687 = vpack.c.b16 %v2670, %v2669
    %v2688 = vpack.c.b16 %v2672, %v2671
    %2705 = vmatprep.subr.bf16.mxu0 0
    %2706 = vmatpush1.bf16.msra.mxu0 %v2673
    %2707 = vmatprep.subr.bf16.mxu0 0
    %2708 = vmatpush1.bf16.msra.mxu0 %v2674
    %2709 = vmatprep.subr.bf16.mxu0 0
    %2710 = vmatpush1.bf16.msra.mxu0 %v2675
    %2711 = vmatprep.subr.bf16.mxu0 0
    %2712 = vmatpush1.bf16.msra.mxu0 %v2676
    %2713 = vmatprep.subr.bf16.mxu0 0
    %2714 = vmatpush1.bf16.msra.mxu0 %v2677
    %2715 = vmatprep.subr.bf16.mxu0 0
    %2716 = vmatpush1.bf16.msra.mxu0 %v2678
    %2717 = vmatprep.subr.bf16.mxu0 0
    %2718 = vmatpush1.bf16.msra.mxu0 %v2679
    %2719 = vmatprep.subr.bf16.mxu0 0
    %2720 = vmatpush1.bf16.msra.mxu0 %v2680
    %2721 = vmatprep.subr.bf16.mxu0 0
    %2722 = vmatpush1.bf16.msra.mxu0 %v2681
    %2723 = vmatprep.subr.bf16.mxu0 0
    %2724 = vmatpush1.bf16.msra.mxu0 %v2682
    %2725 = vmatprep.subr.bf16.mxu0 0
    %2726 = vmatpush1.bf16.msra.mxu0 %v2683
    %2727 = vmatprep.subr.bf16.mxu0 0
    %2728 = vmatpush1.bf16.msra.mxu0 %v2684
    %2729 = vmatprep.subr.bf16.mxu0 0
    %2730 = vmatpush1.bf16.msra.mxu0 %v2685
    %2731 = vmatprep.subr.bf16.mxu0 0
    %2732 = vmatpush1.bf16.msra.mxu0 %v2686
    %2733 = vmatprep.subr.bf16.mxu0 0
    %2734 = vmatpush1.bf16.msra.mxu0 %v2687
    %2735 = vmatprep.subr.bf16.mxu0 0
    %2736 = vmatpush1.bf16.msra.mxu0 %v2688
    %2737 = vmatprep.mubr.bf16.mxu0 %v2569
    %2738 = vmatmul.mubr.bf16.gmra.mrb[0].mxu0 %v2568
    %v2739 = vpop.f32.mrb[0].mxu0
    %v2740 = vadd.f32 %v2607, %v2739
    %v2741 = vpop.f32.mrb[0].mxu0
    %v2742 = vpop.f32.mrb[0].mxu0
    %v2743 = vpop.f32.mrb[0].mxu0
    %2744 = vdwg.mxu0
    %vm2745 = vcmask 41984
    %v2746 = vsel %vm2745, %v2740, -inf
    %2747 = vmax.xlane.f32.xlu0 %v2746
    %v2748 = vpop.xlane.xlu0 %2747
    %v2749 = vsub.f32 %v2740, %v2748
    %v2750 = vmul.f32 %v2749, 1.442695
    %v2751 = vpow.pop %v2750
    %v2752 = vsel %vm2745, %v2751, 0.0
    %2753 = vadd.xlane.f32.xlu0 %v2752
    %v2754 = vpop.xlane.xlu0 %2753
    %v2755 = vlog2.pop %v2754
    %v2756 = vmul.f32 %v2755, 0.6931472
    %v2757 = vadd.f32 %v2756, %v2748
    %v2758 = vsub.f32 %v2740, %v2757
    %2759 = vst.msk [vmem:[%s17] sm:$0x3] %vm2745, %v2758
    %vm2760 = vcmask 50224
    %2761 = vst.msk [vmem:[%s17] sm:$0x3] %vm2760, %v2740
    // Predicated region
    $region66: #{actor_critic_forward.1} parent=1 // pred_check
      _
    $region67: #{actor_critic_forward.1} parent=1 // pred_check_branch
      %2763 = sbr.rel (0) target = $region69
    $region68: #{actor_critic_forward.1} parent=1 // pred_region
      %s2765 = ssub.s32 64, 64
      %2766 = vsyncadd [#allocation5], %s2765
      %s2768 = sshll.u32 [#allocation4], 4
      %s2769 = int_to_ptr.vmem [resolvable:$true] %s2768
      %2771 = dma.vmem_to_hbm [thread:$0]  %s2769, 64, %s16, [#allocation5]
    $region69: #{actor_critic_forward.1} parent=1 // pred_fallthru
      _
    // Predicated region
    $region70: #{actor_critic_forward.1} parent=1 // pred_check
      _
    $region71: #{actor_critic_forward.1} parent=1 // pred_check_branch
      %2773 = sbr.rel (0) target = $region73
    $region72: #{actor_critic_forward.1} parent=1 // pred_region
      _
    $region73: #{actor_critic_forward.1} parent=1 // pred_fallthru
      _
    // Predicated region
    $region74: #{actor_critic_forward.1} parent=1 // pred_check
      _
    $region75: #{actor_critic_forward.1} parent=1 // pred_check_branch
      %2775 = sbr.rel (0) target = $region77
    $region76: #{actor_critic_forward.1} parent=1 // pred_region
      %2776 = dma.done [#allocation5], 64
    $region77: #{actor_critic_forward.1} parent=1 // pred_fallthru
      _
    // Predicated region
    $region78: #{actor_critic_forward.1} parent=1 // pred_check
      _
    $region79: #{actor_critic_forward.1} parent=1 // pred_check_branch
      %2778 = sbr.rel (0) target = $region81
    $region80: #{actor_critic_forward.1} parent=1 // pred_region
      _
    $region81: #{actor_critic_forward.1} parent=1 // pred_fallthru
      _
    %2779 = vsyncpa [#allocation5], 1

</llo_original>
